<compile_context>
chip_gen: v7x
topology: tpu7x:2x2x1
jax: 0.10.0
libtpu: 0.0.40
codegen_flags: <defaults>
</compile_context>

<pallas_src>
import functools

import jax
import jax.numpy as jnp
import numpy as np
from jax.experimental import pallas as pl
from jax.experimental.pallas import tpu as pltpu

# Explicit scoped-VMEM limit: portable across v5e/v6e/v7x (<= physical on all).
_VMEM_LIMIT = 32 * 1024 * 1024


def _row_tile(m, cap=512):
    """Row-tile: full dim when small, else a divisor of m or a fixed cap with a
    ragged tail (Pallas masks the out-of-range rows of the last block)."""
    if m <= cap:
        return m
    for cand in (cap, 256, 128):
        if m % cand == 0:
            return cand
    return cap


# ----------------------------------------------------------------------------
# 1) Hoisted input convolution, both directions fused into one matmul.
#    xcol (M, K) is read once; weight columns are [fwd 4C | bwd 4C]; the
#    accumulator is split in-kernel into the (2, M, 4C) bf16 layout consumed
#    by the recurrence (a pure reshape away from (2, B, T, HW, 4C)).
# ----------------------------------------------------------------------------
def _input_conv_kernel(x_ref, w_ref, b_ref, o_ref):
    n = o_ref.shape[-1]                                           # 4*Cout
    acc = jnp.dot(x_ref[...].astype(jnp.bfloat16), w_ref[...],
                  preferred_element_type=jnp.float32) + b_ref[...]
    o_ref[0] = acc[:, :n].astype(o_ref.dtype)                     # forward gates
    o_ref[1] = acc[:, n:].astype(o_ref.dtype)                     # backward gates


def _input_conv(xcol, w_cat, b_cat):
    M, K = xcol.shape
    N2 = w_cat.shape[-1]
    N = N2 // 2
    tm = _row_tile(M)
    return pl.pallas_call(
        _input_conv_kernel,
        out_shape=jax.ShapeDtypeStruct((2, M, N), jnp.bfloat16),
        grid=(pl.cdiv(M, tm),),
        in_specs=[
            pl.BlockSpec((tm, K), lambda m: (m, 0)),
            pl.BlockSpec((K, N2), lambda m: (0, 0)),
            pl.BlockSpec((1, N2), lambda m: (0, 0)),
        ],
        out_specs=pl.BlockSpec((2, tm, N), lambda m: (0, m, 0)),
        compiler_params=pltpu.CompilerParams(
            dimension_semantics=("parallel",),
            vmem_limit_bytes=_VMEM_LIMIT),
    )(xcol, w_cat, b_cat)


# ----------------------------------------------------------------------------
# 2) Recurrent ConvLSTM.  grid = (direction, batch, time); time is the
#    innermost "arbitrary" axis so Pallas streams one xconv / output tile per
#    step.  h/c and the zero-padded h buffer persist in VMEM scratch.
# ----------------------------------------------------------------------------
def _convlstm_step_kernel(
    xconv_ref, wh_ref, wci_ref, wcf_ref, wco_ref,     # inputs
    out_ref, hfin_ref, cfin_ref,                      # outputs
    hpad_ref, c_ref,                                  # scratch (persist over t)
    *, T, H, W, Cout, KH, KW, PH, PW,
):
    t = pl.program_id(2)
    HW = H * W

    @pl.when(t == 0)
    def _():
        hpad_ref[...] = jnp.zeros_like(hpad_ref)      # zero border stays zero
        c_ref[...] = jnp.zeros_like(c_ref)

    # --- one fused h-conv matmul over all KH*KW taps -------------------------
    hp = hpad_ref[...]                                # (H+2PH, W+2PW, Cout) f32
    taps = [hp[dy:dy + H, dx:dx + W, :].reshape(HW, Cout)
            for dy in range(KH) for dx in range(KW)]
    hcols = jnp.concatenate(taps, axis=-1).astype(jnp.bfloat16)   # (HW, KH*KW*C)
    conv = xconv_ref[...].astype(jnp.float32) + jnp.dot(
        hcols, wh_ref[...], preferred_element_type=jnp.float32)   # (HW, 4*Cout)

    # --- gate math (f32) ------------------------------------------------------
    c = c_ref[...]
    ci = conv[:, 0 * Cout:1 * Cout]
    cf = conv[:, 1 * Cout:2 * Cout]
    cc = conv[:, 2 * Cout:3 * Cout]
    co = conv[:, 3 * Cout:4 * Cout]
    i_g = jax.nn.sigmoid(ci + wci_ref[...] * c)
    f_g = jax.nn.sigmoid(cf + wcf_ref[...] * c)
    c_new = f_g * c + i_g * jnp.tanh(cc)
    o_g = jax.nn.sigmoid(co + wco_ref[...] * c_new)
    h_new = o_g * jnp.tanh(c_new)

    out_ref[...] = h_new                              # streamed back per step
    c_ref[...] = c_new
    hpad_ref[PH:PH + H, PW:PW + W, :] = h_new.reshape(H, W, Cout)

    @pl.when(t == T - 1)
    def _():
        hfin_ref[...] = h_new                         # final states, written once
        cfin_ref[...] = c_new


def _convlstm_bidirectional(xconv, wh, wci, wcf, wco,
                            *, T, H, W, Cout, KH, KW, PH, PW):
    B = xconv.shape[1]
    HW = H * W
    kern = functools.partial(_convlstm_step_kernel, T=T, H=H, W=W, Cout=Cout,
                             KH=KH, KW=KW, PH=PH, PW=PW)

    def t_idx(d, t):
        # forward: t ; backward: T-1-t  (pure scalar arithmetic in the index map)
        return d * (T - 1) + (1 - 2 * d) * t

    out_shape = (
        jax.ShapeDtypeStruct((2, B, T, HW, Cout), jnp.float32),
        jax.ShapeDtypeStruct((2, B, HW, Cout), jnp.float32),
        jax.ShapeDtypeStruct((2, B, HW, Cout), jnp.float32),
    )
    in_specs = [
        pl.BlockSpec((None, None, None, HW, 4 * Cout),
                     lambda d, b, t: (d, b, t_idx(d, t), 0, 0)),
        pl.BlockSpec((None, KH * KW * Cout, 4 * Cout), lambda d, b, t: (d, 0, 0)),
        pl.BlockSpec((None, HW, Cout), lambda d, b, t: (d, 0, 0)),
        pl.BlockSpec((None, HW, Cout), lambda d, b, t: (d, 0, 0)),
        pl.BlockSpec((None, HW, Cout), lambda d, b, t: (d, 0, 0)),
    ]
    out_specs = (
        pl.BlockSpec((None, None, None, HW, Cout),
                     lambda d, b, t: (d, b, t_idx(d, t), 0, 0)),
        pl.BlockSpec((None, None, HW, Cout), lambda d, b, t: (d, b, 0, 0)),
        pl.BlockSpec((None, None, HW, Cout), lambda d, b, t: (d, b, 0, 0)),
    )
    scratch = [
        pltpu.VMEM((H + 2 * PH, W + 2 * PW, Cout), jnp.float32),  # padded h
        pltpu.VMEM((HW, Cout), jnp.float32),                      # cell state
    ]
    return pl.pallas_call(
        kern,
        out_shape=out_shape,
        grid=(2, B, T),
        in_specs=in_specs,
        out_specs=out_specs,
        scratch_shapes=scratch,
        compiler_params=pltpu.CompilerParams(
            dimension_semantics=("parallel", "parallel", "arbitrary"),
            vmem_limit_bytes=_VMEM_LIMIT),
    )(xconv, wh, wci, wcf, wco)


# ----------------------------------------------------------------------------
# 3) Fused per-pixel fc_hidden / fc_cell (grouped, M-tiled).
# ----------------------------------------------------------------------------
def _linear_kernel(x_ref, w_ref, b_ref, o_ref):
    o_ref[...] = (jnp.dot(x_ref[...].astype(jnp.bfloat16), w_ref[...],
                          preferred_element_type=jnp.float32) + b_ref[...])


def _grouped_linear(xg, w3, b3):
    G, M, K = xg.shape
    N = w3.shape[-1]
    tm = _row_tile(M)
    return pl.pallas_call(
        _linear_kernel,
        out_shape=jax.ShapeDtypeStruct((G, M, N), jnp.float32),
        grid=(G, pl.cdiv(M, tm)),
        in_specs=[
            pl.BlockSpec((None, tm, K), lambda g, m: (g, m, 0)),
            pl.BlockSpec((None, K, N), lambda g, m: (g, 0, 0)),
            pl.BlockSpec((None, 1, N), lambda g, m: (g, 0, 0)),
        ],
        out_specs=pl.BlockSpec((None, tm, N), lambda g, m: (g, m, 0)),
        compiler_params=pltpu.CompilerParams(
            dimension_semantics=("parallel", "parallel"),
            vmem_limit_bytes=_VMEM_LIMIT),
    )(xg, w3, b3)


# ----------------------------------------------------------------------------
# Full Encoder forward (bidirectional ConvLSTM + fused per-pixel linears).
# ----------------------------------------------------------------------------
def encoder_forward(x, params, kernel_size, padding):
    """x: [B, C_in, T, H, W] -> (output, hidden_state, cell_input), PyTorch layout."""
    B, Cin, T, H, W = x.shape
    KH, KW = kernel_size
    PH, PW = padding
    HW = H * W
    Cout = params["fwd"][3].shape[-1]

    # channels-last + im2col of the input (layout plumbing, plain XLA)
    x_bthwc = jnp.transpose(x, (0, 2, 3, 4, 1))                        # (B,T,H,W,Cin)
    xp = jnp.pad(x_bthwc, ((0, 0), (0, 0), (PH, PH), (PW, PW), (0, 0)))
    cols = [xp[:, :, dy:dy + H, dx:dx + W, :]
            for dy in range(KH) for dx in range(KW)]
    xcol = jnp.concatenate(cols, axis=-1).reshape(B * T * HW, KH * KW * Cin)

    # direction-fused input-conv weights: columns = [fwd 4C | bwd 4C]
    wx_cat = jnp.concatenate(
        [params["fwd"][0].reshape(KH * KW * Cin, 4 * Cout),
         params["bwd"][0].reshape(KH * KW * Cin, 4 * Cout)],
        axis=1).astype(jnp.bfloat16)
    b_cat = jnp.concatenate(
        [params["fwd"][2].reshape(1, 4 * Cout),
         params["bwd"][2].reshape(1, 4 * Cout)], axis=1)

    # 1) hoisted input convolution (+bias), both directions in one matmul
    xconv = _input_conv(xcol, wx_cat, b_cat)                           # (2, B*T*HW, 4C) bf16
    xconv = xconv.reshape(2, B, T, HW, 4 * Cout)                       # pure reshape

    # direction-stacked recurrent parameters
    wh_g = jnp.stack([params["fwd"][1].reshape(KH * KW * Cout, 4 * Cout),
                      params["bwd"][1].reshape(KH * KW * Cout, 4 * Cout)],
                     0).astype(jnp.bfloat16)
    wci_g = jnp.stack([params["fwd"][3].reshape(HW, Cout),
                       params["bwd"][3].reshape(HW, Cout)], 0)
    wcf_g = jnp.stack([params["fwd"][4].reshape(HW, Cout),
                       params["bwd"][4].reshape(HW, Cout)], 0)
    wco_g = jnp.stack([params["fwd"][5].reshape(HW, Cout),
                       params["bwd"][5].reshape(HW, Cout)], 0)

    # 2) bidirectional recurrence, streamed per timestep
    out, hfin, cfin = _convlstm_bidirectional(
        xconv, wh_g, wci_g, wcf_g, wco_g,
        T=T, H=H, W=W, Cout=Cout, KH=KH, KW=KW, PH=PH, PW=PW)

    # out: (2,B,T,HW,C) -> (B, 2C, T, H, W) in ONE permutation pass
    output = jnp.transpose(out, (1, 0, 4, 2, 3)).reshape(B, 2 * Cout, T, H, W)

    hidden = jnp.transpose(hfin, (1, 2, 0, 3)).reshape(B * HW, 2 * Cout)
    cell = jnp.transpose(cfin, (1, 2, 0, 3)).reshape(B * HW, 2 * Cout)

    # 3) fused fc_hidden / fc_cell (single pallas_call with a group axis)
    lin_x = jnp.stack([hidden, cell], 0)                               # (2, B*HW, 2C)
    lin_w = jnp.stack([params["fc_hidden_w"], params["fc_cell_w"]],
                      0).astype(jnp.bfloat16)                          # (2, 2C, C)
    lin_b = jnp.stack([params["fc_hidden_b"].reshape(1, Cout),
                       params["fc_cell_b"].reshape(1, Cout)], 0)       # (2, 1, C)
    y = _grouped_linear(lin_x, lin_w, lin_b)                           # (2, B*HW, C)

    hidden_out = jnp.transpose(y[0].reshape(B, H, W, Cout), (0, 3, 1, 2))
    cell_out = jnp.transpose(y[1].reshape(B, H, W, Cout), (0, 3, 1, 2))
    return output, hidden_out, cell_out


# ----------------------------------------------------------------------------
# Pure-JAX reference (lax.conv, f32 HIGHEST) to validate the Pallas kernels.
# ----------------------------------------------------------------------------
def _ref_direction(x_bthwc, params, kernel_size, padding):
    wx, wh, b, wci, wcf, wco = params
    KH, KW = kernel_size
    PH, PW = padding
    B, T, H, W, Cin = x_bthwc.shape
    Cout = wci.shape[-1]
    w_hwio = jnp.concatenate(
        [wx.reshape(KH, KW, Cin, 4 * Cout), wh.reshape(KH, KW, Cout, 4 * Cout)], axis=2
    )
    h = jnp.zeros((B, H, W, Cout), jnp.float32)
    c = jnp.zeros_like(h)
    outs = []
    for t in range(T):
        xh = jnp.concatenate([x_bthwc[:, t], h], axis=-1)
        conv = jax.lax.conv_general_dilated(
            xh, w_hwio, (1, 1), ((PH, PH), (PW, PW)),
            dimension_numbers=("NHWC", "HWIO", "NHWC"),
            precision=jax.lax.Precision.HIGHEST,
        ) + b.reshape(1, 1, 1, -1)
        ci, cf, cc, co = jnp.split(conv, 4, axis=-1)
        i_g = jax.nn.sigmoid(ci + wci * c)
        f_g = jax.nn.sigmoid(cf + wcf * c)
        c = f_g * c + i_g * jnp.tanh(cc)
        o_g = jax.nn.sigmoid(co + wco * c)
        h = o_g * jnp.tanh(c)
        outs.append(h)
    return jnp.stack(outs, axis=1), h, c


def _ref_encoder(x, params, kernel_size, padding):
    B, Cin, T, H, W = x.shape
    xt = jnp.transpose(x, (0, 2, 3, 4, 1))
    of, hf, cf = _ref_direction(xt, params["fwd"], kernel_size, padding)
    obr, hb, cb = _ref_direction(xt[:, ::-1], params["bwd"], kernel_size, padding)
    ob = obr[:, ::-1]
    output = jnp.transpose(jnp.concatenate([of, ob], -1), (0, 4, 1, 2, 3))
    hid = jnp.concatenate([hf, hb], -1)
    cel = jnp.concatenate([cf, cb], -1)

    def fc(t_bhwc, w, b):
        y = jnp.dot(t_bhwc.reshape(B * H * W, -1), w,
                    precision=jax.lax.Precision.HIGHEST) + b
        return jnp.transpose(y.reshape(B, H, W, -1), (0, 3, 1, 2))

    return (output,
            fc(hid, params["fc_hidden_w"], params["fc_hidden_b"]),
            fc(cel, params["fc_cell_w"], params["fc_cell_b"]))


# ----------------------------------------------------------------------------
# Deterministic parameter construction + demo run.
# ----------------------------------------------------------------------------
def make_params(key, Cin, Cout, kernel_size, frame_size):
    KH, KW = kernel_size
    H, W = frame_size
    ks = jax.random.split(key, 16)

    def direction(kset):
        k0, k1, k2, k3, k4, k5 = kset
        return (
            0.1 * jax.random.normal(k0, (KH * KW, Cin, 4 * Cout), jnp.float32),
            0.1 * jax.random.normal(k1, (KH * KW, Cout, 4 * Cout), jnp.float32),
            0.1 * jax.random.normal(k2, (1, 4 * Cout), jnp.float32),
            0.1 * jax.random.normal(k3, (H, W, Cout), jnp.float32),
            0.1 * jax.random.normal(k4, (H, W, Cout), jnp.float32),
            0.1 * jax.random.normal(k5, (H, W, Cout), jnp.float32),
        )

    return {
        "fwd": direction(ks[0:6]),
        "bwd": direction(ks[6:12]),
        # stored as [in_features, out_features] (PyTorch weight transposed)
        "fc_hidden_w": 0.1 * jax.random.normal(ks[12], (2 * Cout, Cout), jnp.float32),
        "fc_hidden_b": 0.1 * jax.random.normal(ks[13], (Cout,), jnp.float32),
        "fc_cell_w": 0.1 * jax.random.normal(ks[14], (2 * Cout, Cout), jnp.float32),
        "fc_cell_b": 0.1 * jax.random.normal(ks[15], (Cout,), jnp.float32),
    }


if __name__ == "__main__":
    B, Cin, Cout, T, H, W = 2, 4, 8, 4, 8, 8
    kernel_size = (3, 3)
    padding = (1, 1)
    frame_size = (H, W)

    root = jax.random.PRNGKey(0)
    kx, kp = jax.random.split(root)
    x = jax.random.normal(kx, (B, Cin, T, H, W), jnp.float32)
    params = make_params(kp, Cin, Cout, kernel_size, frame_size)

    fwd = jax.jit(functools.partial(encoder_forward,
                                    kernel_size=kernel_size, padding=padding))
    output, hidden_state, cell_input = jax.block_until_ready(fwd(x, params))

    assert output.shape == (B, 2 * Cout, T, H, W)
    assert hidden_state.shape == (B, Cout, H, W)
    assert cell_input.shape == (B, Cout, H, W)

    # Tolerance loosened vs. the all-f32 version: matmul operands and the
    # hoisted xconv intermediate are bf16 (f32 accumulation / gate math).
    ref_out, ref_hid, ref_cell = _ref_encoder(x, params, kernel_size, padding)
    np.testing.assert_allclose(np.asarray(output), np.asarray(ref_out),
                               rtol=3e-2, atol=3e-2)
    np.testing.assert_allclose(np.asarray(hidden_state), np.asarray(ref_hid),
                               rtol=3e-2, atol=3e-2)
    np.testing.assert_allclose(np.asarray(cell_input), np.asarray(ref_cell),
                               rtol=3e-2, atol=3e-2)

    print("KERNEL_OK")
</pallas_src>

<mosaic_0001>
module attributes {stable_mosaic.version = 11 : i64} {
  func.func @_input_conv_kernel(%arg0: i32, %arg1: memref<512x36xf32, #tpu.memory_space<vmem>>, %arg2: memref<36x64xbf16, #tpu.memory_space<vmem>>, %arg3: memref<1x64xf32, #tpu.memory_space<vmem>>, %arg4: memref<2x512x32xbf16, #tpu.memory_space<vmem>>) attributes {dimension_semantics = [#tpu.dimension_semantics<parallel>], iteration_bounds = array<i64: 1>, scalar_prefetch = 0 : i64, scratch_operands = 0 : i64, tpu.core_type = #tpu.core_type<tc>, window_params = [{transform_indices = @transform_0, window_bounds = array<i64: 512, 36>}, {pipeline_mode = #tpu.pipeline_mode<synchronous>, transform_indices = @transform_1, window_bounds = array<i64: 36, 64>}, {pipeline_mode = #tpu.pipeline_mode<synchronous>, transform_indices = @transform_2, window_bounds = array<i64: 1, 64>}, {transform_indices = @transform_3, window_bounds = array<i64: 2, 512, 32>}]} {
    %c0 = arith.constant 0 : index
    %c0_0 = arith.constant 0 : index
    %0 = vector.load %arg1[%c0, %c0_0] : memref<512x36xf32, #tpu.memory_space<vmem>>, vector<512x36xf32>
    %1 = arith.truncf %0 : vector<512x36xf32> to vector<512x36xbf16>
    %c0_1 = arith.constant 0 : index
    %c0_2 = arith.constant 0 : index
    %2 = vector.load %arg2[%c0_1, %c0_2] : memref<36x64xbf16, #tpu.memory_space<vmem>>, vector<36x64xbf16>
    %cst = arith.constant dense<0.000000e+00> : vector<512x64xf32>
    %3 = tpu.matmul %1, %2, %cst {dimension_numbers = #tpu.dot_dimension_numbers<[1], [0], [0], [1], [0, 0, 1, 1], [], []>} : vector<512x36xbf16>, vector<36x64xbf16>, vector<512x64xf32> -> vector<512x64xf32>
    %c0_3 = arith.constant 0 : index
    %c0_4 = arith.constant 0 : index
    %4 = vector.load %arg3[%c0_3, %c0_4] : memref<1x64xf32, #tpu.memory_space<vmem>>, vector<1x64xf32>
    %5 = vector.broadcast %4 : vector<1x64xf32> to vector<512x64xf32>
    %6 = arith.addf %3, %5 : vector<512x64xf32>
    %7 = vector.extract_strided_slice %6 {offsets = [0, 0], sizes = [512, 32], strides = [1, 1]} : vector<512x64xf32> to vector<512x32xf32>
    %8 = arith.truncf %7 : vector<512x32xf32> to vector<512x32xbf16>
    %c0_5 = arith.constant 0 : index
    %c0_6 = arith.constant 0 : index
    %c0_7 = arith.constant 0 : index
    %9 = vector.load %arg4[%c0_5, %c0_6, %c0_7] : memref<2x512x32xbf16, #tpu.memory_space<vmem>>, vector<1x512x32xbf16>
    %10 = vector.shape_cast %9 : vector<1x512x32xbf16> to vector<512x32xbf16>
    %11 = vector.shape_cast %8 : vector<512x32xbf16> to vector<1x512x32xbf16>
    tpu.vector_store %arg4[%c0_5, %c0_6, %c0_7], %11 {strides = array<i32>} : memref<2x512x32xbf16, #tpu.memory_space<vmem>>, vector<1x512x32xbf16>,
    %12 = vector.extract_strided_slice %6 {offsets = [0, 32], sizes = [512, 32], strides = [1, 1]} : vector<512x64xf32> to vector<512x32xf32>
    %13 = arith.truncf %12 : vector<512x32xf32> to vector<512x32xbf16>
    %c1 = arith.constant 1 : index
    %c0_8 = arith.constant 0 : index
    %c0_9 = arith.constant 0 : index
    %14 = vector.load %arg4[%c1, %c0_8, %c0_9] : memref<2x512x32xbf16, #tpu.memory_space<vmem>>, vector<1x512x32xbf16>
    %15 = vector.shape_cast %14 : vector<1x512x32xbf16> to vector<512x32xbf16>
    %16 = vector.shape_cast %13 : vector<512x32xbf16> to vector<1x512x32xbf16>
    tpu.vector_store %arg4[%c1, %c0_8, %c0_9], %16 {strides = array<i32>} : memref<2x512x32xbf16, #tpu.memory_space<vmem>>, vector<1x512x32xbf16>,
    return
  }
  func.func @transform_0(%arg0: i32) -> (i32, i32) {
    %c0_i32 = arith.constant 0 : i32
    %c0_i32_0 = arith.constant 0 : i32
    return %arg0, %c0_i32 : i32, i32
  }
  func.func @transform_1(%arg0: i32) -> (i32, i32) {
    %c0_i32 = arith.constant 0 : i32
    %c0_i32_0 = arith.constant 0 : i32
    %c0_i32_1 = arith.constant 0 : i32
    return %c0_i32, %c0_i32_0 : i32, i32
  }
  func.func @transform_2(%arg0: i32) -> (i32, i32) {
    %c0_i32 = arith.constant 0 : i32
    %c0_i32_0 = arith.constant 0 : i32
    %c0_i32_1 = arith.constant 0 : i32
    return %c0_i32, %c0_i32_0 : i32, i32
  }
  func.func @transform_3(%arg0: i32) -> (i32, i32, i32) {
    %c0_i32 = arith.constant 0 : i32
    %c0_i32_0 = arith.constant 0 : i32
    %c0_i32_1 = arith.constant 0 : i32
    return %c0_i32, %arg0, %c0_i32_0 : i32, i32, i32
  }
}

module attributes {stable_mosaic.version = 11 : i64} {
  func.func @_convlstm_step_kernel(%arg0: i32, %arg1: i32, %arg2: i32, %arg3: memref<1x1x1x64x32xbf16, #tpu.memory_space<vmem>>, %arg4: memref<1x72x32xbf16, #tpu.memory_space<vmem>>, %arg5: memref<1x64x8xf32, #tpu.memory_space<vmem>>, %arg6: memref<1x64x8xf32, #tpu.memory_space<vmem>>, %arg7: memref<1x64x8xf32, #tpu.memory_space<vmem>>, %arg8: memref<1x1x1x64x8xf32, #tpu.memory_space<vmem>>, %arg9: memref<1x1x64x8xf32, #tpu.memory_space<vmem>>, %arg10: memref<1x1x64x8xf32, #tpu.memory_space<vmem>>, %arg11: memref<10x10x8xf32, #tpu.memory_space<vmem>>, %arg12: memref<64x8xf32, #tpu.memory_space<vmem>>) attributes {dimension_semantics = [#tpu.dimension_semantics<parallel>, #tpu.dimension_semantics<parallel>, #tpu.dimension_semantics<arbitrary>], iteration_bounds = array<i64: 2, 2, 4>, scalar_prefetch = 0 : i64, scratch_operands = 2 : i64, tpu.core_type = #tpu.core_type<tc>, window_params = [{transform_indices = @transform_0, window_bounds = array<i64: 1, 1, 1, 64, 32>}, {transform_indices = @transform_1, window_bounds = array<i64: 1, 72, 32>}, {transform_indices = @transform_2, window_bounds = array<i64: 1, 64, 8>}, {transform_indices = @transform_3, window_bounds = array<i64: 1, 64, 8>}, {transform_indices = @transform_4, window_bounds = array<i64: 1, 64, 8>}, {transform_indices = @transform_5, window_bounds = array<i64: 1, 1, 1, 64, 8>}, {transform_indices = @transform_6, window_bounds = array<i64: 1, 1, 64, 8>}, {transform_indices = @transform_7, window_bounds = array<i64: 1, 1, 64, 8>}]} {
    %c0_i32 = arith.constant 0 : i32
    %0 = arith.cmpi eq, %arg2, %c0_i32 : i32
    %1 = arith.extui %0 : i1 to i32
    %c0_i32_0 = arith.constant 0 : i32
    %2 = arith.cmpi ne, %1, %c0_i32_0 : i32
    scf.if %2 {
      %cst_35 = arith.constant 0.000000e+00 : f32
      %78 = vector.broadcast %cst_35 : f32 to vector<10x10x8xf32>
      %c0_36 = arith.constant 0 : index
      %c0_37 = arith.constant 0 : index
      %c0_38 = arith.constant 0 : index
      %79 = vector.load %arg11[%c0_36, %c0_37, %c0_38] : memref<10x10x8xf32, #tpu.memory_space<vmem>>, vector<10x10x8xf32>
      tpu.vector_store %arg11[%c0_36, %c0_37, %c0_38], %78 {strides = array<i32>} : memref<10x10x8xf32, #tpu.memory_space<vmem>>, vector<10x10x8xf32>,
      %cst_39 = arith.constant 0.000000e+00 : f32
      %80 = vector.broadcast %cst_39 : f32 to vector<64x8xf32>
      %c0_40 = arith.constant 0 : index
      %c0_41 = arith.constant 0 : index
      %81 = vector.load %arg12[%c0_40, %c0_41] : memref<64x8xf32, #tpu.memory_space<vmem>>, vector<64x8xf32>
      tpu.vector_store %arg12[%c0_40, %c0_41], %80 {strides = array<i32>} : memref<64x8xf32, #tpu.memory_space<vmem>>, vector<64x8xf32>,
    } else {
    }
    %c0 = arith.constant 0 : index
    %c0_1 = arith.constant 0 : index
    %c0_2 = arith.constant 0 : index
    %3 = vector.load %arg11[%c0, %c0_1, %c0_2] : memref<10x10x8xf32, #tpu.memory_space<vmem>>, vector<10x10x8xf32>
    %4 = vector.extract_strided_slice %3 {offsets = [0, 0, 0], sizes = [8, 8, 8], strides = [1, 1, 1]} : vector<10x10x8xf32> to vector<8x8x8xf32>
    %5 = vector.shape_cast %4 : vector<8x8x8xf32> to vector<64x8xf32>
    %6 = vector.extract_strided_slice %3 {offsets = [0, 1, 0], sizes = [8, 8, 8], strides = [1, 1, 1]} : vector<10x10x8xf32> to vector<8x8x8xf32>
    %7 = vector.shape_cast %6 : vector<8x8x8xf32> to vector<64x8xf32>
    %8 = vector.extract_strided_slice %3 {offsets = [0, 2, 0], sizes = [8, 8, 8], strides = [1, 1, 1]} : vector<10x10x8xf32> to vector<8x8x8xf32>
    %9 = vector.shape_cast %8 : vector<8x8x8xf32> to vector<64x8xf32>
    %10 = vector.extract_strided_slice %3 {offsets = [1, 0, 0], sizes = [8, 8, 8], strides = [1, 1, 1]} : vector<10x10x8xf32> to vector<8x8x8xf32>
    %11 = vector.shape_cast %10 : vector<8x8x8xf32> to vector<64x8xf32>
    %12 = vector.extract_strided_slice %3 {offsets = [1, 1, 0], sizes = [8, 8, 8], strides = [1, 1, 1]} : vector<10x10x8xf32> to vector<8x8x8xf32>
    %13 = vector.shape_cast %12 : vector<8x8x8xf32> to vector<64x8xf32>
    %14 = vector.extract_strided_slice %3 {offsets = [1, 2, 0], sizes = [8, 8, 8], strides = [1, 1, 1]} : vector<10x10x8xf32> to vector<8x8x8xf32>
    %15 = vector.shape_cast %14 : vector<8x8x8xf32> to vector<64x8xf32>
    %16 = vector.extract_strided_slice %3 {offsets = [2, 0, 0], sizes = [8, 8, 8], strides = [1, 1, 1]} : vector<10x10x8xf32> to vector<8x8x8xf32>
    %17 = vector.shape_cast %16 : vector<8x8x8xf32> to vector<64x8xf32>
    %18 = vector.extract_strided_slice %3 {offsets = [2, 1, 0], sizes = [8, 8, 8], strides = [1, 1, 1]} : vector<10x10x8xf32> to vector<8x8x8xf32>
    %19 = vector.shape_cast %18 : vector<8x8x8xf32> to vector<64x8xf32>
    %20 = vector.extract_strided_slice %3 {offsets = [2, 2, 0], sizes = [8, 8, 8], strides = [1, 1, 1]} : vector<10x10x8xf32> to vector<8x8x8xf32>
    %21 = vector.shape_cast %20 : vector<8x8x8xf32> to vector<64x8xf32>
    %22 = tpu.concatenate %5, %7, %9, %11, %13, %15, %17, %19, %21 in 1 : vector<64x8xf32>, vector<64x8xf32>, vector<64x8xf32>, vector<64x8xf32>, vector<64x8xf32>, vector<64x8xf32>, vector<64x8xf32>, vector<64x8xf32>, vector<64x8xf32> -> vector<64x72xf32>
    %23 = arith.truncf %22 : vector<64x72xf32> to vector<64x72xbf16>
    %c0_3 = arith.constant 0 : index
    %c0_4 = arith.constant 0 : index
    %c0_5 = arith.constant 0 : index
    %c0_6 = arith.constant 0 : index
    %c0_7 = arith.constant 0 : index
    %24 = vector.load %arg3[%c0_3, %c0_4, %c0_5, %c0_6, %c0_7] : memref<1x1x1x64x32xbf16, #tpu.memory_space<vmem>>, vector<1x1x1x64x32xbf16>
    %25 = vector.shape_cast %24 : vector<1x1x1x64x32xbf16> to vector<64x32xbf16>
    %26 = arith.extf %25 : vector<64x32xbf16> to vector<64x32xf32>
    %c0_8 = arith.constant 0 : index
    %c0_9 = arith.constant 0 : index
    %c0_10 = arith.constant 0 : index
    %27 = vector.load %arg4[%c0_8, %c0_9, %c0_10] : memref<1x72x32xbf16, #tpu.memory_space<vmem>>, vector<1x72x32xbf16>
    %28 = vector.shape_cast %27 : vector<1x72x32xbf16> to vector<72x32xbf16>
    %cst = arith.constant dense<0.000000e+00> : vector<64x32xf32>
    %29 = tpu.matmul %23, %28, %cst {dimension_numbers = #tpu.dot_dimension_numbers<[1], [0], [0], [1], [0, 0, 1, 1], [], []>} : vector<64x72xbf16>, vector<72x32xbf16>, vector<64x32xf32> -> vector<64x32xf32>
    %30 = arith.addf %26, %29 : vector<64x32xf32>
    %c0_11 = arith.constant 0 : index
    %c0_12 = arith.constant 0 : index
    %31 = vector.load %arg12[%c0_11, %c0_12] : memref<64x8xf32, #tpu.memory_space<vmem>>, vector<64x8xf32>
    %32 = vector.extract_strided_slice %30 {offsets = [0, 0], sizes = [64, 8], strides = [1, 1]} : vector<64x32xf32> to vector<64x8xf32>
    %33 = vector.extract_strided_slice %30 {offsets = [0, 8], sizes = [64, 8], strides = [1, 1]} : vector<64x32xf32> to vector<64x8xf32>
    %34 = vector.extract_strided_slice %30 {offsets = [0, 16], sizes = [64, 8], strides = [1, 1]} : vector<64x32xf32> to vector<64x8xf32>
    %35 = vector.extract_strided_slice %30 {offsets = [0, 24], sizes = [64, 8], strides = [1, 1]} : vector<64x32xf32> to vector<64x8xf32>
    %c0_13 = arith.constant 0 : index
    %c0_14 = arith.constant 0 : index
    %c0_15 = arith.constant 0 : index
    %36 = vector.load %arg5[%c0_13, %c0_14, %c0_15] : memref<1x64x8xf32, #tpu.memory_space<vmem>>, vector<1x64x8xf32>
    %37 = vector.shape_cast %36 : vector<1x64x8xf32> to vector<64x8xf32>
    %38 = arith.mulf %37, %31 : vector<64x8xf32>
    %39 = arith.addf %32, %38 : vector<64x8xf32>
    %40 = arith.negf %39 : vector<64x8xf32>
    %41 = math.exp %40 : vector<64x8xf32>
    %cst_16 = arith.constant 1.000000e+00 : f32
    %42 = vector.broadcast %cst_16 : f32 to vector<64x8xf32>
    %43 = arith.addf %42, %41 : vector<64x8xf32>
    %44 = arith.divf %42, %43 : vector<64x8xf32>
    %c0_17 = arith.constant 0 : index
    %c0_18 = arith.constant 0 : index
    %c0_19 = arith.constant 0 : index
    %45 = vector.load %arg6[%c0_17, %c0_18, %c0_19] : memref<1x64x8xf32, #tpu.memory_space<vmem>>, vector<1x64x8xf32>
    %46 = vector.shape_cast %45 : vector<1x64x8xf32> to vector<64x8xf32>
    %47 = arith.mulf %46, %31 : vector<64x8xf32>
    %48 = arith.addf %33, %47 : vector<64x8xf32>
    %49 = arith.negf %48 : vector<64x8xf32>
    %50 = math.exp %49 : vector<64x8xf32>
    %cst_20 = arith.constant 1.000000e+00 : f32
    %51 = vector.broadcast %cst_20 : f32 to vector<64x8xf32>
    %52 = arith.addf %51, %50 : vector<64x8xf32>
    %53 = arith.divf %51, %52 : vector<64x8xf32>
    %54 = arith.mulf %53, %31 : vector<64x8xf32>
    %55 = math.tanh %34 : vector<64x8xf32>
    %56 = arith.mulf %44, %55 : vector<64x8xf32>
    %57 = arith.addf %54, %56 : vector<64x8xf32>
    %c0_21 = arith.constant 0 : index
    %c0_22 = arith.constant 0 : index
    %c0_23 = arith.constant 0 : index
    %58 = vector.load %arg7[%c0_21, %c0_22, %c0_23] : memref<1x64x8xf32, #tpu.memory_space<vmem>>, vector<1x64x8xf32>
    %59 = vector.shape_cast %58 : vector<1x64x8xf32> to vector<64x8xf32>
    %60 = arith.mulf %59, %57 : vector<64x8xf32>
    %61 = arith.addf %35, %60 : vector<64x8xf32>
    %62 = arith.negf %61 : vector<64x8xf32>
    %63 = math.exp %62 : vector<64x8xf32>
    %cst_24 = arith.constant 1.000000e+00 : f32
    %64 = vector.broadcast %cst_24 : f32 to vector<64x8xf32>
    %65 = arith.addf %64, %63 : vector<64x8xf32>
    %66 = arith.divf %64, %65 : vector<64x8xf32>
    %67 = math.tanh %57 : vector<64x8xf32>
    %68 = arith.mulf %66, %67 : vector<64x8xf32>
    %c0_25 = arith.constant 0 : index
    %c0_26 = arith.constant 0 : index
    %c0_27 = arith.constant 0 : index
    %c0_28 = arith.constant 0 : index
    %c0_29 = arith.constant 0 : index
    %69 = vector.load %arg8[%c0_25, %c0_26, %c0_27, %c0_28, %c0_29] : memref<1x1x1x64x8xf32, #tpu.memory_space<vmem>>, vector<1x1x1x64x8xf32>
    %70 = vector.shape_cast %69 : vector<1x1x1x64x8xf32> to vector<64x8xf32>
    %71 = vector.shape_cast %68 : vector<64x8xf32> to vector<1x1x1x64x8xf32>
    tpu.vector_store %arg8[%c0_25, %c0_26, %c0_27, %c0_28, %c0_29], %71 {strides = array<i32>} : memref<1x1x1x64x8xf32, #tpu.memory_space<vmem>>, vector<1x1x1x64x8xf32>,
    %c0_30 = arith.constant 0 : index
    %c0_31 = arith.constant 0 : index
    %72 = vector.load %arg12[%c0_30, %c0_31] : memref<64x8xf32, #tpu.memory_space<vmem>>, vector<64x8xf32>
    tpu.vector_store %arg12[%c0_30, %c0_31], %57 {strides = array<i32>} : memref<64x8xf32, #tpu.memory_space<vmem>>, vector<64x8xf32>,
    %73 = vector.shape_cast %68 : vector<64x8xf32> to vector<8x8x8xf32>
    %c1 = arith.constant 1 : index
    %c1_32 = arith.constant 1 : index
    %c0_33 = arith.constant 0 : index
    %74 = vector.load %arg11[%c1, %c1_32, %c0_33] : memref<10x10x8xf32, #tpu.memory_space<vmem>>, vector<8x8x8xf32>
    tpu.vector_store %arg11[%c1, %c1_32, %c0_33], %73 {strides = array<i32>} : memref<10x10x8xf32, #tpu.memory_space<vmem>>, vector<8x8x8xf32>,
    %c3_i32 = arith.constant 3 : i32
    %75 = arith.cmpi eq, %arg2, %c3_i32 : i32
    %76 = arith.extui %75 : i1 to i32
    %c0_i32_34 = arith.constant 0 : i32
    %77 = arith.cmpi ne, %76, %c0_i32_34 : i32
    scf.if %77 {
      %c0_35 = arith.constant 0 : index
      %c0_36 = arith.constant 0 : index
      %c0_37 = arith.constant 0 : index
      %c0_38 = arith.constant 0 : index
      %78 = vector.load %arg9[%c0_35, %c0_36, %c0_37, %c0_38] : memref<1x1x64x8xf32, #tpu.memory_space<vmem>>, vector<1x1x64x8xf32>
      %79 = vector.shape_cast %78 : vector<1x1x64x8xf32> to vector<64x8xf32>
      %80 = vector.shape_cast %68 : vector<64x8xf32> to vector<1x1x64x8xf32>
      tpu.vector_store %arg9[%c0_35, %c0_36, %c0_37, %c0_38], %80 {strides = array<i32>} : memref<1x1x64x8xf32, #tpu.memory_space<vmem>>, vector<1x1x64x8xf32>,
      %c0_39 = arith.constant 0 : index
      %c0_40 = arith.constant 0 : index
      %c0_41 = arith.constant 0 : index
      %c0_42 = arith.constant 0 : index
      %81 = vector.load %arg10[%c0_39, %c0_40, %c0_41, %c0_42] : memref<1x1x64x8xf32, #tpu.memory_space<vmem>>, vector<1x1x64x8xf32>
      %82 = vector.shape_cast %81 : vector<1x1x64x8xf32> to vector<64x8xf32>
      %83 = vector.shape_cast %57 : vector<64x8xf32> to vector<1x1x64x8xf32>
      tpu.vector_store %arg10[%c0_39, %c0_40, %c0_41, %c0_42], %83 {strides = array<i32>} : memref<1x1x64x8xf32, #tpu.memory_space<vmem>>, vector<1x1x64x8xf32>,
    } else {
    }
    return
  }
  func.func @transform_0(%arg0: i32, %arg1: i32, %arg2: i32) -> (i32, i32, i32, i32, i32) {
    %c3_i32 = arith.constant 3 : i32
    %0 = arith.muli %arg0, %c3_i32 : i32
    %c2_i32 = arith.constant 2 : i32
    %1 = arith.muli %c2_i32, %arg0 : i32
    %c1_i32 = arith.constant 1 : i32
    %2 = arith.subi %c1_i32, %1 : i32
    %3 = arith.muli %2, %arg2 : i32
    %4 = arith.addi %0, %3 : i32
    %c0_i32 = arith.constant 0 : i32
    %c0_i32_0 = arith.constant 0 : i32
    %c0_i32_1 = arith.constant 0 : i32
    return %arg0, %arg1, %4, %c0_i32, %c0_i32_0 : i32, i32, i32, i32, i32
  }
  func.func @transform_1(%arg0: i32, %arg1: i32, %arg2: i32) -> (i32, i32, i32) {
    %c0_i32 = arith.constant 0 : i32
    %c0_i32_0 = arith.constant 0 : i32
    %c0_i32_1 = arith.constant 0 : i32
    return %arg0, %c0_i32, %c0_i32_0 : i32, i32, i32
  }
  func.func @transform_2(%arg0: i32, %arg1: i32, %arg2: i32) -> (i32, i32, i32) {
    %c0_i32 = arith.constant 0 : i32
    %c0_i32_0 = arith.constant 0 : i32
    %c0_i32_1 = arith.constant 0 : i32
    return %arg0, %c0_i32, %c0_i32_0 : i32, i32, i32
  }
  func.func @transform_3(%arg0: i32, %arg1: i32, %arg2: i32) -> (i32, i32, i32) {
    %c0_i32 = arith.constant 0 : i32
    %c0_i32_0 = arith.constant 0 : i32
    %c0_i32_1 = arith.constant 0 : i32
    return %arg0, %c0_i32, %c0_i32_0 : i32, i32, i32
  }
  func.func @transform_4(%arg0: i32, %arg1: i32, %arg2: i32) -> (i32, i32, i32) {
    %c0_i32 = arith.constant 0 : i32
    %c0_i32_0 = arith.constant 0 : i32
    %c0_i32_1 = arith.constant 0 : i32
    return %arg0, %c0_i32, %c0_i32_0 : i32, i32, i32
  }
  func.func @transform_5(%arg0: i32, %arg1: i32, %arg2: i32) -> (i32, i32, i32, i32, i32) {
    %c3_i32 = arith.constant 3 : i32
    %0 = arith.muli %arg0, %c3_i32 : i32
    %c2_i32 = arith.constant 2 : i32
    %1 = arith.muli %c2_i32, %arg0 : i32
    %c1_i32 = arith.constant 1 : i32
    %2 = arith.subi %c1_i32, %1 : i32
    %3 = arith.muli %2, %arg2 : i32
    %4 = arith.addi %0, %3 : i32
    %c0_i32 = arith.constant 0 : i32
    %c0_i32_0 = arith.constant 0 : i32
    %c0_i32_1 = arith.constant 0 : i32
    return %arg0, %arg1, %4, %c0_i32, %c0_i32_0 : i32, i32, i32, i32, i32
  }
  func.func @transform_6(%arg0: i32, %arg1: i32, %arg2: i32) -> (i32, i32, i32, i32) {
    %c0_i32 = arith.constant 0 : i32
    %c0_i32_0 = arith.constant 0 : i32
    %c0_i32_1 = arith.constant 0 : i32
    return %arg0, %arg1, %c0_i32, %c0_i32_0 : i32, i32, i32, i32
  }
  func.func @transform_7(%arg0: i32, %arg1: i32, %arg2: i32) -> (i32, i32, i32, i32) {
    %c0_i32 = arith.constant 0 : i32
    %c0_i32_0 = arith.constant 0 : i32
    %c0_i32_1 = arith.constant 0 : i32
    return %arg0, %arg1, %c0_i32, %c0_i32_0 : i32, i32, i32, i32
  }
}

module attributes {stable_mosaic.version = 11 : i64} {
  func.func @_linear_kernel(%arg0: i32, %arg1: i32, %arg2: memref<1x128x16xf32, #tpu.memory_space<vmem>>, %arg3: memref<1x16x8xbf16, #tpu.memory_space<vmem>>, %arg4: memref<1x1x8xf32, #tpu.memory_space<vmem>>, %arg5: memref<1x128x8xf32, #tpu.memory_space<vmem>>) attributes {dimension_semantics = [#tpu.dimension_semantics<parallel>, #tpu.dimension_semantics<parallel>], iteration_bounds = array<i64: 2, 1>, scalar_prefetch = 0 : i64, scratch_operands = 0 : i64, tpu.core_type = #tpu.core_type<tc>, window_params = [{transform_indices = @transform_0, window_bounds = array<i64: 1, 128, 16>}, {transform_indices = @transform_1, window_bounds = array<i64: 1, 16, 8>}, {transform_indices = @transform_2, window_bounds = array<i64: 1, 1, 8>}, {transform_indices = @transform_3, window_bounds = array<i64: 1, 128, 8>}]} {
    %c0 = arith.constant 0 : index
    %c0_0 = arith.constant 0 : index
    %c0_1 = arith.constant 0 : index
    %0 = vector.load %arg2[%c0, %c0_0, %c0_1] : memref<1x128x16xf32, #tpu.memory_space<vmem>>, vector<1x128x16xf32>
    %1 = vector.shape_cast %0 : vector<1x128x16xf32> to vector<128x16xf32>
    %2 = arith.truncf %1 : vector<128x16xf32> to vector<128x16xbf16>
    %c0_2 = arith.constant 0 : index
    %c0_3 = arith.constant 0 : index
    %c0_4 = arith.constant 0 : index
    %3 = vector.load %arg3[%c0_2, %c0_3, %c0_4] : memref<1x16x8xbf16, #tpu.memory_space<vmem>>, vector<1x16x8xbf16>
    %4 = vector.shape_cast %3 : vector<1x16x8xbf16> to vector<16x8xbf16>
    %cst = arith.constant dense<0.000000e+00> : vector<128x8xf32>
    %5 = tpu.matmul %2, %4, %cst {dimension_numbers = #tpu.dot_dimension_numbers<[1], [0], [0], [1], [0, 0, 1, 1], [], []>} : vector<128x16xbf16>, vector<16x8xbf16>, vector<128x8xf32> -> vector<128x8xf32>
    %c0_5 = arith.constant 0 : index
    %c0_6 = arith.constant 0 : index
    %c0_7 = arith.constant 0 : index
    %6 = vector.load %arg4[%c0_5, %c0_6, %c0_7] : memref<1x1x8xf32, #tpu.memory_space<vmem>>, vector<1x1x8xf32>
    %7 = vector.shape_cast %6 : vector<1x1x8xf32> to vector<1x8xf32>
    %8 = vector.broadcast %7 : vector<1x8xf32> to vector<128x8xf32>
    %9 = arith.addf %5, %8 : vector<128x8xf32>
    %c0_8 = arith.constant 0 : index
    %c0_9 = arith.constant 0 : index
    %c0_10 = arith.constant 0 : index
    %10 = vector.load %arg5[%c0_8, %c0_9, %c0_10] : memref<1x128x8xf32, #tpu.memory_space<vmem>>, vector<1x128x8xf32>
    %11 = vector.shape_cast %10 : vector<1x128x8xf32> to vector<128x8xf32>
    %12 = vector.shape_cast %9 : vector<128x8xf32> to vector<1x128x8xf32>
    tpu.vector_store %arg5[%c0_8, %c0_9, %c0_10], %12 {strides = array<i32>} : memref<1x128x8xf32, #tpu.memory_space<vmem>>, vector<1x128x8xf32>,
    return
  }
  func.func @transform_0(%arg0: i32, %arg1: i32) -> (i32, i32, i32) {
    %c0_i32 = arith.constant 0 : i32
    %c0_i32_0 = arith.constant 0 : i32
    return %arg0, %arg1, %c0_i32 : i32, i32, i32
  }
  func.func @transform_1(%arg0: i32, %arg1: i32) -> (i32, i32, i32) {
    %c0_i32 = arith.constant 0 : i32
    %c0_i32_0 = arith.constant 0 : i32
    %c0_i32_1 = arith.constant 0 : i32
    return %arg0, %c0_i32, %c0_i32_0 : i32, i32, i32
  }
  func.func @transform_2(%arg0: i32, %arg1: i32) -> (i32, i32, i32) {
    %c0_i32 = arith.constant 0 : i32
    %c0_i32_0 = arith.constant 0 : i32
    %c0_i32_1 = arith.constant 0 : i32
    return %arg0, %c0_i32, %c0_i32_0 : i32, i32, i32
  }
  func.func @transform_3(%arg0: i32, %arg1: i32) -> (i32, i32, i32) {
    %c0_i32 = arith.constant 0 : i32
    %c0_i32_0 = arith.constant 0 : i32
    return %arg0, %arg1, %c0_i32 : i32, i32, i32
  }
}

</mosaic_0001>

<llo_original>
// kernel: encoder_forward.5
$region0: #{encoder_forward.5}
  #allocation0 [shape = 'u32[]', space=smem, size = 0x4, offset = 0x4, fixed_abs, tag = 'smem constant byte address 0x4 - core index']
  #allocation1 [shape = 'u32[144,128]{1,0:T(1,128)}', space=vmem, size = 0x12000, scoped, tag = 'internal scratch']
  %s0 = inlined_call_operand.vmem [shape: f32[2,128,16], index: 0, kind: input, shape index: {}]
  %s1 = inlined_call_operand.vmem [shape: bf16[2,16,8], index: 1, kind: input, shape index: {}]
  %s2 = inlined_call_operand.vmem [shape: f32[2,1,8], index: 2, kind: input, shape index: {}]
  %s3 = inlined_call_operand.vmem [shape: f32[2,128,8], index: 3, kind: output, shape index: {}]
  %s4 = sld [smem:[#allocation0]]
  $region45: #{encoder_forward.5} parent=0
    _
  %s6 = ssub.s32 1, %s4
  %s7 = scalar_select 0, %s6, %s4
  loop: start=0, step=1, limit=4
  $region2: #{encoder_forward.5} parent=0 // loop_pre_header
    _
  $region3: #{encoder_forward.5} parent=0 // loop_header
    %s9 = sphi 0, %s13
    %p10 = scmp.ge.s32.totalorder %s9, 4
    %s16 = sphi 0, %s28
    %s17 = sphi 0, %s24
    %s18 = sphi 0, %s16
    %s19 = sphi 0, %s17
    %s20 = sphi 0, %s18
    %s21 = sphi 0, %s19
    %s33 = sphi 0, %s35
    %s36 = sphi 0, %s33
    %s37 = sphi 0, %s36
    %s53 = sphi 0, %s37
    %s59 = sphi 0, %s61
    %s62 = sphi 0, %s59
    %s63 = sphi 0, %s62
    %s79 = sphi 0, %s63
    %s85 = sphi 0, %s87
    %s88 = sphi 0, %s85
    %s89 = sphi 0, %s88
    %s105 = sphi 0, %s89
    %s113 = sphi 0, %s115
    %s116 = sphi 0, %s113
    %s117 = sphi 0, %s116
    %s133 = sphi 0, %s117
  $region4: #{encoder_forward.5} parent=0 // loop_header_branch
    %12 = sbr.rel (%p10) target = $region8
  $region5: #{encoder_forward.5} parent=0 // loop_body
    %s14 = ssub.s32 %s9, 1
    %s15 = ssub.s32 %s9, 2
    %s22 = sadd.s32 1, %s17
    %p23 = scmp.ge.s32.totalorder %s22, 1
    %s24 = scalar_select %p23, 0, %s22
    %s25 = sadd.s32 1, %s16
    %s26 = scalar_select %p23, %s25, %s16
    %p27 = scmp.ge.s32.totalorder %s26, 2
    %s28 = scalar_select %p27, 0, %s26
    %s29 = ssub.s32 %s16, %s28
    %s30 = ssub.s32 %s17, %s24
    %s31 = sor.u32 %s29, %s30
    %p32 = scmp.eq.s32.totalorder %s31, 0
    %s34 = sadd.s32 %s33, 1
    %s35 = scalar_select %p32, %s33, %s34
    %p38 = pneg %p32
    %p39 = scmp.eq.s32.totalorder %s9, 1
    %p40 = por %p38, %p39
    %p41 = scmp.ne.s32.totalorder %s33, %s36
    %p42 = scmp.eq.s32.totalorder %s9, 0
    %p43 = por %p41, %p42
    %p44 = scmp.ne.s32.totalorder %s33, %s36
    %p45 = scmp.eq.s32.totalorder %s14, 1
    %p46 = por %p44, %p45
    %p47 = scmp.ne.s32.totalorder %s36, %s37
    %p48 = scmp.eq.s32.totalorder %s14, 0
    %p49 = por %p47, %p48
    %p50 = scmp.ne.s32.totalorder %s36, %s37
    %p51 = scmp.eq.s32.totalorder %s15, 1
    %p52 = por %p50, %p51
    %p54 = scmp.ne.s32.totalorder %s37, %s53
    %p55 = scmp.eq.s32.totalorder %s15, 0
    %p56 = por %p54, %p55
    %s57 = ssub.s32 %s16, %s28
    %p58 = scmp.eq.s32.totalorder %s57, 0
    %s60 = sadd.s32 %s59, 1
    %s61 = scalar_select %p58, %s59, %s60
    %p64 = pneg %p58
    %p65 = scmp.eq.s32.totalorder %s9, 1
    %p66 = por %p64, %p65
    %p67 = scmp.ne.s32.totalorder %s59, %s62
    %p68 = scmp.eq.s32.totalorder %s9, 0
    %p69 = por %p67, %p68
    %p70 = scmp.ne.s32.totalorder %s59, %s62
    %p71 = scmp.eq.s32.totalorder %s14, 1
    %p72 = por %p70, %p71
    %p73 = scmp.ne.s32.totalorder %s62, %s63
    %p74 = scmp.eq.s32.totalorder %s14, 0
    %p75 = por %p73, %p74
    %p76 = scmp.ne.s32.totalorder %s62, %s63
    %p77 = scmp.eq.s32.totalorder %s15, 1
    %p78 = por %p76, %p77
    %p80 = scmp.ne.s32.totalorder %s63, %s79
    %p81 = scmp.eq.s32.totalorder %s15, 0
    %p82 = por %p80, %p81
    %s83 = ssub.s32 %s16, %s28
    %p84 = scmp.eq.s32.totalorder %s83, 0
    %s86 = sadd.s32 %s85, 1
    %s87 = scalar_select %p84, %s85, %s86
    %p90 = pneg %p84
    %p91 = scmp.eq.s32.totalorder %s9, 1
    %p92 = por %p90, %p91
    %p93 = scmp.ne.s32.totalorder %s85, %s88
    %p94 = scmp.eq.s32.totalorder %s9, 0
    %p95 = por %p93, %p94
    %p96 = scmp.ne.s32.totalorder %s85, %s88
    %p97 = scmp.eq.s32.totalorder %s14, 1
    %p98 = por %p96, %p97
    %p99 = scmp.ne.s32.totalorder %s88, %s89
    %p100 = scmp.eq.s32.totalorder %s14, 0
    %p101 = por %p99, %p100
    %p102 = scmp.ne.s32.totalorder %s88, %s89
    %p103 = scmp.eq.s32.totalorder %s15, 1
    %p104 = por %p102, %p103
    %p106 = scmp.ne.s32.totalorder %s89, %s105
    %p107 = scmp.eq.s32.totalorder %s15, 0
    %p108 = por %p106, %p107
    %s109 = ssub.s32 %s16, %s28
    %s110 = ssub.s32 %s17, %s24
    %s111 = sor.u32 %s109, %s110
    %p112 = scmp.eq.s32.totalorder %s111, 0
    %s114 = sadd.s32 %s113, 1
    %s115 = scalar_select %p112, %s113, %s114
    %p118 = pneg %p112
    %p119 = scmp.eq.s32.totalorder %s9, 1
    %p120 = por %p118, %p119
    %p121 = scmp.ne.s32.totalorder %s113, %s116
    %p122 = scmp.eq.s32.totalorder %s9, 0
    %p123 = por %p121, %p122
    %p124 = scmp.ne.s32.totalorder %s113, %s116
    %p125 = scmp.eq.s32.totalorder %s14, 1
    %p126 = por %p124, %p125
    %p127 = scmp.ne.s32.totalorder %s116, %s117
    %p128 = scmp.eq.s32.totalorder %s14, 0
    %p129 = por %p127, %p128
    %p130 = scmp.ne.s32.totalorder %s116, %s117
    %p131 = scmp.eq.s32.totalorder %s15, 1
    %p132 = por %p130, %p131
    %p134 = scmp.ne.s32.totalorder %s117, %s133
    %p135 = scmp.eq.s32.totalorder %s15, 0
    %p136 = por %p134, %p135
    %p137 = scmp.le.s32.totalorder 1, %s9
    %p138 = scmp.lt.s32.totalorder %s9, 3
    %p139 = pnand %p137, %p138
    %p140 = pneg %p139
    // Predicated region
    $region9: #{encoder_forward.5} parent=5 // pred_check
      _
    $region10: #{encoder_forward.5} parent=5 // pred_check_branch
      %142 = sbr.rel (%p139) target = $region12
    $region11: #{encoder_forward.5} parent=5 // pred_region
      %s143 = ssub.s32 %s9, 1
    $region12: #{encoder_forward.5} parent=5 // pred_fallthru
      _
    %p144 = scmp.lt.s32.totalorder %s9, 2
    // Predicated region
    $region13: #{encoder_forward.5} parent=5 // pred_check
      %p145 = pneg %p144
    $region14: #{encoder_forward.5} parent=5 // pred_check_branch
      %147 = sbr.rel (%p145) target = $region16
    $region15: #{encoder_forward.5} parent=5 // pred_region
      // Predicated region
      $region17: #{encoder_forward.5} parent=15 // pred_check
        %p148 = pneg %p43
      $region18: #{encoder_forward.5} parent=15 // pred_check_branch
        %150 = sbr.rel (%p148) target = $region20
      $region19: #{encoder_forward.5} parent=15 // pred_region
        %s151 = smul.u32 16, %s17
        %p152 = scmp.lt.s32.totalorder %s16, 1
        %s153 = scalar_select %p152, %s16, 1
        %p154 = scmp.lt.s32.totalorder %s151, 15
        %s155 = scalar_select %p154, %s151, 15
        %s156 = smul.addr %s153, 16
        %s157 = sadd.s32 %s155, %s156
        %s158 = smul.addr %s157, 8
        %s159 = scalar_lea.vmem %s0, %s158
        %s160 = smul.u32 16, %s17
      $region20: #{encoder_forward.5} parent=15 // pred_fallthru
        _
      // Predicated region
      $region21: #{encoder_forward.5} parent=15 // pred_check
        %p161 = pneg %p69
      $region22: #{encoder_forward.5} parent=15 // pred_check_branch
        %163 = sbr.rel (%p161) target = $region24
      $region23: #{encoder_forward.5} parent=15 // pred_region
        %p164 = scmp.lt.s32.totalorder %s16, 1
        %s165 = scalar_select %p164, %s16, 1
        %s166 = smul.addr %s165, 2
        %s167 = smul.addr %s166, 4
        %s168 = scalar_lea.vmem %s1, %s167
      $region24: #{encoder_forward.5} parent=15 // pred_fallthru
        _
      // Predicated region
      $region25: #{encoder_forward.5} parent=15 // pred_check
        %p169 = pneg %p95
      $region26: #{encoder_forward.5} parent=15 // pred_check_branch
        %171 = sbr.rel (%p169) target = $region28
      $region27: #{encoder_forward.5} parent=15 // pred_region
        %p172 = scmp.lt.s32.totalorder %s16, 1
        %s173 = scalar_select %p172, %s16, 1
        %s174 = scalar_lea.vmem %s2, %s173
      $region28: #{encoder_forward.5} parent=15 // pred_fallthru
        _
    $region16: #{encoder_forward.5} parent=5 // pred_fallthru
      _
    %p175 = scmp.le.s32.totalorder 1, %s9
    %p176 = scmp.lt.s32.totalorder %s9, 3
    %p177 = pnand %p175, %p176
    %p178 = pneg %p177
    // Predicated region
    $region29: #{encoder_forward.5} parent=5 // pred_check
      _
    $region30: #{encoder_forward.5} parent=5 // pred_check_branch
      %180 = sbr.rel (%p177) target = $region32
    $region31: #{encoder_forward.5} parent=5 // pred_region
      %s181 = ssub.s32 %s9, 1
      %s182 = smul.u32 16, %s19
      %p183 = scmp.lt.s32.totalorder %s18, 1
      %s184 = scalar_select %p183, %s18, 1
      %p185 = scmp.lt.s32.totalorder %s182, 15
      %s186 = scalar_select %p185, %s182, 15
      %s187 = smul.addr %s184, 16
      %s188 = sadd.s32 %s186, %s187
      %s189 = smul.addr %s188, 8
      %s190 = scalar_lea.vmem %s0, %s189
      %p191 = pneg %p49
      %p192 = pneg %p46
      %p193 = scmp.lt.s32.totalorder %s18, 1
      %s194 = scalar_select %p193, %s18, 1
      %s195 = smul.addr %s194, 2
      %s196 = smul.addr %s195, 4
      %s197 = scalar_lea.vmem %s1, %s196
      %p198 = pneg %p75
      %p199 = pneg %p72
      %p200 = scmp.lt.s32.totalorder %s18, 1
      %s201 = scalar_select %p200, %s18, 1
      %s202 = scalar_lea.vmem %s2, %s201
      %p203 = pneg %p101
      %p204 = pneg %p98
      %p205 = pneg %p129
      %p206 = pneg %p126
      %s207 = smul.u32 16, %s19
      %p208 = scmp.lt.s32.totalorder %s18, 1
      %s209 = scalar_select %p208, %s18, 1
      %p210 = scmp.lt.s32.totalorder %s207, 15
      %s211 = scalar_select %p210, %s207, 15
      %s212 = smul.addr %s209, 16
      %s213 = sadd.s32 %s211, %s212
      %s214 = smul.addr %s213, 8
      %s215 = scalar_lea.vmem %s3, %s214
      %s216 = smul.u32 16, %s19
      %p217 = scmp.lt.s32.totalorder %s18, 1
      %s218 = scalar_select %p217, %s18, 1
      %p219 = scmp.lt.s32.totalorder %s216, 15
      %s220 = scalar_select %p219, %s216, 15
      %s221 = smul.addr %s218, 16
      %s222 = sadd.s32 %s220, %s221
      %s223 = smul.addr %s222, 8
      %s224 = scalar_lea.vmem %s0, %s223
      %s225 = smul.u32 16, %s19
      %p226 = scmp.lt.s32.totalorder %s18, 1
      %s227 = scalar_select %p226, %s18, 1
      %s228 = smul.addr %s227, 2
      %s229 = smul.addr %s228, 4
      %s230 = scalar_lea.vmem %s1, %s229
      %p231 = scmp.lt.s32.totalorder %s18, 1
      %s232 = scalar_select %p231, %s18, 1
      %s233 = scalar_lea.vmem %s2, %s232
      %s234 = smul.u32 16, %s19
      %p235 = scmp.lt.s32.totalorder %s18, 1
      %s236 = scalar_select %p235, %s18, 1
      %p237 = scmp.lt.s32.totalorder %s234, 15
      %s238 = scalar_select %p237, %s234, 15
      %s239 = smul.addr %s236, 16
      %s240 = sadd.s32 %s238, %s239
      %s241 = smul.addr %s240, 8
      %s242 = scalar_lea.vmem %s3, %s241
      %s243 = smul.u32 16, %s19
      %v245 = vld [vmem:[%s224] sm:$0xff]
      %v246 = vld [vmem:[%s224 + $0x8] sm:$0xff]
      %v247 = vld [vmem:[%s224 + $0x10] sm:$0xff]
      %v248 = vld [vmem:[%s224 + $0x18] sm:$0xff]
      %v249 = vld [vmem:[%s224 + $0x20] sm:$0xff]
      %v250 = vld [vmem:[%s224 + $0x28] sm:$0xff]
      %v251 = vld [vmem:[%s224 + $0x30] sm:$0xff]
      %v252 = vld [vmem:[%s224 + $0x38] sm:$0xff]
      %v253 = vld [vmem:[%s224 + $0x40] sm:$0xff]
      %v254 = vld [vmem:[%s224 + $0x48] sm:$0xff]
      %v255 = vld [vmem:[%s224 + $0x50] sm:$0xff]
      %v256 = vld [vmem:[%s224 + $0x58] sm:$0xff]
      %v257 = vld [vmem:[%s224 + $0x60] sm:$0xff]
      %v258 = vld [vmem:[%s224 + $0x68] sm:$0xff]
      %v259 = vld [vmem:[%s224 + $0x70] sm:$0xff]
      %v260 = vld [vmem:[%s224 + $0x78] sm:$0xff]
      %v261 = vpack.c.bf16 %v246, %v245
      %v262 = vpack.c.bf16 %v248, %v247
      %v263 = vpack.c.bf16 %v250, %v249
      %v264 = vpack.c.bf16 %v252, %v251
      %v265 = vpack.c.bf16 %v254, %v253
      %v266 = vpack.c.bf16 %v256, %v255
      %v267 = vpack.c.bf16 %v258, %v257
      %v268 = vpack.c.bf16 %v260, %v259
      %v269 = vld [vmem:[%s230] sm:$0xf]
      %v270 = vld [vmem:[%s230 + $0x4] sm:$0xf]
      %v271 = vld [vmem:[%s233] sm:$0x1]
      %v273 = vlaneseq
      %v274 = vshrl.u32 %v273, 7
      %v275 = vsub.s32 0, %v274
      %v276 = vrot.slane %v271, %v275
      %v280 = vunpack.c.l.b16 %v269
      %v281 = vunpack.c.l.b16 %v270
      %v282 = vpack.c.b16 %v281, %v280
      %vm284 = vcmask 130048
      %v286 = vsel %vm284, %v261, 0
      %v289 = vsel %vm284, %v262, 0
      %v292 = vsel %vm284, %v263, 0
      %v295 = vsel %vm284, %v264, 0
      %v298 = vsel %vm284, %v265, 0
      %v301 = vsel %vm284, %v266, 0
      %v304 = vsel %vm284, %v267, 0
      %v307 = vsel %vm284, %v268, 0
      %309 = vmatprep.subr.bf16.mxu0 0
      %310 = vmatpush1.bf16.msra.mxu0 %v282
      %311 = vmatprep.subr.bf16.mxu0 0
      %312 = vmatpush1.bf16.msra.mxu0 0
      %313 = vmatprep.subr.bf16.mxu0 0
      %314 = vmatpush1.bf16.msra.mxu0 0
      %315 = vmatprep.subr.bf16.mxu0 0
      %316 = vmatpush1.bf16.msra.mxu0 0
      %317 = vmatprep.subr.bf16.mxu0 0
      %318 = vmatpush1.bf16.msra.mxu0 0
      %319 = vmatprep.subr.bf16.mxu0 0
      %320 = vmatpush1.bf16.msra.mxu0 0
      %321 = vmatprep.subr.bf16.mxu0 0
      %322 = vmatpush1.bf16.msra.mxu0 0
      %323 = vmatprep.subr.bf16.mxu0 0
      %324 = vmatpush1.bf16.msra.mxu0 0
      %325 = vmatprep.subr.bf16.mxu0 0
      %326 = vmatpush1.bf16.msra.mxu0 0
      %327 = vmatprep.subr.bf16.mxu0 0
      %328 = vmatpush1.bf16.msra.mxu0 0
      %329 = vmatprep.subr.bf16.mxu0 0
      %330 = vmatpush1.bf16.msra.mxu0 0
      %331 = vmatprep.subr.bf16.mxu0 0
      %332 = vmatpush1.bf16.msra.mxu0 0
      %333 = vmatprep.subr.bf16.mxu0 0
      %334 = vmatpush1.bf16.msra.mxu0 0
      %335 = vmatprep.subr.bf16.mxu0 0
      %336 = vmatpush1.bf16.msra.mxu0 0
      %337 = vmatprep.subr.bf16.mxu0 0
      %338 = vmatpush1.bf16.msra.mxu0 0
      %339 = vmatprep.subr.bf16.mxu0 0
      %340 = vmatpush1.bf16.msra.mxu0 0
      %341 = vmatprep.mubr.bf16.mxu0 0
      %342 = vmatmul.mubr.bf16.gmra.mrb[0].mxu0 %v286
      %v343 = vpop.f32.mrb[0].mxu0
      %v344 = vadd.f32 %v276, %v343
      %v345 = vpop.f32.mrb[0].mxu0
      %v346 = vpop.f32.mrb[0].mxu0
      %v347 = vadd.f32 %v276, %v346
      %v348 = vpop.f32.mrb[0].mxu0
      %349 = vmatprep.mubr.bf16.mxu0 0
      %350 = vmatmul.mubr.bf16.gmra.mrb[0].mxu0 %v289
      %v351 = vpop.f32.mrb[0].mxu0
      %v352 = vadd.f32 %v276, %v351
      %v353 = vpop.f32.mrb[0].mxu0
      %v354 = vpop.f32.mrb[0].mxu0
      %v355 = vadd.f32 %v276, %v354
      %v356 = vpop.f32.mrb[0].mxu0
      %357 = vmatprep.mubr.bf16.mxu0 0
      %358 = vmatmul.mubr.bf16.gmra.mrb[0].mxu0 %v292
      %v359 = vpop.f32.mrb[0].mxu0
      %v360 = vadd.f32 %v276, %v359
      %v361 = vpop.f32.mrb[0].mxu0
      %v362 = vpop.f32.mrb[0].mxu0
      %v363 = vadd.f32 %v276, %v362
      %v364 = vpop.f32.mrb[0].mxu0
      %365 = vmatprep.mubr.bf16.mxu0 0
      %366 = vmatmul.mubr.bf16.gmra.mrb[0].mxu0 %v295
      %v367 = vpop.f32.mrb[0].mxu0
      %v368 = vadd.f32 %v276, %v367
      %v369 = vpop.f32.mrb[0].mxu0
      %v370 = vpop.f32.mrb[0].mxu0
      %v371 = vadd.f32 %v276, %v370
      %v372 = vpop.f32.mrb[0].mxu0
      %373 = vmatprep.mubr.bf16.mxu0 0
      %374 = vmatmul.mubr.bf16.gmra.mrb[0].mxu0 %v298
      %v375 = vpop.f32.mrb[0].mxu0
      %v376 = vadd.f32 %v276, %v375
      %v377 = vpop.f32.mrb[0].mxu0
      %v378 = vpop.f32.mrb[0].mxu0
      %v379 = vadd.f32 %v276, %v378
      %v380 = vpop.f32.mrb[0].mxu0
      %381 = vmatprep.mubr.bf16.mxu0 0
      %382 = vmatmul.mubr.bf16.gmra.mrb[0].mxu0 %v301
      %v383 = vpop.f32.mrb[0].mxu0
      %v384 = vadd.f32 %v276, %v383
      %v385 = vpop.f32.mrb[0].mxu0
      %v386 = vpop.f32.mrb[0].mxu0
      %v387 = vadd.f32 %v276, %v386
      %v388 = vpop.f32.mrb[0].mxu0
      %389 = vmatprep.mubr.bf16.mxu0 0
      %390 = vmatmul.mubr.bf16.gmra.mrb[0].mxu0 %v304
      %v391 = vpop.f32.mrb[0].mxu0
      %v392 = vadd.f32 %v276, %v391
      %v393 = vpop.f32.mrb[0].mxu0
      %v394 = vpop.f32.mrb[0].mxu0
      %v395 = vadd.f32 %v276, %v394
      %v396 = vpop.f32.mrb[0].mxu0
      %397 = vmatprep.mubr.bf16.mxu0 0
      %398 = vmatmul.mubr.bf16.gmra.mrb[0].mxu0 %v307
      %v399 = vpop.f32.mrb[0].mxu0
      %v400 = vadd.f32 %v276, %v399
      %v401 = vpop.f32.mrb[0].mxu0
      %v402 = vpop.f32.mrb[0].mxu0
      %v403 = vadd.f32 %v276, %v402
      %v404 = vpop.f32.mrb[0].mxu0
      %405 = vdwg.mxu0
      %vm406 = vcmask 64512
      %407 = vst.msk [vmem:[%s242] sm:$0xff] %vm406, %v344
      %408 = vst.msk [vmem:[%s242 + $0x8] sm:$0xff] %vm406, %v347
      %409 = vst.msk [vmem:[%s242 + $0x10] sm:$0xff] %vm406, %v352
      %410 = vst.msk [vmem:[%s242 + $0x18] sm:$0xff] %vm406, %v355
      %411 = vst.msk [vmem:[%s242 + $0x20] sm:$0xff] %vm406, %v360
      %412 = vst.msk [vmem:[%s242 + $0x28] sm:$0xff] %vm406, %v363
      %413 = vst.msk [vmem:[%s242 + $0x30] sm:$0xff] %vm406, %v368
      %414 = vst.msk [vmem:[%s242 + $0x38] sm:$0xff] %vm406, %v371
      %415 = vst.msk [vmem:[%s242 + $0x40] sm:$0xff] %vm406, %v376
      %416 = vst.msk [vmem:[%s242 + $0x48] sm:$0xff] %vm406, %v379
      %417 = vst.msk [vmem:[%s242 + $0x50] sm:$0xff] %vm406, %v384
      %418 = vst.msk [vmem:[%s242 + $0x58] sm:$0xff] %vm406, %v387
      %419 = vst.msk [vmem:[%s242 + $0x60] sm:$0xff] %vm406, %v392
      %420 = vst.msk [vmem:[%s242 + $0x68] sm:$0xff] %vm406, %v395
      %421 = vst.msk [vmem:[%s242 + $0x70] sm:$0xff] %vm406, %v400
      %422 = vst.msk [vmem:[%s242 + $0x78] sm:$0xff] %vm406, %v403
      %s423 = smul.u32 16, %s19
      %p424 = scmp.lt.s32.totalorder %s18, 1
      %s425 = scalar_select %p424, %s18, 1
      %p426 = scmp.lt.s32.totalorder %s423, 15
      %s427 = scalar_select %p426, %s423, 15
      %s428 = smul.addr %s425, 16
      %s429 = sadd.s32 %s427, %s428
      %s430 = smul.addr %s429, 8
      %s431 = scalar_lea.vmem %s3, %s430
      // Predicated region
      $region33: #{encoder_forward.5} parent=31 // pred_check
        %p432 = pneg %p126
      $region34: #{encoder_forward.5} parent=31 // pred_check_branch
        %434 = sbr.rel (%p432) target = $region36
      $region35: #{encoder_forward.5} parent=31 // pred_region
        %s435 = smul.u32 16, %s19
      $region36: #{encoder_forward.5} parent=31 // pred_fallthru
        _
    $region32: #{encoder_forward.5} parent=5 // pred_fallthru
      _
    %p436 = scmp.le.s32.totalorder 2, %s9
    // Predicated region
    $region37: #{encoder_forward.5} parent=5 // pred_check
      %p437 = pneg %p436
    $region38: #{encoder_forward.5} parent=5 // pred_check_branch
      %439 = sbr.rel (%p437) target = $region40
    $region39: #{encoder_forward.5} parent=5 // pred_region
      %s440 = ssub.s32 %s9, 2
      // Predicated region
      $region41: #{encoder_forward.5} parent=39 // pred_check
        %p441 = pneg %p132
      $region42: #{encoder_forward.5} parent=39 // pred_check_branch
        %443 = sbr.rel (%p441) target = $region44
      $region43: #{encoder_forward.5} parent=39 // pred_region
        %s444 = smul.u32 16, %s21
        %p445 = scmp.lt.s32.totalorder %s20, 1
        %s446 = scalar_select %p445, %s20, 1
        %p447 = scmp.lt.s32.totalorder %s444, 15
        %s448 = scalar_select %p447, %s444, 15
        %s449 = smul.addr %s446, 16
        %s450 = sadd.s32 %s448, %s449
        %s451 = smul.addr %s450, 8
        %s452 = scalar_lea.vmem %s3, %s451
      $region44: #{encoder_forward.5} parent=39 // pred_fallthru
        _
    $region40: #{encoder_forward.5} parent=5 // pred_fallthru
      _
  $region6: #{encoder_forward.5} parent=0 // loop_footer
    %s13 = sadd.s32 1, %s9
  $region7: #{encoder_forward.5} parent=0 // loop_footer_branch
    %8 = sbr.rel target = $region3
  $region8: #{encoder_forward.5} parent=0 // loop_exit
    _

// kernel: encoder_forward.3
$region0: #{encoder_forward.3}
  #allocation0 [shape = 'u32[]', space=smem, size = 0x4, offset = 0x4, fixed_abs, tag = 'smem constant byte address 0x4 - core index']
  #allocation1 [shape = 'u32[144,128]{1,0:T(1,128)}', space=vmem, size = 0x12000, scoped, tag = 'internal scratch']
  %s0 = inlined_call_operand.vmem [shape: f32[512,36], index: 0, kind: input, shape index: {}]
  %s1 = inlined_call_operand.vmem [shape: bf16[36,64], index: 1, kind: input, shape index: {}]
  %s2 = inlined_call_operand.vmem [shape: f32[1,64], index: 2, kind: input, shape index: {}]
  %s3 = inlined_call_operand.vmem [shape: bf16[2,512,32], index: 3, kind: output, shape index: {}]
  %s4 = sld [smem:[#allocation0]]
  $region22: #{encoder_forward.3} parent=0
    _
  %s6 = ssub.s32 1, %s4
  %s7 = scalar_select 0, %s6, %s4
  // Predicated region
  $region2: #{encoder_forward.3} parent=0 // pred_check
    _
  $region3: #{encoder_forward.3} parent=0 // pred_check_branch
    %9 = sbr.rel (0) target = $region5
  $region4: #{encoder_forward.3} parent=0 // pred_region
    _
  $region5: #{encoder_forward.3} parent=0 // pred_fallthru
    _
  // Predicated region
  $region6: #{encoder_forward.3} parent=0 // pred_check
    _
  $region7: #{encoder_forward.3} parent=0 // pred_check_branch
    %11 = sbr.rel (0) target = $region9
  $region8: #{encoder_forward.3} parent=0 // pred_region
    _
  $region9: #{encoder_forward.3} parent=0 // pred_fallthru
    _
  // Predicated region
  $region10: #{encoder_forward.3} parent=0 // pred_check
    _
  $region11: #{encoder_forward.3} parent=0 // pred_check_branch
    %13 = sbr.rel (0) target = $region13
  $region12: #{encoder_forward.3} parent=0 // pred_region
    _
  $region13: #{encoder_forward.3} parent=0 // pred_fallthru
    _
  %v15 = vld [vmem:[%s0] sm:$0xff]
  %v16 = vld [vmem:[%s0 + $0x8] sm:$0xff]
  %v17 = vld [vmem:[%s0 + $0x10] sm:$0xff]
  %v18 = vld [vmem:[%s0 + $0x18] sm:$0xff]
  %v19 = vld [vmem:[%s0 + $0x20] sm:$0xff]
  %v20 = vld [vmem:[%s0 + $0x28] sm:$0xff]
  %v21 = vld [vmem:[%s0 + $0x30] sm:$0xff]
  %v22 = vld [vmem:[%s0 + $0x38] sm:$0xff]
  %v23 = vld [vmem:[%s0 + $0x40] sm:$0xff]
  %v24 = vld [vmem:[%s0 + $0x48] sm:$0xff]
  %v25 = vld [vmem:[%s0 + $0x50] sm:$0xff]
  %v26 = vld [vmem:[%s0 + $0x58] sm:$0xff]
  %v27 = vld [vmem:[%s0 + $0x60] sm:$0xff]
  %v28 = vld [vmem:[%s0 + $0x68] sm:$0xff]
  %v29 = vld [vmem:[%s0 + $0x70] sm:$0xff]
  %v30 = vld [vmem:[%s0 + $0x78] sm:$0xff]
  %v31 = vld [vmem:[%s0 + $0x80] sm:$0xff]
  %v32 = vld [vmem:[%s0 + $0x88] sm:$0xff]
  %v33 = vld [vmem:[%s0 + $0x90] sm:$0xff]
  %v34 = vld [vmem:[%s0 + $0x98] sm:$0xff]
  %v35 = vld [vmem:[%s0 + $0xa0] sm:$0xff]
  %v36 = vld [vmem:[%s0 + $0xa8] sm:$0xff]
  %v37 = vld [vmem:[%s0 + $0xb0] sm:$0xff]
  %v38 = vld [vmem:[%s0 + $0xb8] sm:$0xff]
  %v39 = vld [vmem:[%s0 + $0xc0] sm:$0xff]
  %v40 = vld [vmem:[%s0 + $0xc8] sm:$0xff]
  %v41 = vld [vmem:[%s0 + $0xd0] sm:$0xff]
  %v42 = vld [vmem:[%s0 + $0xd8] sm:$0xff]
  %v43 = vld [vmem:[%s0 + $0xe0] sm:$0xff]
  %v44 = vld [vmem:[%s0 + $0xe8] sm:$0xff]
  %v45 = vld [vmem:[%s0 + $0xf0] sm:$0xff]
  %v46 = vld [vmem:[%s0 + $0xf8] sm:$0xff]
  %v47 = vld [vmem:[%s0 + $0x100] sm:$0xff]
  %v48 = vld [vmem:[%s0 + $0x108] sm:$0xff]
  %v49 = vld [vmem:[%s0 + $0x110] sm:$0xff]
  %v50 = vld [vmem:[%s0 + $0x118] sm:$0xff]
  %v51 = vld [vmem:[%s0 + $0x120] sm:$0xff]
  %v52 = vld [vmem:[%s0 + $0x128] sm:$0xff]
  %v53 = vld [vmem:[%s0 + $0x130] sm:$0xff]
  %v54 = vld [vmem:[%s0 + $0x138] sm:$0xff]
  %v55 = vld [vmem:[%s0 + $0x140] sm:$0xff]
  %v56 = vld [vmem:[%s0 + $0x148] sm:$0xff]
  %v57 = vld [vmem:[%s0 + $0x150] sm:$0xff]
  %v58 = vld [vmem:[%s0 + $0x158] sm:$0xff]
  %v59 = vld [vmem:[%s0 + $0x160] sm:$0xff]
  %v60 = vld [vmem:[%s0 + $0x168] sm:$0xff]
  %v61 = vld [vmem:[%s0 + $0x170] sm:$0xff]
  %v62 = vld [vmem:[%s0 + $0x178] sm:$0xff]
  %v63 = vld [vmem:[%s0 + $0x180] sm:$0xff]
  %v64 = vld [vmem:[%s0 + $0x188] sm:$0xff]
  %v65 = vld [vmem:[%s0 + $0x190] sm:$0xff]
  %v66 = vld [vmem:[%s0 + $0x198] sm:$0xff]
  %v67 = vld [vmem:[%s0 + $0x1a0] sm:$0xff]
  %v68 = vld [vmem:[%s0 + $0x1a8] sm:$0xff]
  %v69 = vld [vmem:[%s0 + $0x1b0] sm:$0xff]
  %v70 = vld [vmem:[%s0 + $0x1b8] sm:$0xff]
  %v71 = vld [vmem:[%s0 + $0x1c0] sm:$0xff]
  %v72 = vld [vmem:[%s0 + $0x1c8] sm:$0xff]
  %v73 = vld [vmem:[%s0 + $0x1d0] sm:$0xff]
  %v74 = vld [vmem:[%s0 + $0x1d8] sm:$0xff]
  %v75 = vld [vmem:[%s0 + $0x1e0] sm:$0xff]
  %v76 = vld [vmem:[%s0 + $0x1e8] sm:$0xff]
  %v77 = vld [vmem:[%s0 + $0x1f0] sm:$0xff]
  %v78 = vld [vmem:[%s0 + $0x1f8] sm:$0xff]
  %v79 = vpack.c.bf16 %v16, %v15
  %v80 = vpack.c.bf16 %v18, %v17
  %v81 = vpack.c.bf16 %v20, %v19
  %v82 = vpack.c.bf16 %v22, %v21
  %v83 = vpack.c.bf16 %v24, %v23
  %v84 = vpack.c.bf16 %v26, %v25
  %v85 = vpack.c.bf16 %v28, %v27
  %v86 = vpack.c.bf16 %v30, %v29
  %v87 = vpack.c.bf16 %v32, %v31
  %v88 = vpack.c.bf16 %v34, %v33
  %v89 = vpack.c.bf16 %v36, %v35
  %v90 = vpack.c.bf16 %v38, %v37
  %v91 = vpack.c.bf16 %v40, %v39
  %v92 = vpack.c.bf16 %v42, %v41
  %v93 = vpack.c.bf16 %v44, %v43
  %v94 = vpack.c.bf16 %v46, %v45
  %v95 = vpack.c.bf16 %v48, %v47
  %v96 = vpack.c.bf16 %v50, %v49
  %v97 = vpack.c.bf16 %v52, %v51
  %v98 = vpack.c.bf16 %v54, %v53
  %v99 = vpack.c.bf16 %v56, %v55
  %v100 = vpack.c.bf16 %v58, %v57
  %v101 = vpack.c.bf16 %v60, %v59
  %v102 = vpack.c.bf16 %v62, %v61
  %v103 = vpack.c.bf16 %v64, %v63
  %v104 = vpack.c.bf16 %v66, %v65
  %v105 = vpack.c.bf16 %v68, %v67
  %v106 = vpack.c.bf16 %v70, %v69
  %v107 = vpack.c.bf16 %v72, %v71
  %v108 = vpack.c.bf16 %v74, %v73
  %v109 = vpack.c.bf16 %v76, %v75
  %v110 = vpack.c.bf16 %v78, %v77
  %v111 = vld [vmem:[%s1] sm:$0xf]
  %v112 = vld [vmem:[%s1 + $0x4] sm:$0xf]
  %v113 = vld [vmem:[%s1 + $0x8] sm:$0xf]
  %v114 = vld [vmem:[%s1 + $0xc] sm:$0xf]
  %v115 = vld [vmem:[%s1 + $0x10] sm:$0x3]
  %v116 = vld [vmem:[%s2] sm:$0x1]
  %v118 = vlaneseq
  %v119 = vshrl.u32 %v118, 7
  %v120 = vsub.s32 0, %v119
  %v121 = vrot.slane %v116, %v120
  %v128 = vunpack.c.l.b16 %v111
  %v129 = vunpack.c.l.b16 %v112
  %v130 = vunpack.c.l.b16 %v113
  %v131 = vunpack.c.l.b16 %v114
  %v132 = vunpack.c.l.b16 %v115
  %v133 = vpack.c.b16 %v129, %v128
  %v134 = vpack.c.b16 %v131, %v130
  %v135 = vpack.c.b16 %v132, %v132
  %vm138 = vcmask 293888
  %v140 = vsel %vm138, %v79, 0
  %v143 = vsel %vm138, %v80, 0
  %v146 = vsel %vm138, %v81, 0
  %v149 = vsel %vm138, %v82, 0
  %v152 = vsel %vm138, %v83, 0
  %v155 = vsel %vm138, %v84, 0
  %v158 = vsel %vm138, %v85, 0
  %v161 = vsel %vm138, %v86, 0
  %v164 = vsel %vm138, %v87, 0
  %v167 = vsel %vm138, %v88, 0
  %v170 = vsel %vm138, %v89, 0
  %v173 = vsel %vm138, %v90, 0
  %v176 = vsel %vm138, %v91, 0
  %v179 = vsel %vm138, %v92, 0
  %v182 = vsel %vm138, %v93, 0
  %v185 = vsel %vm138, %v94, 0
  %v188 = vsel %vm138, %v95, 0
  %v191 = vsel %vm138, %v96, 0
  %v194 = vsel %vm138, %v97, 0
  %v197 = vsel %vm138, %v98, 0
  %v200 = vsel %vm138, %v99, 0
  %v203 = vsel %vm138, %v100, 0
  %v206 = vsel %vm138, %v101, 0
  %v209 = vsel %vm138, %v102, 0
  %v212 = vsel %vm138, %v103, 0
  %v215 = vsel %vm138, %v104, 0
  %v218 = vsel %vm138, %v105, 0
  %v221 = vsel %vm138, %v106, 0
  %v224 = vsel %vm138, %v107, 0
  %v227 = vsel %vm138, %v108, 0
  %v230 = vsel %vm138, %v109, 0
  %v233 = vsel %vm138, %v110, 0
  %vm235 = vcmask 1041408
  %v237 = vsel %vm235, %v135, 0
  %239 = vmatprep.subr.bf16.mxu0 0
  %240 = vmatpush1.bf16.msra.mxu0 %v133
  %241 = vmatprep.subr.bf16.mxu0 0
  %242 = vmatpush1.bf16.msra.mxu0 %v134
  %243 = vmatprep.subr.bf16.mxu0 0
  %244 = vmatpush1.bf16.msra.mxu0 %v237
  %245 = vmatprep.subr.bf16.mxu0 0
  %246 = vmatpush1.bf16.msra.mxu0 0
  %247 = vmatprep.subr.bf16.mxu0 0
  %248 = vmatpush1.bf16.msra.mxu0 0
  %249 = vmatprep.subr.bf16.mxu0 0
  %250 = vmatpush1.bf16.msra.mxu0 0
  %251 = vmatprep.subr.bf16.mxu0 0
  %252 = vmatpush1.bf16.msra.mxu0 0
  %253 = vmatprep.subr.bf16.mxu0 0
  %254 = vmatpush1.bf16.msra.mxu0 0
  %255 = vmatprep.subr.bf16.mxu0 0
  %256 = vmatpush1.bf16.msra.mxu0 0
  %257 = vmatprep.subr.bf16.mxu0 0
  %258 = vmatpush1.bf16.msra.mxu0 0
  %259 = vmatprep.subr.bf16.mxu0 0
  %260 = vmatpush1.bf16.msra.mxu0 0
  %261 = vmatprep.subr.bf16.mxu0 0
  %262 = vmatpush1.bf16.msra.mxu0 0
  %263 = vmatprep.subr.bf16.mxu0 0
  %264 = vmatpush1.bf16.msra.mxu0 0
  %265 = vmatprep.subr.bf16.mxu0 0
  %266 = vmatpush1.bf16.msra.mxu0 0
  %267 = vmatprep.subr.bf16.mxu0 0
  %268 = vmatpush1.bf16.msra.mxu0 0
  %269 = vmatprep.subr.bf16.mxu0 0
  %270 = vmatpush1.bf16.msra.mxu0 0
  %271 = vmatprep.mubr.bf16.mxu0 0
  %272 = vmatmul.mubr.bf16.gmra.mrb[0].mxu0 %v140
  %v273 = vpop.f32.mrb[0].mxu0
  %v274 = vadd.f32 %v121, %v273
  %v275 = vpop.f32.mrb[0].mxu0
  %v276 = vpop.f32.mrb[0].mxu0
  %v277 = vadd.f32 %v121, %v276
  %v278 = vpop.f32.mrb[0].mxu0
  %279 = vmatprep.mubr.bf16.mxu0 0
  %280 = vmatmul.mubr.bf16.gmra.mrb[0].mxu0 %v143
  %v281 = vpop.f32.mrb[0].mxu0
  %v282 = vadd.f32 %v121, %v281
  %v283 = vpop.f32.mrb[0].mxu0
  %v284 = vpop.f32.mrb[0].mxu0
  %v285 = vadd.f32 %v121, %v284
  %v286 = vpop.f32.mrb[0].mxu0
  %287 = vmatprep.mubr.bf16.mxu0 0
  %288 = vmatmul.mubr.bf16.gmra.mrb[0].mxu0 %v146
  %v289 = vpop.f32.mrb[0].mxu0
  %v290 = vadd.f32 %v121, %v289
  %v291 = vpop.f32.mrb[0].mxu0
  %v292 = vpop.f32.mrb[0].mxu0
  %v293 = vadd.f32 %v121, %v292
  %v294 = vpop.f32.mrb[0].mxu0
  %295 = vmatprep.mubr.bf16.mxu0 0
  %296 = vmatmul.mubr.bf16.gmra.mrb[0].mxu0 %v149
  %v297 = vpop.f32.mrb[0].mxu0
  %v298 = vadd.f32 %v121, %v297
  %v299 = vpop.f32.mrb[0].mxu0
  %v300 = vpop.f32.mrb[0].mxu0
  %v301 = vadd.f32 %v121, %v300
  %v302 = vpop.f32.mrb[0].mxu0
  %303 = vmatprep.mubr.bf16.mxu0 0
  %304 = vmatmul.mubr.bf16.gmra.mrb[0].mxu0 %v152
  %v305 = vpop.f32.mrb[0].mxu0
  %v306 = vadd.f32 %v121, %v305
  %v307 = vpop.f32.mrb[0].mxu0
  %v308 = vpop.f32.mrb[0].mxu0
  %v309 = vadd.f32 %v121, %v308
  %v310 = vpop.f32.mrb[0].mxu0
  %311 = vmatprep.mubr.bf16.mxu0 0
  %312 = vmatmul.mubr.bf16.gmra.mrb[0].mxu0 %v155
  %v313 = vpop.f32.mrb[0].mxu0
  %v314 = vadd.f32 %v121, %v313
  %v315 = vpop.f32.mrb[0].mxu0
  %v316 = vpop.f32.mrb[0].mxu0
  %v317 = vadd.f32 %v121, %v316
  %v318 = vpop.f32.mrb[0].mxu0
  %319 = vmatprep.mubr.bf16.mxu0 0
  %320 = vmatmul.mubr.bf16.gmra.mrb[0].mxu0 %v158
  %v321 = vpop.f32.mrb[0].mxu0
  %v322 = vadd.f32 %v121, %v321
  %v323 = vpop.f32.mrb[0].mxu0
  %v324 = vpop.f32.mrb[0].mxu0
  %v325 = vadd.f32 %v121, %v324
  %v326 = vpop.f32.mrb[0].mxu0
  %327 = vmatprep.mubr.bf16.mxu0 0
  %328 = vmatmul.mubr.bf16.gmra.mrb[0].mxu0 %v161
  %v329 = vpop.f32.mrb[0].mxu0
  %v330 = vadd.f32 %v121, %v329
  %v331 = vpop.f32.mrb[0].mxu0
  %v332 = vpop.f32.mrb[0].mxu0
  %v333 = vadd.f32 %v121, %v332
  %v334 = vpop.f32.mrb[0].mxu0
  %335 = vmatprep.mubr.bf16.mxu0 0
  %336 = vmatmul.mubr.bf16.gmra.mrb[0].mxu0 %v164
  %v337 = vpop.f32.mrb[0].mxu0
  %v338 = vadd.f32 %v121, %v337
  %v339 = vpop.f32.mrb[0].mxu0
  %v340 = vpop.f32.mrb[0].mxu0
  %v341 = vadd.f32 %v121, %v340
  %v342 = vpop.f32.mrb[0].mxu0
  %343 = vmatprep.mubr.bf16.mxu0 0
  %344 = vmatmul.mubr.bf16.gmra.mrb[0].mxu0 %v167
  %v345 = vpop.f32.mrb[0].mxu0
  %v346 = vadd.f32 %v121, %v345
  %v347 = vpop.f32.mrb[0].mxu0
  %v348 = vpop.f32.mrb[0].mxu0
  %v349 = vadd.f32 %v121, %v348
  %v350 = vpop.f32.mrb[0].mxu0
  %351 = vmatprep.mubr.bf16.mxu0 0
  %352 = vmatmul.mubr.bf16.gmra.mrb[0].mxu0 %v170
  %v353 = vpop.f32.mrb[0].mxu0
  %v354 = vadd.f32 %v121, %v353
  %v355 = vpop.f32.mrb[0].mxu0
  %v356 = vpop.f32.mrb[0].mxu0
  %v357 = vadd.f32 %v121, %v356
  %v358 = vpop.f32.mrb[0].mxu0
  %359 = vmatprep.mubr.bf16.mxu0 0
  %360 = vmatmul.mubr.bf16.gmra.mrb[0].mxu0 %v173
  %v361 = vpop.f32.mrb[0].mxu0
  %v362 = vadd.f32 %v121, %v361
  %v363 = vpop.f32.mrb[0].mxu0
  %v364 = vpop.f32.mrb[0].mxu0
  %v365 = vadd.f32 %v121, %v364
  %v366 = vpop.f32.mrb[0].mxu0
  %367 = vmatprep.mubr.bf16.mxu0 0
  %368 = vmatmul.mubr.bf16.gmra.mrb[0].mxu0 %v176
  %v369 = vpop.f32.mrb[0].mxu0
  %v370 = vadd.f32 %v121, %v369
  %v371 = vpop.f32.mrb[0].mxu0
  %v372 = vpop.f32.mrb[0].mxu0
  %v373 = vadd.f32 %v121, %v372
  %v374 = vpop.f32.mrb[0].mxu0
  %375 = vmatprep.mubr.bf16.mxu0 0
  %376 = vmatmul.mubr.bf16.gmra.mrb[0].mxu0 %v179
  %v377 = vpop.f32.mrb[0].mxu0
  %v378 = vadd.f32 %v121, %v377
  %v379 = vpop.f32.mrb[0].mxu0
  %v380 = vpop.f32.mrb[0].mxu0
  %v381 = vadd.f32 %v121, %v380
  %v382 = vpop.f32.mrb[0].mxu0
  %383 = vmatprep.mubr.bf16.mxu0 0
  %384 = vmatmul.mubr.bf16.gmra.mrb[0].mxu0 %v182
  %v385 = vpop.f32.mrb[0].mxu0
  %v386 = vadd.f32 %v121, %v385
  %v387 = vpop.f32.mrb[0].mxu0
  %v388 = vpop.f32.mrb[0].mxu0
  %v389 = vadd.f32 %v121, %v388
  %v390 = vpop.f32.mrb[0].mxu0
  %391 = vmatprep.mubr.bf16.mxu0 0
  %392 = vmatmul.mubr.bf16.gmra.mrb[0].mxu0 %v185
  %v393 = vpop.f32.mrb[0].mxu0
  %v394 = vadd.f32 %v121, %v393
  %v395 = vpop.f32.mrb[0].mxu0
  %v396 = vpop.f32.mrb[0].mxu0
  %v397 = vadd.f32 %v121, %v396
  %v398 = vpop.f32.mrb[0].mxu0
  %399 = vmatprep.mubr.bf16.mxu0 0
  %400 = vmatmul.mubr.bf16.gmra.mrb[0].mxu0 %v188
  %v401 = vpop.f32.mrb[0].mxu0
  %v402 = vadd.f32 %v121, %v401
  %v403 = vpop.f32.mrb[0].mxu0
  %v404 = vpop.f32.mrb[0].mxu0
  %v405 = vadd.f32 %v121, %v404
  %v406 = vpop.f32.mrb[0].mxu0
  %407 = vmatprep.mubr.bf16.mxu0 0
  %408 = vmatmul.mubr.bf16.gmra.mrb[0].mxu0 %v191
  %v409 = vpop.f32.mrb[0].mxu0
  %v410 = vadd.f32 %v121, %v409
  %v411 = vpop.f32.mrb[0].mxu0
  %v412 = vpop.f32.mrb[0].mxu0
  %v413 = vadd.f32 %v121, %v412
  %v414 = vpop.f32.mrb[0].mxu0
  %415 = vmatprep.mubr.bf16.mxu0 0
  %416 = vmatmul.mubr.bf16.gmra.mrb[0].mxu0 %v194
  %v417 = vpop.f32.mrb[0].mxu0
  %v418 = vadd.f32 %v121, %v417
  %v419 = vpop.f32.mrb[0].mxu0
  %v420 = vpop.f32.mrb[0].mxu0
  %v421 = vadd.f32 %v121, %v420
  %v422 = vpop.f32.mrb[0].mxu0
  %423 = vmatprep.mubr.bf16.mxu0 0
  %424 = vmatmul.mubr.bf16.gmra.mrb[0].mxu0 %v197
  %v425 = vpop.f32.mrb[0].mxu0
  %v426 = vadd.f32 %v121, %v425
  %v427 = vpop.f32.mrb[0].mxu0
  %v428 = vpop.f32.mrb[0].mxu0
  %v429 = vadd.f32 %v121, %v428
  %v430 = vpop.f32.mrb[0].mxu0
  %431 = vmatprep.mubr.bf16.mxu0 0
  %432 = vmatmul.mubr.bf16.gmra.mrb[0].mxu0 %v200
  %v433 = vpop.f32.mrb[0].mxu0
  %v434 = vadd.f32 %v121, %v433
  %v435 = vpop.f32.mrb[0].mxu0
  %v436 = vpop.f32.mrb[0].mxu0
  %v437 = vadd.f32 %v121, %v436
  %v438 = vpop.f32.mrb[0].mxu0
  %439 = vmatprep.mubr.bf16.mxu0 0
  %440 = vmatmul.mubr.bf16.gmra.mrb[0].mxu0 %v203
  %v441 = vpop.f32.mrb[0].mxu0
  %v442 = vadd.f32 %v121, %v441
  %v443 = vpop.f32.mrb[0].mxu0
  %v444 = vpop.f32.mrb[0].mxu0
  %v445 = vadd.f32 %v121, %v444
  %v446 = vpop.f32.mrb[0].mxu0
  %447 = vmatprep.mubr.bf16.mxu0 0
  %448 = vmatmul.mubr.bf16.gmra.mrb[0].mxu0 %v206
  %v449 = vpop.f32.mrb[0].mxu0
  %v450 = vadd.f32 %v121, %v449
  %v451 = vpop.f32.mrb[0].mxu0
  %v452 = vpop.f32.mrb[0].mxu0
  %v453 = vadd.f32 %v121, %v452
  %v454 = vpop.f32.mrb[0].mxu0
  %455 = vmatprep.mubr.bf16.mxu0 0
  %456 = vmatmul.mubr.bf16.gmra.mrb[0].mxu0 %v209
  %v457 = vpop.f32.mrb[0].mxu0
  %v458 = vadd.f32 %v121, %v457
  %v459 = vpop.f32.mrb[0].mxu0
  %v460 = vpop.f32.mrb[0].mxu0
  %v461 = vadd.f32 %v121, %v460
  %v462 = vpop.f32.mrb[0].mxu0
  %463 = vmatprep.mubr.bf16.mxu0 0
  %464 = vmatmul.mubr.bf16.gmra.mrb[0].mxu0 %v212
  %v465 = vpop.f32.mrb[0].mxu0
  %v466 = vadd.f32 %v121, %v465
  %v467 = vpop.f32.mrb[0].mxu0
  %v468 = vpop.f32.mrb[0].mxu0
  %v469 = vadd.f32 %v121, %v468
  %v470 = vpop.f32.mrb[0].mxu0
  %471 = vmatprep.mubr.bf16.mxu0 0
  %472 = vmatmul.mubr.bf16.gmra.mrb[0].mxu0 %v215
  %v473 = vpop.f32.mrb[0].mxu0
  %v474 = vadd.f32 %v121, %v473
  %v475 = vpop.f32.mrb[0].mxu0
  %v476 = vpop.f32.mrb[0].mxu0
  %v477 = vadd.f32 %v121, %v476
  %v478 = vpop.f32.mrb[0].mxu0
  %479 = vmatprep.mubr.bf16.mxu0 0
  %480 = vmatmul.mubr.bf16.gmra.mrb[0].mxu0 %v218
  %v481 = vpop.f32.mrb[0].mxu0
  %v482 = vadd.f32 %v121, %v481
  %v483 = vpop.f32.mrb[0].mxu0
  %v484 = vpop.f32.mrb[0].mxu0
  %v485 = vadd.f32 %v121, %v484
  %v486 = vpop.f32.mrb[0].mxu0
  %487 = vmatprep.mubr.bf16.mxu0 0
  %488 = vmatmul.mubr.bf16.gmra.mrb[0].mxu0 %v221
  %v489 = vpop.f32.mrb[0].mxu0
  %v490 = vadd.f32 %v121, %v489
  %v491 = vpop.f32.mrb[0].mxu0
  %v492 = vpop.f32.mrb[0].mxu0
  %v493 = vadd.f32 %v121, %v492
  %v494 = vpop.f32.mrb[0].mxu0
  %495 = vmatprep.mubr.bf16.mxu0 0
  %496 = vmatmul.mubr.bf16.gmra.mrb[0].mxu0 %v224
  %v497 = vpop.f32.mrb[0].mxu0
  %v498 = vadd.f32 %v121, %v497
  %v499 = vpop.f32.mrb[0].mxu0
  %v500 = vpop.f32.mrb[0].mxu0
  %v501 = vadd.f32 %v121, %v500
  %v502 = vpop.f32.mrb[0].mxu0
  %503 = vmatprep.mubr.bf16.mxu0 0
  %504 = vmatmul.mubr.bf16.gmra.mrb[0].mxu0 %v227
  %v505 = vpop.f32.mrb[0].mxu0
  %v506 = vadd.f32 %v121, %v505
  %v507 = vpop.f32.mrb[0].mxu0
  %v508 = vpop.f32.mrb[0].mxu0
  %v509 = vadd.f32 %v121, %v508
  %v510 = vpop.f32.mrb[0].mxu0
  %511 = vmatprep.mubr.bf16.mxu0 0
  %512 = vmatmul.mubr.bf16.gmra.mrb[0].mxu0 %v230
  %v513 = vpop.f32.mrb[0].mxu0
  %v514 = vadd.f32 %v121, %v513
  %v515 = vpop.f32.mrb[0].mxu0
  %v516 = vpop.f32.mrb[0].mxu0
  %v517 = vadd.f32 %v121, %v516
  %v518 = vpop.f32.mrb[0].mxu0
  %519 = vmatprep.mubr.bf16.mxu0 0
  %520 = vmatmul.mubr.bf16.gmra.mrb[0].mxu0 %v233
  %v521 = vpop.f32.mrb[0].mxu0
  %v522 = vadd.f32 %v121, %v521
  %v523 = vpop.f32.mrb[0].mxu0
  %v524 = vpop.f32.mrb[0].mxu0
  %v525 = vadd.f32 %v121, %v524
  %v526 = vpop.f32.mrb[0].mxu0
  %527 = vdwg.mxu0
  %v528 = vpack.c.bf16 %v277, %v274
  %v529 = vpack.c.bf16 %v285, %v282
  %v530 = vpack.c.bf16 %v293, %v290
  %v531 = vpack.c.bf16 %v301, %v298
  %v532 = vpack.c.bf16 %v309, %v306
  %v533 = vpack.c.bf16 %v317, %v314
  %v534 = vpack.c.bf16 %v325, %v322
  %v535 = vpack.c.bf16 %v333, %v330
  %v536 = vpack.c.bf16 %v341, %v338
  %v537 = vpack.c.bf16 %v349, %v346
  %v538 = vpack.c.bf16 %v357, %v354
  %v539 = vpack.c.bf16 %v365, %v362
  %v540 = vpack.c.bf16 %v373, %v370
  %v541 = vpack.c.bf16 %v381, %v378
  %v542 = vpack.c.bf16 %v389, %v386
  %v543 = vpack.c.bf16 %v397, %v394
  %v544 = vpack.c.bf16 %v405, %v402
  %v545 = vpack.c.bf16 %v413, %v410
  %v546 = vpack.c.bf16 %v421, %v418
  %v547 = vpack.c.bf16 %v429, %v426
  %v548 = vpack.c.bf16 %v437, %v434
  %v549 = vpack.c.bf16 %v445, %v442
  %v550 = vpack.c.bf16 %v453, %v450
  %v551 = vpack.c.bf16 %v461, %v458
  %v552 = vpack.c.bf16 %v469, %v466
  %v553 = vpack.c.bf16 %v477, %v474
  %v554 = vpack.c.bf16 %v485, %v482
  %v555 = vpack.c.bf16 %v493, %v490
  %v556 = vpack.c.bf16 %v501, %v498
  %v557 = vpack.c.bf16 %v509, %v506
  %v558 = vpack.c.bf16 %v517, %v514
  %v559 = vpack.c.bf16 %v525, %v522
  %v592 = vunpack.c.l.b16 %v528
  %v593 = vunpack.c.h.b16 %v528
  %v594 = vunpack.c.l.b16 %v529
  %v595 = vunpack.c.h.b16 %v529
  %v596 = vunpack.c.l.b16 %v530
  %v597 = vunpack.c.h.b16 %v530
  %v598 = vunpack.c.l.b16 %v531
  %v599 = vunpack.c.h.b16 %v531
  %v600 = vunpack.c.l.b16 %v532
  %v601 = vunpack.c.h.b16 %v532
  %v602 = vunpack.c.l.b16 %v533
  %v603 = vunpack.c.h.b16 %v533
  %v604 = vunpack.c.l.b16 %v534
  %v605 = vunpack.c.h.b16 %v534
  %v606 = vunpack.c.l.b16 %v535
  %v607 = vunpack.c.h.b16 %v535
  %v608 = vunpack.c.l.b16 %v536
  %v609 = vunpack.c.h.b16 %v536
  %v610 = vunpack.c.l.b16 %v537
  %v611 = vunpack.c.h.b16 %v537
  %v612 = vunpack.c.l.b16 %v538
  %v613 = vunpack.c.h.b16 %v538
  %v614 = vunpack.c.l.b16 %v539
  %v615 = vunpack.c.h.b16 %v539
  %v616 = vunpack.c.l.b16 %v540
  %v617 = vunpack.c.h.b16 %v540
  %v618 = vunpack.c.l.b16 %v541
  %v619 = vunpack.c.h.b16 %v541
  %v620 = vunpack.c.l.b16 %v542
  %v621 = vunpack.c.h.b16 %v542
  %v622 = vunpack.c.l.b16 %v543
  %v623 = vunpack.c.h.b16 %v543
  %v624 = vunpack.c.l.b16 %v544
  %v625 = vunpack.c.h.b16 %v544
  %v626 = vunpack.c.l.b16 %v545
  %v627 = vunpack.c.h.b16 %v545
  %v628 = vunpack.c.l.b16 %v546
  %v629 = vunpack.c.h.b16 %v546
  %v630 = vunpack.c.l.b16 %v547
  %v631 = vunpack.c.h.b16 %v547
  %v632 = vunpack.c.l.b16 %v548
  %v633 = vunpack.c.h.b16 %v548
  %v634 = vunpack.c.l.b16 %v549
  %v635 = vunpack.c.h.b16 %v549
  %v636 = vunpack.c.l.b16 %v550
  %v637 = vunpack.c.h.b16 %v550
  %v638 = vunpack.c.l.b16 %v551
  %v639 = vunpack.c.h.b16 %v551
  %v640 = vunpack.c.l.b16 %v552
  %v641 = vunpack.c.h.b16 %v552
  %v642 = vunpack.c.l.b16 %v553
  %v643 = vunpack.c.h.b16 %v553
  %v644 = vunpack.c.l.b16 %v554
  %v645 = vunpack.c.h.b16 %v554
  %v646 = vunpack.c.l.b16 %v555
  %v647 = vunpack.c.h.b16 %v555
  %v648 = vunpack.c.l.b16 %v556
  %v649 = vunpack.c.h.b16 %v556
  %v650 = vunpack.c.l.b16 %v557
  %v651 = vunpack.c.h.b16 %v557
  %v652 = vunpack.c.l.b16 %v558
  %v653 = vunpack.c.h.b16 %v558
  %v654 = vunpack.c.l.b16 %v559
  %v655 = vunpack.c.h.b16 %v559
  %v656 = vpack.c.b16 %v592, %v592
  %v657 = vpack.c.b16 %v593, %v593
  %v658 = vpack.c.b16 %v594, %v594
  %v659 = vpack.c.b16 %v595, %v595
  %v660 = vpack.c.b16 %v596, %v596
  %v661 = vpack.c.b16 %v597, %v597
  %v662 = vpack.c.b16 %v598, %v598
  %v663 = vpack.c.b16 %v599, %v599
  %v664 = vpack.c.b16 %v600, %v600
  %v665 = vpack.c.b16 %v601, %v601
  %v666 = vpack.c.b16 %v602, %v602
  %v667 = vpack.c.b16 %v603, %v603
  %v668 = vpack.c.b16 %v604, %v604
  %v669 = vpack.c.b16 %v605, %v605
  %v670 = vpack.c.b16 %v606, %v606
  %v671 = vpack.c.b16 %v607, %v607
  %v672 = vpack.c.b16 %v608, %v608
  %v673 = vpack.c.b16 %v609, %v609
  %v674 = vpack.c.b16 %v610, %v610
  %v675 = vpack.c.b16 %v611, %v611
  %v676 = vpack.c.b16 %v612, %v612
  %v677 = vpack.c.b16 %v613, %v613
  %v678 = vpack.c.b16 %v614, %v614
  %v679 = vpack.c.b16 %v615, %v615
  %v680 = vpack.c.b16 %v616, %v616
  %v681 = vpack.c.b16 %v617, %v617
  %v682 = vpack.c.b16 %v618, %v618
  %v683 = vpack.c.b16 %v619, %v619
  %v684 = vpack.c.b16 %v620, %v620
  %v685 = vpack.c.b16 %v621, %v621
  %v686 = vpack.c.b16 %v622, %v622
  %v687 = vpack.c.b16 %v623, %v623
  %v688 = vpack.c.b16 %v624, %v624
  %v689 = vpack.c.b16 %v625, %v625
  %v690 = vpack.c.b16 %v626, %v626
  %v691 = vpack.c.b16 %v627, %v627
  %v692 = vpack.c.b16 %v628, %v628
  %v693 = vpack.c.b16 %v629, %v629
  %v694 = vpack.c.b16 %v630, %v630
  %v695 = vpack.c.b16 %v631, %v631
  %v696 = vpack.c.b16 %v632, %v632
  %v697 = vpack.c.b16 %v633, %v633
  %v698 = vpack.c.b16 %v634, %v634
  %v699 = vpack.c.b16 %v635, %v635
  %v700 = vpack.c.b16 %v636, %v636
  %v701 = vpack.c.b16 %v637, %v637
  %v702 = vpack.c.b16 %v638, %v638
  %v703 = vpack.c.b16 %v639, %v639
  %v704 = vpack.c.b16 %v640, %v640
  %v705 = vpack.c.b16 %v641, %v641
  %v706 = vpack.c.b16 %v642, %v642
  %v707 = vpack.c.b16 %v643, %v643
  %v708 = vpack.c.b16 %v644, %v644
  %v709 = vpack.c.b16 %v645, %v645
  %v710 = vpack.c.b16 %v646, %v646
  %v711 = vpack.c.b16 %v647, %v647
  %v712 = vpack.c.b16 %v648, %v648
  %v713 = vpack.c.b16 %v649, %v649
  %v714 = vpack.c.b16 %v650, %v650
  %v715 = vpack.c.b16 %v651, %v651
  %v716 = vpack.c.b16 %v652, %v652
  %v717 = vpack.c.b16 %v653, %v653
  %v718 = vpack.c.b16 %v654, %v654
  %v719 = vpack.c.b16 %v655, %v655
  %vm784 = vcmask 257024
  %785 = vst.msk [vmem:[%s3] sm:$0xf] %vm784, %v656
  %786 = vst.msk [vmem:[%s3 + $0x4] sm:$0xf] %vm784, %v657
  %787 = vst.msk [vmem:[%s3 + $0x8] sm:$0xf] %vm784, %v658
  %788 = vst.msk [vmem:[%s3 + $0xc] sm:$0xf] %vm784, %v659
  %789 = vst.msk [vmem:[%s3 + $0x10] sm:$0xf] %vm784, %v660
  %790 = vst.msk [vmem:[%s3 + $0x14] sm:$0xf] %vm784, %v661
  %791 = vst.msk [vmem:[%s3 + $0x18] sm:$0xf] %vm784, %v662
  %792 = vst.msk [vmem:[%s3 + $0x1c] sm:$0xf] %vm784, %v663
  %793 = vst.msk [vmem:[%s3 + $0x20] sm:$0xf] %vm784, %v664
  %794 = vst.msk [vmem:[%s3 + $0x24] sm:$0xf] %vm784, %v665
  %795 = vst.msk [vmem:[%s3 + $0x28] sm:$0xf] %vm784, %v666
  %796 = vst.msk [vmem:[%s3 + $0x2c] sm:$0xf] %vm784, %v667
  %797 = vst.msk [vmem:[%s3 + $0x30] sm:$0xf] %vm784, %v668
  %798 = vst.msk [vmem:[%s3 + $0x34] sm:$0xf] %vm784, %v669
  %799 = vst.msk [vmem:[%s3 + $0x38] sm:$0xf] %vm784, %v670
  %800 = vst.msk [vmem:[%s3 + $0x3c] sm:$0xf] %vm784, %v671
  %801 = vst.msk [vmem:[%s3 + $0x40] sm:$0xf] %vm784, %v672
  %802 = vst.msk [vmem:[%s3 + $0x44] sm:$0xf] %vm784, %v673
  %803 = vst.msk [vmem:[%s3 + $0x48] sm:$0xf] %vm784, %v674
  %804 = vst.msk [vmem:[%s3 + $0x4c] sm:$0xf] %vm784, %v675
  %805 = vst.msk [vmem:[%s3 + $0x50] sm:$0xf] %vm784, %v676
  %806 = vst.msk [vmem:[%s3 + $0x54] sm:$0xf] %vm784, %v677
  %807 = vst.msk [vmem:[%s3 + $0x58] sm:$0xf] %vm784, %v678
  %808 = vst.msk [vmem:[%s3 + $0x5c] sm:$0xf] %vm784, %v679
  %809 = vst.msk [vmem:[%s3 + $0x60] sm:$0xf] %vm784, %v680
  %810 = vst.msk [vmem:[%s3 + $0x64] sm:$0xf] %vm784, %v681
  %811 = vst.msk [vmem:[%s3 + $0x68] sm:$0xf] %vm784, %v682
  %812 = vst.msk [vmem:[%s3 + $0x6c] sm:$0xf] %vm784, %v683
  %813 = vst.msk [vmem:[%s3 + $0x70] sm:$0xf] %vm784, %v684
  %814 = vst.msk [vmem:[%s3 + $0x74] sm:$0xf] %vm784, %v685
  %815 = vst.msk [vmem:[%s3 + $0x78] sm:$0xf] %vm784, %v686
  %816 = vst.msk [vmem:[%s3 + $0x7c] sm:$0xf] %vm784, %v687
  %817 = vst.msk [vmem:[%s3 + $0x80] sm:$0xf] %vm784, %v688
  %818 = vst.msk [vmem:[%s3 + $0x84] sm:$0xf] %vm784, %v689
  %819 = vst.msk [vmem:[%s3 + $0x88] sm:$0xf] %vm784, %v690
  %820 = vst.msk [vmem:[%s3 + $0x8c] sm:$0xf] %vm784, %v691
  %821 = vst.msk [vmem:[%s3 + $0x90] sm:$0xf] %vm784, %v692
  %822 = vst.msk [vmem:[%s3 + $0x94] sm:$0xf] %vm784, %v693
  %823 = vst.msk [vmem:[%s3 + $0x98] sm:$0xf] %vm784, %v694
  %824 = vst.msk [vmem:[%s3 + $0x9c] sm:$0xf] %vm784, %v695
  %825 = vst.msk [vmem:[%s3 + $0xa0] sm:$0xf] %vm784, %v696
  %826 = vst.msk [vmem:[%s3 + $0xa4] sm:$0xf] %vm784, %v697
  %827 = vst.msk [vmem:[%s3 + $0xa8] sm:$0xf] %vm784, %v698
  %828 = vst.msk [vmem:[%s3 + $0xac] sm:$0xf] %vm784, %v699
  %829 = vst.msk [vmem:[%s3 + $0xb0] sm:$0xf] %vm784, %v700
  %830 = vst.msk [vmem:[%s3 + $0xb4] sm:$0xf] %vm784, %v701
  %831 = vst.msk [vmem:[%s3 + $0xb8] sm:$0xf] %vm784, %v702
  %832 = vst.msk [vmem:[%s3 + $0xbc] sm:$0xf] %vm784, %v703
  %833 = vst.msk [vmem:[%s3 + $0xc0] sm:$0xf] %vm784, %v704
  %834 = vst.msk [vmem:[%s3 + $0xc4] sm:$0xf] %vm784, %v705
  %835 = vst.msk [vmem:[%s3 + $0xc8] sm:$0xf] %vm784, %v706
  %836 = vst.msk [vmem:[%s3 + $0xcc] sm:$0xf] %vm784, %v707
  %837 = vst.msk [vmem:[%s3 + $0xd0] sm:$0xf] %vm784, %v708
  %838 = vst.msk [vmem:[%s3 + $0xd4] sm:$0xf] %vm784, %v709
  %839 = vst.msk [vmem:[%s3 + $0xd8] sm:$0xf] %vm784, %v710
  %840 = vst.msk [vmem:[%s3 + $0xdc] sm:$0xf] %vm784, %v711
  %841 = vst.msk [vmem:[%s3 + $0xe0] sm:$0xf] %vm784, %v712
  %842 = vst.msk [vmem:[%s3 + $0xe4] sm:$0xf] %vm784, %v713
  %843 = vst.msk [vmem:[%s3 + $0xe8] sm:$0xf] %vm784, %v714
  %844 = vst.msk [vmem:[%s3 + $0xec] sm:$0xf] %vm784, %v715
  %845 = vst.msk [vmem:[%s3 + $0xf0] sm:$0xf] %vm784, %v716
  %846 = vst.msk [vmem:[%s3 + $0xf4] sm:$0xf] %vm784, %v717
  %847 = vst.msk [vmem:[%s3 + $0xf8] sm:$0xf] %vm784, %v718
  %848 = vst.msk [vmem:[%s3 + $0xfc] sm:$0xf] %vm784, %v719
  %849 = vrot.lane.b32.xlu0 %v656, 96
  %v850 = vpop.permute.xlu0 %849
  %851 = vrot.lane.b32.xlu0 %v657, 96
  %v852 = vpop.permute.xlu0 %851
  %853 = vrot.lane.b32.xlu0 %v658, 96
  %v854 = vpop.permute.xlu0 %853
  %855 = vrot.lane.b32.xlu0 %v659, 96
  %v856 = vpop.permute.xlu0 %855
  %857 = vrot.lane.b32.xlu0 %v660, 96
  %v858 = vpop.permute.xlu0 %857
  %859 = vrot.lane.b32.xlu0 %v661, 96
  %v860 = vpop.permute.xlu0 %859
  %861 = vrot.lane.b32.xlu0 %v662, 96
  %v862 = vpop.permute.xlu0 %861
  %863 = vrot.lane.b32.xlu0 %v663, 96
  %v864 = vpop.permute.xlu0 %863
  %865 = vrot.lane.b32.xlu0 %v664, 96
  %v866 = vpop.permute.xlu0 %865
  %867 = vrot.lane.b32.xlu0 %v665, 96
  %v868 = vpop.permute.xlu0 %867
  %869 = vrot.lane.b32.xlu0 %v666, 96
  %v870 = vpop.permute.xlu0 %869
  %871 = vrot.lane.b32.xlu0 %v667, 96
  %v872 = vpop.permute.xlu0 %871
  %873 = vrot.lane.b32.xlu0 %v668, 96
  %v874 = vpop.permute.xlu0 %873
  %875 = vrot.lane.b32.xlu0 %v669, 96
  %v876 = vpop.permute.xlu0 %875
  %877 = vrot.lane.b32.xlu0 %v670, 96
  %v878 = vpop.permute.xlu0 %877
  %879 = vrot.lane.b32.xlu0 %v671, 96
  %v880 = vpop.permute.xlu0 %879
  %881 = vrot.lane.b32.xlu0 %v672, 96
  %v882 = vpop.permute.xlu0 %881
  %883 = vrot.lane.b32.xlu0 %v673, 96
  %v884 = vpop.permute.xlu0 %883
  %885 = vrot.lane.b32.xlu0 %v674, 96
  %v886 = vpop.permute.xlu0 %885
  %887 = vrot.lane.b32.xlu0 %v675, 96
  %v888 = vpop.permute.xlu0 %887
  %889 = vrot.lane.b32.xlu0 %v676, 96
  %v890 = vpop.permute.xlu0 %889
  %891 = vrot.lane.b32.xlu0 %v677, 96
  %v892 = vpop.permute.xlu0 %891
  %893 = vrot.lane.b32.xlu0 %v678, 96
  %v894 = vpop.permute.xlu0 %893
  %895 = vrot.lane.b32.xlu0 %v679, 96
  %v896 = vpop.permute.xlu0 %895
  %897 = vrot.lane.b32.xlu0 %v680, 96
  %v898 = vpop.permute.xlu0 %897
  %899 = vrot.lane.b32.xlu0 %v681, 96
  %v900 = vpop.permute.xlu0 %899
  %901 = vrot.lane.b32.xlu0 %v682, 96
  %v902 = vpop.permute.xlu0 %901
  %903 = vrot.lane.b32.xlu0 %v683, 96
  %v904 = vpop.permute.xlu0 %903
  %905 = vrot.lane.b32.xlu0 %v684, 96
  %v906 = vpop.permute.xlu0 %905
  %907 = vrot.lane.b32.xlu0 %v685, 96
  %v908 = vpop.permute.xlu0 %907
  %909 = vrot.lane.b32.xlu0 %v686, 96
  %v910 = vpop.permute.xlu0 %909
  %911 = vrot.lane.b32.xlu0 %v687, 96
  %v912 = vpop.permute.xlu0 %911
  %913 = vrot.lane.b32.xlu0 %v688, 96
  %v914 = vpop.permute.xlu0 %913
  %915 = vrot.lane.b32.xlu0 %v689, 96
  %v916 = vpop.permute.xlu0 %915
  %917 = vrot.lane.b32.xlu0 %v690, 96
  %v918 = vpop.permute.xlu0 %917
  %919 = vrot.lane.b32.xlu0 %v691, 96
  %v920 = vpop.permute.xlu0 %919
  %921 = vrot.lane.b32.xlu0 %v692, 96
  %v922 = vpop.permute.xlu0 %921
  %923 = vrot.lane.b32.xlu0 %v693, 96
  %v924 = vpop.permute.xlu0 %923
  %925 = vrot.lane.b32.xlu0 %v694, 96
  %v926 = vpop.permute.xlu0 %925
  %927 = vrot.lane.b32.xlu0 %v695, 96
  %v928 = vpop.permute.xlu0 %927
  %929 = vrot.lane.b32.xlu0 %v696, 96
  %v930 = vpop.permute.xlu0 %929
  %931 = vrot.lane.b32.xlu0 %v697, 96
  %v932 = vpop.permute.xlu0 %931
  %933 = vrot.lane.b32.xlu0 %v698, 96
  %v934 = vpop.permute.xlu0 %933
  %935 = vrot.lane.b32.xlu0 %v699, 96
  %v936 = vpop.permute.xlu0 %935
  %937 = vrot.lane.b32.xlu0 %v700, 96
  %v938 = vpop.permute.xlu0 %937
  %939 = vrot.lane.b32.xlu0 %v701, 96
  %v940 = vpop.permute.xlu0 %939
  %941 = vrot.lane.b32.xlu0 %v702, 96
  %v942 = vpop.permute.xlu0 %941
  %943 = vrot.lane.b32.xlu0 %v703, 96
  %v944 = vpop.permute.xlu0 %943
  %945 = vrot.lane.b32.xlu0 %v704, 96
  %v946 = vpop.permute.xlu0 %945
  %947 = vrot.lane.b32.xlu0 %v705, 96
  %v948 = vpop.permute.xlu0 %947
  %949 = vrot.lane.b32.xlu0 %v706, 96
  %v950 = vpop.permute.xlu0 %949
  %951 = vrot.lane.b32.xlu0 %v707, 96
  %v952 = vpop.permute.xlu0 %951
  %953 = vrot.lane.b32.xlu0 %v708, 96
  %v954 = vpop.permute.xlu0 %953
  %955 = vrot.lane.b32.xlu0 %v709, 96
  %v956 = vpop.permute.xlu0 %955
  %957 = vrot.lane.b32.xlu0 %v710, 96
  %v958 = vpop.permute.xlu0 %957
  %959 = vrot.lane.b32.xlu0 %v711, 96
  %v960 = vpop.permute.xlu0 %959
  %961 = vrot.lane.b32.xlu0 %v712, 96
  %v962 = vpop.permute.xlu0 %961
  %963 = vrot.lane.b32.xlu0 %v713, 96
  %v964 = vpop.permute.xlu0 %963
  %965 = vrot.lane.b32.xlu0 %v714, 96
  %v966 = vpop.permute.xlu0 %965
  %967 = vrot.lane.b32.xlu0 %v715, 96
  %v968 = vpop.permute.xlu0 %967
  %969 = vrot.lane.b32.xlu0 %v716, 96
  %v970 = vpop.permute.xlu0 %969
  %971 = vrot.lane.b32.xlu0 %v717, 96
  %v972 = vpop.permute.xlu0 %971
  %973 = vrot.lane.b32.xlu0 %v718, 96
  %v974 = vpop.permute.xlu0 %973
  %975 = vrot.lane.b32.xlu0 %v719, 96
  %v976 = vpop.permute.xlu0 %975
  %s1041 = scalar_lea.vmem %s3, 256
  %1042 = vst.msk [vmem:[%s1041] sm:$0xf] %vm784, %v850
  %1043 = vst.msk [vmem:[%s1041 + $0x4] sm:$0xf] %vm784, %v852
  %1044 = vst.msk [vmem:[%s1041 + $0x8] sm:$0xf] %vm784, %v854
  %1045 = vst.msk [vmem:[%s1041 + $0xc] sm:$0xf] %vm784, %v856
  %1046 = vst.msk [vmem:[%s1041 + $0x10] sm:$0xf] %vm784, %v858
  %1047 = vst.msk [vmem:[%s1041 + $0x14] sm:$0xf] %vm784, %v860
  %1048 = vst.msk [vmem:[%s1041 + $0x18] sm:$0xf] %vm784, %v862
  %1049 = vst.msk [vmem:[%s1041 + $0x1c] sm:$0xf] %vm784, %v864
  %1050 = vst.msk [vmem:[%s1041 + $0x20] sm:$0xf] %vm784, %v866
  %1051 = vst.msk [vmem:[%s1041 + $0x24] sm:$0xf] %vm784, %v868
  %1052 = vst.msk [vmem:[%s1041 + $0x28] sm:$0xf] %vm784, %v870
  %1053 = vst.msk [vmem:[%s1041 + $0x2c] sm:$0xf] %vm784, %v872
  %1054 = vst.msk [vmem:[%s1041 + $0x30] sm:$0xf] %vm784, %v874
  %1055 = vst.msk [vmem:[%s1041 + $0x34] sm:$0xf] %vm784, %v876
  %1056 = vst.msk [vmem:[%s1041 + $0x38] sm:$0xf] %vm784, %v878
  %1057 = vst.msk [vmem:[%s1041 + $0x3c] sm:$0xf] %vm784, %v880
  %1058 = vst.msk [vmem:[%s1041 + $0x40] sm:$0xf] %vm784, %v882
  %1059 = vst.msk [vmem:[%s1041 + $0x44] sm:$0xf] %vm784, %v884
  %1060 = vst.msk [vmem:[%s1041 + $0x48] sm:$0xf] %vm784, %v886
  %1061 = vst.msk [vmem:[%s1041 + $0x4c] sm:$0xf] %vm784, %v888
  %1062 = vst.msk [vmem:[%s1041 + $0x50] sm:$0xf] %vm784, %v890
  %1063 = vst.msk [vmem:[%s1041 + $0x54] sm:$0xf] %vm784, %v892
  %1064 = vst.msk [vmem:[%s1041 + $0x58] sm:$0xf] %vm784, %v894
  %1065 = vst.msk [vmem:[%s1041 + $0x5c] sm:$0xf] %vm784, %v896
  %1066 = vst.msk [vmem:[%s1041 + $0x60] sm:$0xf] %vm784, %v898
  %1067 = vst.msk [vmem:[%s1041 + $0x64] sm:$0xf] %vm784, %v900
  %1068 = vst.msk [vmem:[%s1041 + $0x68] sm:$0xf] %vm784, %v902
  %1069 = vst.msk [vmem:[%s1041 + $0x6c] sm:$0xf] %vm784, %v904
  %1070 = vst.msk [vmem:[%s1041 + $0x70] sm:$0xf] %vm784, %v906
  %1071 = vst.msk [vmem:[%s1041 + $0x74] sm:$0xf] %vm784, %v908
  %1072 = vst.msk [vmem:[%s1041 + $0x78] sm:$0xf] %vm784, %v910
  %1073 = vst.msk [vmem:[%s1041 + $0x7c] sm:$0xf] %vm784, %v912
  %1074 = vst.msk [vmem:[%s1041 + $0x80] sm:$0xf] %vm784, %v914
  %1075 = vst.msk [vmem:[%s1041 + $0x84] sm:$0xf] %vm784, %v916
  %1076 = vst.msk [vmem:[%s1041 + $0x88] sm:$0xf] %vm784, %v918
  %1077 = vst.msk [vmem:[%s1041 + $0x8c] sm:$0xf] %vm784, %v920
  %1078 = vst.msk [vmem:[%s1041 + $0x90] sm:$0xf] %vm784, %v922
  %1079 = vst.msk [vmem:[%s1041 + $0x94] sm:$0xf] %vm784, %v924
  %1080 = vst.msk [vmem:[%s1041 + $0x98] sm:$0xf] %vm784, %v926
  %1081 = vst.msk [vmem:[%s1041 + $0x9c] sm:$0xf] %vm784, %v928
  %1082 = vst.msk [vmem:[%s1041 + $0xa0] sm:$0xf] %vm784, %v930
  %1083 = vst.msk [vmem:[%s1041 + $0xa4] sm:$0xf] %vm784, %v932
  %1084 = vst.msk [vmem:[%s1041 + $0xa8] sm:$0xf] %vm784, %v934
  %1085 = vst.msk [vmem:[%s1041 + $0xac] sm:$0xf] %vm784, %v936
  %1086 = vst.msk [vmem:[%s1041 + $0xb0] sm:$0xf] %vm784, %v938
  %1087 = vst.msk [vmem:[%s1041 + $0xb4] sm:$0xf] %vm784, %v940
  %1088 = vst.msk [vmem:[%s1041 + $0xb8] sm:$0xf] %vm784, %v942
  %1089 = vst.msk [vmem:[%s1041 + $0xbc] sm:$0xf] %vm784, %v944
  %1090 = vst.msk [vmem:[%s1041 + $0xc0] sm:$0xf] %vm784, %v946
  %1091 = vst.msk [vmem:[%s1041 + $0xc4] sm:$0xf] %vm784, %v948
  %1092 = vst.msk [vmem:[%s1041 + $0xc8] sm:$0xf] %vm784, %v950
  %1093 = vst.msk [vmem:[%s1041 + $0xcc] sm:$0xf] %vm784, %v952
  %1094 = vst.msk [vmem:[%s1041 + $0xd0] sm:$0xf] %vm784, %v954
  %1095 = vst.msk [vmem:[%s1041 + $0xd4] sm:$0xf] %vm784, %v956
  %1096 = vst.msk [vmem:[%s1041 + $0xd8] sm:$0xf] %vm784, %v958
  %1097 = vst.msk [vmem:[%s1041 + $0xdc] sm:$0xf] %vm784, %v960
  %1098 = vst.msk [vmem:[%s1041 + $0xe0] sm:$0xf] %vm784, %v962
  %1099 = vst.msk [vmem:[%s1041 + $0xe4] sm:$0xf] %vm784, %v964
  %1100 = vst.msk [vmem:[%s1041 + $0xe8] sm:$0xf] %vm784, %v966
  %1101 = vst.msk [vmem:[%s1041 + $0xec] sm:$0xf] %vm784, %v968
  %1102 = vst.msk [vmem:[%s1041 + $0xf0] sm:$0xf] %vm784, %v970
  %1103 = vst.msk [vmem:[%s1041 + $0xf4] sm:$0xf] %vm784, %v972
  %1104 = vst.msk [vmem:[%s1041 + $0xf8] sm:$0xf] %vm784, %v974
  %1105 = vst.msk [vmem:[%s1041 + $0xfc] sm:$0xf] %vm784, %v976
  // Predicated region
  $region14: #{encoder_forward.3} parent=0 // pred_check
    _
  $region15: #{encoder_forward.3} parent=0 // pred_check_branch
    %1107 = sbr.rel (0) target = $region17
  $region16: #{encoder_forward.3} parent=0 // pred_region
    _
  $region17: #{encoder_forward.3} parent=0 // pred_fallthru
    _
  // Predicated region
  $region18: #{encoder_forward.3} parent=0 // pred_check
    _
  $region19: #{encoder_forward.3} parent=0 // pred_check_branch
    %1109 = sbr.rel (0) target = $region21
  $region20: #{encoder_forward.3} parent=0 // pred_region
    _
  $region21: #{encoder_forward.3} parent=0 // pred_fallthru
    _

// kernel: encoder_forward.4
$region0: #{encoder_forward.4}
  #allocation0 [shape = 'u32[]', space=smem, size = 0x4, offset = 0x4, fixed_abs, tag = 'smem constant byte address 0x4 - core index']
  #allocation1 [shape = 'u32[144,128]{1,0:T(1,128)}', space=vmem, size = 0x12000, scoped, tag = 'internal scratch']
  #allocation2 [shape = 'f32[10,10,8]{2,1,0:T(8,128)}', space=vmem, size = 0x14000, scoped, tag = 'scratch operand']
  #allocation3 [shape = 'f32[64,8]{1,0:T(8,128)}', space=vmem, size = 0x8000, scoped, tag = 'scratch operand']
  %s0 = inlined_call_operand.vmem [shape: bf16[2,2,4,64,32], index: 0, kind: input, shape index: {}]
  %s1 = inlined_call_operand.vmem [shape: bf16[2,72,32], index: 1, kind: input, shape index: {}]
  %s2 = inlined_call_operand.vmem [shape: f32[2,64,8], index: 2, kind: input, shape index: {}]
  %s3 = inlined_call_operand.vmem [shape: f32[2,64,8], index: 3, kind: input, shape index: {}]
  %s4 = inlined_call_operand.vmem [shape: f32[2,64,8], index: 4, kind: input, shape index: {}]
  %s5 = inlined_call_operand.vmem [shape: f32[2,2,4,64,8], index: 5, kind: output, shape index: {0}]
  %s6 = inlined_call_operand.vmem [shape: f32[2,2,64,8], index: 6, kind: output, shape index: {1}]
  %s7 = inlined_call_operand.vmem [shape: f32[2,2,64,8], index: 7, kind: output, shape index: {2}]
  %8 = xla_tuple %s5, %s6, %s7
  %s9 = sld [smem:[#allocation0]]
  $region77: #{encoder_forward.4} parent=0
    _
  %s11 = ssub.s32 1, %s9
  %s12 = scalar_select 0, %s11, %s9
  loop: start=0, step=1, limit=18
  $region2: #{encoder_forward.4} parent=0 // loop_pre_header
    _
  $region3: #{encoder_forward.4} parent=0 // loop_header
    %s14 = sphi 0, %s18
    %p15 = scmp.ge.s32.totalorder %s14, 18
    %s21 = sphi 0, %s40
    %s22 = sphi 0, %s36
    %s23 = sphi 0, %s32
    %s24 = sphi 0, %s21
    %s25 = sphi 0, %s22
    %s26 = sphi 0, %s23
    %s27 = sphi 0, %s24
    %s28 = sphi 0, %s25
    %s29 = sphi 0, %s26
    %s57 = sphi 0, %s59
    %s60 = sphi 0, %s57
    %s61 = sphi 0, %s60
    %s77 = sphi 0, %s61
    %s83 = sphi 0, %s85
    %s86 = sphi 0, %s83
    %s87 = sphi 0, %s86
    %s103 = sphi 0, %s87
    %s109 = sphi 0, %s111
    %s112 = sphi 0, %s109
    %s113 = sphi 0, %s112
    %s129 = sphi 0, %s113
    %s135 = sphi 0, %s137
    %s138 = sphi 0, %s135
    %s139 = sphi 0, %s138
    %s155 = sphi 0, %s139
    %s161 = sphi 0, %s163
    %s164 = sphi 0, %s161
    %s165 = sphi 0, %s164
    %s181 = sphi 0, %s165
    %s201 = sphi 0, %s203
    %s204 = sphi 0, %s201
    %s205 = sphi 0, %s204
    %s221 = sphi 0, %s205
    %s229 = sphi 0, %s231
    %s232 = sphi 0, %s229
    %s233 = sphi 0, %s232
    %s249 = sphi 0, %s233
    %s257 = sphi 0, %s259
    %s260 = sphi 0, %s257
    %s261 = sphi 0, %s260
    %s277 = sphi 0, %s261
  $region4: #{encoder_forward.4} parent=0 // loop_header_branch
    %17 = sbr.rel (%p15) target = $region8
  $region5: #{encoder_forward.4} parent=0 // loop_body
    %s19 = ssub.s32 %s14, 1
    %s20 = ssub.s32 %s14, 2
    %s30 = sadd.s32 1, %s23
    %p31 = scmp.ge.s32.totalorder %s30, 4
    %s32 = scalar_select %p31, 0, %s30
    %s33 = sadd.s32 1, %s22
    %s34 = scalar_select %p31, %s33, %s22
    %p35 = scmp.ge.s32.totalorder %s34, 2
    %s36 = scalar_select %p35, 0, %s34
    %s37 = sadd.s32 1, %s21
    %s38 = scalar_select %p35, %s37, %s21
    %p39 = scmp.ge.s32.totalorder %s38, 2
    %s40 = scalar_select %p39, 0, %s38
    %s41 = smul.u32 %s21, 3
    %s42 = smul.u32 %s21, 2
    %s43 = ssub.s32 1, %s42
    %s44 = smul.u32 %s43, %s23
    %s45 = sadd.s32 %s41, %s44
    %s46 = smul.u32 %s40, 3
    %s47 = smul.u32 %s40, 2
    %s48 = ssub.s32 1, %s47
    %s49 = smul.u32 %s48, %s32
    %s50 = sadd.s32 %s46, %s49
    %s51 = ssub.s32 %s21, %s40
    %s52 = ssub.s32 %s22, %s36
    %s53 = sor.u32 %s51, %s52
    %s54 = ssub.s32 %s45, %s50
    %s55 = sor.u32 %s53, %s54
    %p56 = scmp.eq.s32.totalorder %s55, 0
    %s58 = sadd.s32 %s57, 1
    %s59 = scalar_select %p56, %s57, %s58
    %p62 = pneg %p56
    %p63 = scmp.eq.s32.totalorder %s14, 15
    %p64 = por %p62, %p63
    %p65 = scmp.ne.s32.totalorder %s57, %s60
    %p66 = scmp.eq.s32.totalorder %s14, 0
    %p67 = por %p65, %p66
    %p68 = scmp.ne.s32.totalorder %s57, %s60
    %p69 = scmp.eq.s32.totalorder %s19, 15
    %p70 = por %p68, %p69
    %p71 = scmp.ne.s32.totalorder %s60, %s61
    %p72 = scmp.eq.s32.totalorder %s19, 0
    %p73 = por %p71, %p72
    %p74 = scmp.ne.s32.totalorder %s60, %s61
    %p75 = scmp.eq.s32.totalorder %s20, 15
    %p76 = por %p74, %p75
    %p78 = scmp.ne.s32.totalorder %s61, %s77
    %p79 = scmp.eq.s32.totalorder %s20, 0
    %p80 = por %p78, %p79
    %s81 = ssub.s32 %s21, %s40
    %p82 = scmp.eq.s32.totalorder %s81, 0
    %s84 = sadd.s32 %s83, 1
    %s85 = scalar_select %p82, %s83, %s84
    %p88 = pneg %p82
    %p89 = scmp.eq.s32.totalorder %s14, 15
    %p90 = por %p88, %p89
    %p91 = scmp.ne.s32.totalorder %s83, %s86
    %p92 = scmp.eq.s32.totalorder %s14, 0
    %p93 = por %p91, %p92
    %p94 = scmp.ne.s32.totalorder %s83, %s86
    %p95 = scmp.eq.s32.totalorder %s19, 15
    %p96 = por %p94, %p95
    %p97 = scmp.ne.s32.totalorder %s86, %s87
    %p98 = scmp.eq.s32.totalorder %s19, 0
    %p99 = por %p97, %p98
    %p100 = scmp.ne.s32.totalorder %s86, %s87
    %p101 = scmp.eq.s32.totalorder %s20, 15
    %p102 = por %p100, %p101
    %p104 = scmp.ne.s32.totalorder %s87, %s103
    %p105 = scmp.eq.s32.totalorder %s20, 0
    %p106 = por %p104, %p105
    %s107 = ssub.s32 %s21, %s40
    %p108 = scmp.eq.s32.totalorder %s107, 0
    %s110 = sadd.s32 %s109, 1
    %s111 = scalar_select %p108, %s109, %s110
    %p114 = pneg %p108
    %p115 = scmp.eq.s32.totalorder %s14, 15
    %p116 = por %p114, %p115
    %p117 = scmp.ne.s32.totalorder %s109, %s112
    %p118 = scmp.eq.s32.totalorder %s14, 0
    %p119 = por %p117, %p118
    %p120 = scmp.ne.s32.totalorder %s109, %s112
    %p121 = scmp.eq.s32.totalorder %s19, 15
    %p122 = por %p120, %p121
    %p123 = scmp.ne.s32.totalorder %s112, %s113
    %p124 = scmp.eq.s32.totalorder %s19, 0
    %p125 = por %p123, %p124
    %p126 = scmp.ne.s32.totalorder %s112, %s113
    %p127 = scmp.eq.s32.totalorder %s20, 15
    %p128 = por %p126, %p127
    %p130 = scmp.ne.s32.totalorder %s113, %s129
    %p131 = scmp.eq.s32.totalorder %s20, 0
    %p132 = por %p130, %p131
    %s133 = ssub.s32 %s21, %s40
    %p134 = scmp.eq.s32.totalorder %s133, 0
    %s136 = sadd.s32 %s135, 1
    %s137 = scalar_select %p134, %s135, %s136
    %p140 = pneg %p134
    %p141 = scmp.eq.s32.totalorder %s14, 15
    %p142 = por %p140, %p141
    %p143 = scmp.ne.s32.totalorder %s135, %s138
    %p144 = scmp.eq.s32.totalorder %s14, 0
    %p145 = por %p143, %p144
    %p146 = scmp.ne.s32.totalorder %s135, %s138
    %p147 = scmp.eq.s32.totalorder %s19, 15
    %p148 = por %p146, %p147
    %p149 = scmp.ne.s32.totalorder %s138, %s139
    %p150 = scmp.eq.s32.totalorder %s19, 0
    %p151 = por %p149, %p150
    %p152 = scmp.ne.s32.totalorder %s138, %s139
    %p153 = scmp.eq.s32.totalorder %s20, 15
    %p154 = por %p152, %p153
    %p156 = scmp.ne.s32.totalorder %s139, %s155
    %p157 = scmp.eq.s32.totalorder %s20, 0
    %p158 = por %p156, %p157
    %s159 = ssub.s32 %s21, %s40
    %p160 = scmp.eq.s32.totalorder %s159, 0
    %s162 = sadd.s32 %s161, 1
    %s163 = scalar_select %p160, %s161, %s162
    %p166 = pneg %p160
    %p167 = scmp.eq.s32.totalorder %s14, 15
    %p168 = por %p166, %p167
    %p169 = scmp.ne.s32.totalorder %s161, %s164
    %p170 = scmp.eq.s32.totalorder %s14, 0
    %p171 = por %p169, %p170
    %p172 = scmp.ne.s32.totalorder %s161, %s164
    %p173 = scmp.eq.s32.totalorder %s19, 15
    %p174 = por %p172, %p173
    %p175 = scmp.ne.s32.totalorder %s164, %s165
    %p176 = scmp.eq.s32.totalorder %s19, 0
    %p177 = por %p175, %p176
    %p178 = scmp.ne.s32.totalorder %s164, %s165
    %p179 = scmp.eq.s32.totalorder %s20, 15
    %p180 = por %p178, %p179
    %p182 = scmp.ne.s32.totalorder %s165, %s181
    %p183 = scmp.eq.s32.totalorder %s20, 0
    %p184 = por %p182, %p183
    %s185 = smul.u32 %s21, 3
    %s186 = smul.u32 %s21, 2
    %s187 = ssub.s32 1, %s186
    %s188 = smul.u32 %s187, %s23
    %s189 = sadd.s32 %s185, %s188
    %s190 = smul.u32 %s40, 3
    %s191 = smul.u32 %s40, 2
    %s192 = ssub.s32 1, %s191
    %s193 = smul.u32 %s192, %s32
    %s194 = sadd.s32 %s190, %s193
    %s195 = ssub.s32 %s21, %s40
    %s196 = ssub.s32 %s22, %s36
    %s197 = sor.u32 %s195, %s196
    %s198 = ssub.s32 %s189, %s194
    %s199 = sor.u32 %s197, %s198
    %p200 = scmp.eq.s32.totalorder %s199, 0
    %s202 = sadd.s32 %s201, 1
    %s203 = scalar_select %p200, %s201, %s202
    %p206 = pneg %p200
    %p207 = scmp.eq.s32.totalorder %s14, 15
    %p208 = por %p206, %p207
    %p209 = scmp.ne.s32.totalorder %s201, %s204
    %p210 = scmp.eq.s32.totalorder %s14, 0
    %p211 = por %p209, %p210
    %p212 = scmp.ne.s32.totalorder %s201, %s204
    %p213 = scmp.eq.s32.totalorder %s19, 15
    %p214 = por %p212, %p213
    %p215 = scmp.ne.s32.totalorder %s204, %s205
    %p216 = scmp.eq.s32.totalorder %s19, 0
    %p217 = por %p215, %p216
    %p218 = scmp.ne.s32.totalorder %s204, %s205
    %p219 = scmp.eq.s32.totalorder %s20, 15
    %p220 = por %p218, %p219
    %p222 = scmp.ne.s32.totalorder %s205, %s221
    %p223 = scmp.eq.s32.totalorder %s20, 0
    %p224 = por %p222, %p223
    %s225 = ssub.s32 %s21, %s40
    %s226 = ssub.s32 %s22, %s36
    %s227 = sor.u32 %s225, %s226
    %p228 = scmp.eq.s32.totalorder %s227, 0
    %s230 = sadd.s32 %s229, 1
    %s231 = scalar_select %p228, %s229, %s230
    %p234 = pneg %p228
    %p235 = scmp.eq.s32.totalorder %s14, 15
    %p236 = por %p234, %p235
    %p237 = scmp.ne.s32.totalorder %s229, %s232
    %p238 = scmp.eq.s32.totalorder %s14, 0
    %p239 = por %p237, %p238
    %p240 = scmp.ne.s32.totalorder %s229, %s232
    %p241 = scmp.eq.s32.totalorder %s19, 15
    %p242 = por %p240, %p241
    %p243 = scmp.ne.s32.totalorder %s232, %s233
    %p244 = scmp.eq.s32.totalorder %s19, 0
    %p245 = por %p243, %p244
    %p246 = scmp.ne.s32.totalorder %s232, %s233
    %p247 = scmp.eq.s32.totalorder %s20, 15
    %p248 = por %p246, %p247
    %p250 = scmp.ne.s32.totalorder %s233, %s249
    %p251 = scmp.eq.s32.totalorder %s20, 0
    %p252 = por %p250, %p251
    %s253 = ssub.s32 %s21, %s40
    %s254 = ssub.s32 %s22, %s36
    %s255 = sor.u32 %s253, %s254
    %p256 = scmp.eq.s32.totalorder %s255, 0
    %s258 = sadd.s32 %s257, 1
    %s259 = scalar_select %p256, %s257, %s258
    %p262 = pneg %p256
    %p263 = scmp.eq.s32.totalorder %s14, 15
    %p264 = por %p262, %p263
    %p265 = scmp.ne.s32.totalorder %s257, %s260
    %p266 = scmp.eq.s32.totalorder %s14, 0
    %p267 = por %p265, %p266
    %p268 = scmp.ne.s32.totalorder %s257, %s260
    %p269 = scmp.eq.s32.totalorder %s19, 15
    %p270 = por %p268, %p269
    %p271 = scmp.ne.s32.totalorder %s260, %s261
    %p272 = scmp.eq.s32.totalorder %s19, 0
    %p273 = por %p271, %p272
    %p274 = scmp.ne.s32.totalorder %s260, %s261
    %p275 = scmp.eq.s32.totalorder %s20, 15
    %p276 = por %p274, %p275
    %p278 = scmp.ne.s32.totalorder %s261, %s277
    %p279 = scmp.eq.s32.totalorder %s20, 0
    %p280 = por %p278, %p279
    %p281 = scmp.le.s32.totalorder 1, %s14
    %p282 = scmp.lt.s32.totalorder %s14, 17
    %p283 = pnand %p281, %p282
    %p284 = pneg %p283
    // Predicated region
    $region9: #{encoder_forward.4} parent=5 // pred_check
      _
    $region10: #{encoder_forward.4} parent=5 // pred_check_branch
      %286 = sbr.rel (%p283) target = $region12
    $region11: #{encoder_forward.4} parent=5 // pred_region
      %s287 = ssub.s32 %s14, 1
    $region12: #{encoder_forward.4} parent=5 // pred_fallthru
      _
    %p288 = scmp.lt.s32.totalorder %s14, 16
    // Predicated region
    $region13: #{encoder_forward.4} parent=5 // pred_check
      %p289 = pneg %p288
    $region14: #{encoder_forward.4} parent=5 // pred_check_branch
      %291 = sbr.rel (%p289) target = $region16
    $region15: #{encoder_forward.4} parent=5 // pred_region
      // Predicated region
      $region17: #{encoder_forward.4} parent=15 // pred_check
        %p292 = pneg %p67
      $region18: #{encoder_forward.4} parent=15 // pred_check_branch
        %294 = sbr.rel (%p292) target = $region20
      $region19: #{encoder_forward.4} parent=15 // pred_region
        %s295 = smul.u32 %s21, 3
        %s296 = smul.u32 %s21, 2
        %s297 = ssub.s32 1, %s296
        %s298 = smul.u32 %s297, %s23
        %s299 = sadd.s32 %s295, %s298
        %p300 = scmp.lt.s32.totalorder %s21, 1
        %s301 = scalar_select %p300, %s21, 1
        %p302 = scmp.lt.s32.totalorder %s22, 1
        %s303 = scalar_select %p302, %s22, 1
        %p304 = scmp.lt.s32.totalorder %s299, 3
        %s305 = scalar_select %p304, %s299, 3
        %s306 = smul.addr %s305, 8
        %s307 = smul.addr %s303, 32
        %s308 = sadd.s32 %s306, %s307
        %s309 = smul.addr %s301, 64
        %s310 = sadd.s32 %s308, %s309
        %s311 = smul.addr %s310, 4
        %s312 = scalar_lea.vmem %s0, %s311
        %s313 = smul.u32 %s21, 3
        %s314 = smul.u32 %s21, 2
        %s315 = ssub.s32 1, %s314
        %s316 = smul.u32 %s315, %s23
        %s317 = sadd.s32 %s313, %s316
      $region20: #{encoder_forward.4} parent=15 // pred_fallthru
        _
      // Predicated region
      $region21: #{encoder_forward.4} parent=15 // pred_check
        %p318 = pneg %p93
      $region22: #{encoder_forward.4} parent=15 // pred_check_branch
        %320 = sbr.rel (%p318) target = $region24
      $region23: #{encoder_forward.4} parent=15 // pred_region
        %p321 = scmp.lt.s32.totalorder %s21, 1
        %s322 = scalar_select %p321, %s21, 1
        %s323 = smul.addr %s322, 9
        %s324 = smul.addr %s323, 4
        %s325 = scalar_lea.vmem %s1, %s324
      $region24: #{encoder_forward.4} parent=15 // pred_fallthru
        _
      // Predicated region
      $region25: #{encoder_forward.4} parent=15 // pred_check
        %p326 = pneg %p119
      $region26: #{encoder_forward.4} parent=15 // pred_check_branch
        %328 = sbr.rel (%p326) target = $region28
      $region27: #{encoder_forward.4} parent=15 // pred_region
        %p329 = scmp.lt.s32.totalorder %s21, 1
        %s330 = scalar_select %p329, %s21, 1
        %s331 = smul.addr %s330, 8
        %s332 = smul.addr %s331, 8
        %s333 = scalar_lea.vmem %s2, %s332
      $region28: #{encoder_forward.4} parent=15 // pred_fallthru
        _
      // Predicated region
      $region29: #{encoder_forward.4} parent=15 // pred_check
        %p334 = pneg %p145
      $region30: #{encoder_forward.4} parent=15 // pred_check_branch
        %336 = sbr.rel (%p334) target = $region32
      $region31: #{encoder_forward.4} parent=15 // pred_region
        %p337 = scmp.lt.s32.totalorder %s21, 1
        %s338 = scalar_select %p337, %s21, 1
        %s339 = smul.addr %s338, 8
        %s340 = smul.addr %s339, 8
        %s341 = scalar_lea.vmem %s3, %s340
      $region32: #{encoder_forward.4} parent=15 // pred_fallthru
        _
      // Predicated region
      $region33: #{encoder_forward.4} parent=15 // pred_check
        %p342 = pneg %p171
      $region34: #{encoder_forward.4} parent=15 // pred_check_branch
        %344 = sbr.rel (%p342) target = $region36
      $region35: #{encoder_forward.4} parent=15 // pred_region
        %p345 = scmp.lt.s32.totalorder %s21, 1
        %s346 = scalar_select %p345, %s21, 1
        %s347 = smul.addr %s346, 8
        %s348 = smul.addr %s347, 8
        %s349 = scalar_lea.vmem %s4, %s348
      $region36: #{encoder_forward.4} parent=15 // pred_fallthru
        _
    $region16: #{encoder_forward.4} parent=5 // pred_fallthru
      _
    %p350 = scmp.le.s32.totalorder 1, %s14
    %p351 = scmp.lt.s32.totalorder %s14, 17
    %p352 = pnand %p350, %p351
    %p353 = pneg %p352
    // Predicated region
    $region37: #{encoder_forward.4} parent=5 // pred_check
      _
    $region38: #{encoder_forward.4} parent=5 // pred_check_branch
      %355 = sbr.rel (%p352) target = $region40
    $region39: #{encoder_forward.4} parent=5 // pred_region
      %s356 = ssub.s32 %s14, 1
      %s357 = smul.u32 %s24, 3
      %s358 = smul.u32 %s24, 2
      %s359 = ssub.s32 1, %s358
      %s360 = smul.u32 %s359, %s26
      %s361 = sadd.s32 %s357, %s360
      %p362 = scmp.lt.s32.totalorder %s24, 1
      %s363 = scalar_select %p362, %s24, 1
      %p364 = scmp.lt.s32.totalorder %s25, 1
      %s365 = scalar_select %p364, %s25, 1
      %p366 = scmp.lt.s32.totalorder %s361, 3
      %s367 = scalar_select %p366, %s361, 3
      %s368 = smul.addr %s367, 8
      %s369 = smul.addr %s365, 32
      %s370 = sadd.s32 %s368, %s369
      %s371 = smul.addr %s363, 64
      %s372 = sadd.s32 %s370, %s371
      %s373 = smul.addr %s372, 4
      %s374 = scalar_lea.vmem %s0, %s373
      %p375 = pneg %p73
      %p376 = pneg %p70
      %p377 = scmp.lt.s32.totalorder %s24, 1
      %s378 = scalar_select %p377, %s24, 1
      %s379 = smul.addr %s378, 9
      %s380 = smul.addr %s379, 4
      %s381 = scalar_lea.vmem %s1, %s380
      %p382 = pneg %p99
      %p383 = pneg %p96
      %p384 = scmp.lt.s32.totalorder %s24, 1
      %s385 = scalar_select %p384, %s24, 1
      %s386 = smul.addr %s385, 8
      %s387 = smul.addr %s386, 8
      %s388 = scalar_lea.vmem %s2, %s387
      %p389 = pneg %p125
      %p390 = pneg %p122
      %p391 = scmp.lt.s32.totalorder %s24, 1
      %s392 = scalar_select %p391, %s24, 1
      %s393 = smul.addr %s392, 8
      %s394 = smul.addr %s393, 8
      %s395 = scalar_lea.vmem %s3, %s394
      %p396 = pneg %p151
      %p397 = pneg %p148
      %p398 = scmp.lt.s32.totalorder %s24, 1
      %s399 = scalar_select %p398, %s24, 1
      %s400 = smul.addr %s399, 8
      %s401 = smul.addr %s400, 8
      %s402 = scalar_lea.vmem %s4, %s401
      %p403 = pneg %p177
      %p404 = pneg %p174
      %p405 = pneg %p217
      %p406 = pneg %p214
      %s407 = smul.u32 %s24, 3
      %s408 = smul.u32 %s24, 2
      %s409 = ssub.s32 1, %s408
      %s410 = smul.u32 %s409, %s26
      %s411 = sadd.s32 %s407, %s410
      %p412 = scmp.lt.s32.totalorder %s24, 1
      %s413 = scalar_select %p412, %s24, 1
      %p414 = scmp.lt.s32.totalorder %s25, 1
      %s415 = scalar_select %p414, %s25, 1
      %p416 = scmp.lt.s32.totalorder %s411, 3
      %s417 = scalar_select %p416, %s411, 3
      %s418 = smul.addr %s417, 8
      %s419 = smul.addr %s415, 32
      %s420 = sadd.s32 %s418, %s419
      %s421 = smul.addr %s413, 64
      %s422 = sadd.s32 %s420, %s421
      %s423 = smul.addr %s422, 8
      %s424 = scalar_lea.vmem %s5, %s423
      %p425 = pneg %p245
      %p426 = pneg %p242
      %p427 = scmp.lt.s32.totalorder %s24, 1
      %s428 = scalar_select %p427, %s24, 1
      %p429 = scmp.lt.s32.totalorder %s25, 1
      %s430 = scalar_select %p429, %s25, 1
      %s431 = smul.addr %s430, 8
      %s432 = smul.addr %s428, 16
      %s433 = sadd.s32 %s431, %s432
      %s434 = smul.addr %s433, 8
      %s435 = scalar_lea.vmem %s6, %s434
      %p436 = pneg %p273
      %p437 = pneg %p270
      %p438 = scmp.lt.s32.totalorder %s24, 1
      %s439 = scalar_select %p438, %s24, 1
      %p440 = scmp.lt.s32.totalorder %s25, 1
      %s441 = scalar_select %p440, %s25, 1
      %s442 = smul.addr %s441, 8
      %s443 = smul.addr %s439, 16
      %s444 = sadd.s32 %s442, %s443
      %s445 = smul.addr %s444, 8
      %s446 = scalar_lea.vmem %s7, %s445
      %s447 = smul.u32 %s24, 3
      %s448 = smul.u32 %s24, 2
      %s449 = ssub.s32 1, %s448
      %s450 = smul.u32 %s449, %s26
      %s451 = sadd.s32 %s447, %s450
      %p452 = scmp.lt.s32.totalorder %s24, 1
      %s453 = scalar_select %p452, %s24, 1
      %p454 = scmp.lt.s32.totalorder %s25, 1
      %s455 = scalar_select %p454, %s25, 1
      %p456 = scmp.lt.s32.totalorder %s451, 3
      %s457 = scalar_select %p456, %s451, 3
      %s458 = smul.addr %s457, 8
      %s459 = smul.addr %s455, 32
      %s460 = sadd.s32 %s458, %s459
      %s461 = smul.addr %s453, 64
      %s462 = sadd.s32 %s460, %s461
      %s463 = smul.addr %s462, 4
      %s464 = scalar_lea.vmem %s0, %s463
      %s465 = smul.u32 %s24, 3
      %s466 = smul.u32 %s24, 2
      %s467 = ssub.s32 1, %s466
      %s468 = smul.u32 %s467, %s26
      %s469 = sadd.s32 %s465, %s468
      %p470 = scmp.lt.s32.totalorder %s24, 1
      %s471 = scalar_select %p470, %s24, 1
      %s472 = smul.addr %s471, 9
      %s473 = smul.addr %s472, 4
      %s474 = scalar_lea.vmem %s1, %s473
      %p475 = scmp.lt.s32.totalorder %s24, 1
      %s476 = scalar_select %p475, %s24, 1
      %s477 = smul.addr %s476, 8
      %s478 = smul.addr %s477, 8
      %s479 = scalar_lea.vmem %s2, %s478
      %p480 = scmp.lt.s32.totalorder %s24, 1
      %s481 = scalar_select %p480, %s24, 1
      %s482 = smul.addr %s481, 8
      %s483 = smul.addr %s482, 8
      %s484 = scalar_lea.vmem %s3, %s483
      %p485 = scmp.lt.s32.totalorder %s24, 1
      %s486 = scalar_select %p485, %s24, 1
      %s487 = smul.addr %s486, 8
      %s488 = smul.addr %s487, 8
      %s489 = scalar_lea.vmem %s4, %s488
      %s490 = smul.u32 %s24, 3
      %s491 = smul.u32 %s24, 2
      %s492 = ssub.s32 1, %s491
      %s493 = smul.u32 %s492, %s26
      %s494 = sadd.s32 %s490, %s493
      %p495 = scmp.lt.s32.totalorder %s24, 1
      %s496 = scalar_select %p495, %s24, 1
      %p497 = scmp.lt.s32.totalorder %s25, 1
      %s498 = scalar_select %p497, %s25, 1
      %p499 = scmp.lt.s32.totalorder %s494, 3
      %s500 = scalar_select %p499, %s494, 3
      %s501 = smul.addr %s500, 8
      %s502 = smul.addr %s498, 32
      %s503 = sadd.s32 %s501, %s502
      %s504 = smul.addr %s496, 64
      %s505 = sadd.s32 %s503, %s504
      %s506 = smul.addr %s505, 8
      %s507 = scalar_lea.vmem %s5, %s506
      %s508 = smul.u32 %s24, 3
      %s509 = smul.u32 %s24, 2
      %s510 = ssub.s32 1, %s509
      %s511 = smul.u32 %s510, %s26
      %s512 = sadd.s32 %s508, %s511
      %p513 = scmp.lt.s32.totalorder %s24, 1
      %s514 = scalar_select %p513, %s24, 1
      %p515 = scmp.lt.s32.totalorder %s25, 1
      %s516 = scalar_select %p515, %s25, 1
      %s517 = smul.addr %s516, 8
      %s518 = smul.addr %s514, 16
      %s519 = sadd.s32 %s517, %s518
      %s520 = smul.addr %s519, 8
      %s521 = scalar_lea.vmem %s6, %s520
      %p522 = scmp.lt.s32.totalorder %s24, 1
      %s523 = scalar_select %p522, %s24, 1
      %p524 = scmp.lt.s32.totalorder %s25, 1
      %s525 = scalar_select %p524, %s25, 1
      %s526 = smul.addr %s525, 8
      %s527 = smul.addr %s523, 16
      %s528 = sadd.s32 %s526, %s527
      %s529 = smul.addr %s528, 8
      %s530 = scalar_lea.vmem %s7, %s529
      %p532 = scmp.eq.s32.totalorder %s26, 0
      // Predicated region
      $region41: #{encoder_forward.4} parent=39 // pred_check
        %p533 = pneg %p532
      $region42: #{encoder_forward.4} parent=39 // pred_check_branch
        %535 = sbr.rel (%p533) target = $region44
      $region43: #{encoder_forward.4} parent=39 // pred_region
        %vm536 = vcmask 64512
        %537 = vst.msk [vmem:[#allocation2] sm:$0xff] %vm536, 0.0
        %vm538 = vcmask 58368
        %539 = vst.msk [vmem:[#allocation2 + $0x8] sm:$0x3] %vm538, 0.0
        %540 = vst.msk [vmem:[#allocation2 + $0x10] sm:$0xff] %vm536, 0.0
        %541 = vst.msk [vmem:[#allocation2 + $0x18] sm:$0x3] %vm538, 0.0
        %542 = vst.msk [vmem:[#allocation2 + $0x20] sm:$0xff] %vm536, 0.0
        %543 = vst.msk [vmem:[#allocation2 + $0x28] sm:$0x3] %vm538, 0.0
        %544 = vst.msk [vmem:[#allocation2 + $0x30] sm:$0xff] %vm536, 0.0
        %545 = vst.msk [vmem:[#allocation2 + $0x38] sm:$0x3] %vm538, 0.0
        %546 = vst.msk [vmem:[#allocation2 + $0x40] sm:$0xff] %vm536, 0.0
        %547 = vst.msk [vmem:[#allocation2 + $0x48] sm:$0x3] %vm538, 0.0
        %548 = vst.msk [vmem:[#allocation2 + $0x50] sm:$0xff] %vm536, 0.0
        %549 = vst.msk [vmem:[#allocation2 + $0x58] sm:$0x3] %vm538, 0.0
        %550 = vst.msk [vmem:[#allocation2 + $0x60] sm:$0xff] %vm536, 0.0
        %551 = vst.msk [vmem:[#allocation2 + $0x68] sm:$0x3] %vm538, 0.0
        %552 = vst.msk [vmem:[#allocation2 + $0x70] sm:$0xff] %vm536, 0.0
        %553 = vst.msk [vmem:[#allocation2 + $0x78] sm:$0x3] %vm538, 0.0
        %554 = vst.msk [vmem:[#allocation2 + $0x80] sm:$0xff] %vm536, 0.0
        %555 = vst.msk [vmem:[#allocation2 + $0x88] sm:$0x3] %vm538, 0.0
        %556 = vst.msk [vmem:[#allocation2 + $0x90] sm:$0xff] %vm536, 0.0
        %557 = vst.msk [vmem:[#allocation2 + $0x98] sm:$0x3] %vm538, 0.0
        %558 = vst.msk [vmem:[#allocation3] sm:$0xff] %vm536, 0.0
        %559 = vst.msk [vmem:[#allocation3 + $0x8] sm:$0xff] %vm536, 0.0
        %560 = vst.msk [vmem:[#allocation3 + $0x10] sm:$0xff] %vm536, 0.0
        %561 = vst.msk [vmem:[#allocation3 + $0x18] sm:$0xff] %vm536, 0.0
        %562 = vst.msk [vmem:[#allocation3 + $0x20] sm:$0xff] %vm536, 0.0
        %563 = vst.msk [vmem:[#allocation3 + $0x28] sm:$0xff] %vm536, 0.0
        %564 = vst.msk [vmem:[#allocation3 + $0x30] sm:$0xff] %vm536, 0.0
        %565 = vst.msk [vmem:[#allocation3 + $0x38] sm:$0xff] %vm536, 0.0
      $region44: #{encoder_forward.4} parent=39 // pred_fallthru
        _
      %v566 = vld [vmem:[#allocation2] sm:$0xff]
      %v567 = vld [vmem:[#allocation2 + $0x8] sm:$0x3]
      %v568 = vld [vmem:[#allocation2 + $0x10] sm:$0xff]
      %v569 = vld [vmem:[#allocation2 + $0x18] sm:$0x3]
      %v570 = vld [vmem:[#allocation2 + $0x20] sm:$0xff]
      %v571 = vld [vmem:[#allocation2 + $0x28] sm:$0x3]
      %v572 = vld [vmem:[#allocation2 + $0x30] sm:$0xff]
      %v573 = vld [vmem:[#allocation2 + $0x38] sm:$0x3]
      %v574 = vld [vmem:[#allocation2 + $0x40] sm:$0xff]
      %v575 = vld [vmem:[#allocation2 + $0x48] sm:$0x3]
      %v576 = vld [vmem:[#allocation2 + $0x50] sm:$0xff]
      %v577 = vld [vmem:[#allocation2 + $0x58] sm:$0x3]
      %v578 = vld [vmem:[#allocation2 + $0x60] sm:$0xff]
      %v579 = vld [vmem:[#allocation2 + $0x68] sm:$0x3]
      %v580 = vld [vmem:[#allocation2 + $0x70] sm:$0xff]
      %v581 = vld [vmem:[#allocation2 + $0x78] sm:$0x3]
      %v582 = vld [vmem:[#allocation2 + $0x80] sm:$0xff]
      %v583 = vld [vmem:[#allocation2 + $0x88] sm:$0x3]
      %v584 = vld [vmem:[#allocation2 + $0x90] sm:$0xff]
      %v585 = vld [vmem:[#allocation2 + $0x98] sm:$0x3]
      %vm602 = vcmask 1046528
      %v603 = vrot.slane %v566, 1
      %v604 = vrot.slane %v567, 1
      %v605 = vsel %vm602, %v603, %v604
      %v606 = vrot.slane %v568, 1
      %v607 = vrot.slane %v569, 1
      %v608 = vsel %vm602, %v606, %v607
      %v609 = vrot.slane %v570, 1
      %v610 = vrot.slane %v571, 1
      %v611 = vsel %vm602, %v609, %v610
      %v612 = vrot.slane %v572, 1
      %v613 = vrot.slane %v573, 1
      %v614 = vsel %vm602, %v612, %v613
      %v615 = vrot.slane %v574, 1
      %v616 = vrot.slane %v575, 1
      %v617 = vsel %vm602, %v615, %v616
      %v618 = vrot.slane %v576, 1
      %v619 = vrot.slane %v577, 1
      %v620 = vsel %vm602, %v618, %v619
      %v621 = vrot.slane %v578, 1
      %v622 = vrot.slane %v579, 1
      %v623 = vsel %vm602, %v621, %v622
      %v624 = vrot.slane %v580, 1
      %v625 = vrot.slane %v581, 1
      %v626 = vsel %vm602, %v624, %v625
      %vm627 = vcmask 1045504
      %v628 = vrot.slane %v566, 2
      %v629 = vrot.slane %v567, 2
      %v630 = vsel %vm627, %v628, %v629
      %v631 = vrot.slane %v568, 2
      %v632 = vrot.slane %v569, 2
      %v633 = vsel %vm627, %v631, %v632
      %v634 = vrot.slane %v570, 2
      %v635 = vrot.slane %v571, 2
      %v636 = vsel %vm627, %v634, %v635
      %v637 = vrot.slane %v572, 2
      %v638 = vrot.slane %v573, 2
      %v639 = vsel %vm627, %v637, %v638
      %v640 = vrot.slane %v574, 2
      %v641 = vrot.slane %v575, 2
      %v642 = vsel %vm627, %v640, %v641
      %v643 = vrot.slane %v576, 2
      %v644 = vrot.slane %v577, 2
      %v645 = vsel %vm627, %v643, %v644
      %v646 = vrot.slane %v578, 2
      %v647 = vrot.slane %v579, 2
      %v648 = vsel %vm627, %v646, %v647
      %v649 = vrot.slane %v580, 2
      %v650 = vrot.slane %v581, 2
      %v651 = vsel %vm627, %v649, %v650
      %v654 = vrot.slane %v582, 1
      %v655 = vrot.slane %v583, 1
      %v656 = vsel %vm602, %v654, %v655
      %v657 = vrot.slane %v582, 2
      %v658 = vrot.slane %v583, 2
      %v659 = vsel %vm627, %v657, %v658
      %v662 = vrot.slane %v584, 1
      %v663 = vrot.slane %v585, 1
      %v664 = vsel %vm602, %v662, %v663
      %v665 = vrot.slane %v584, 2
      %v666 = vrot.slane %v585, 2
      %v667 = vsel %vm627, %v665, %v666
      %668 = vrot.lane.b32.xlu0 %v605, 8
      %v669 = vpop.permute.xlu0 %668
      %670 = vrot.lane.b32.xlu0 %v608, 8
      %v671 = vpop.permute.xlu0 %670
      %672 = vrot.lane.b32.xlu0 %v611, 8
      %v673 = vpop.permute.xlu0 %672
      %674 = vrot.lane.b32.xlu0 %v614, 8
      %v675 = vpop.permute.xlu0 %674
      %676 = vrot.lane.b32.xlu0 %v617, 8
      %v677 = vpop.permute.xlu0 %676
      %678 = vrot.lane.b32.xlu0 %v620, 8
      %v679 = vpop.permute.xlu0 %678
      %680 = vrot.lane.b32.xlu0 %v623, 8
      %v681 = vpop.permute.xlu0 %680
      %682 = vrot.lane.b32.xlu0 %v626, 8
      %v683 = vpop.permute.xlu0 %682
      %692 = vrot.lane.b32.xlu0 %v630, 16
      %v693 = vpop.permute.xlu0 %692
      %694 = vrot.lane.b32.xlu0 %v633, 16
      %v695 = vpop.permute.xlu0 %694
      %696 = vrot.lane.b32.xlu0 %v636, 16
      %v697 = vpop.permute.xlu0 %696
      %698 = vrot.lane.b32.xlu0 %v639, 16
      %v699 = vpop.permute.xlu0 %698
      %700 = vrot.lane.b32.xlu0 %v642, 16
      %v701 = vpop.permute.xlu0 %700
      %702 = vrot.lane.b32.xlu0 %v645, 16
      %v703 = vpop.permute.xlu0 %702
      %704 = vrot.lane.b32.xlu0 %v648, 16
      %v705 = vpop.permute.xlu0 %704
      %706 = vrot.lane.b32.xlu0 %v651, 16
      %v707 = vpop.permute.xlu0 %706
      %716 = vrot.lane.b32.xlu0 %v568, 24
      %v717 = vpop.permute.xlu0 %716
      %718 = vrot.lane.b32.xlu0 %v570, 24
      %v719 = vpop.permute.xlu0 %718
      %720 = vrot.lane.b32.xlu0 %v572, 24
      %v721 = vpop.permute.xlu0 %720
      %722 = vrot.lane.b32.xlu0 %v574, 24
      %v723 = vpop.permute.xlu0 %722
      %724 = vrot.lane.b32.xlu0 %v576, 24
      %v725 = vpop.permute.xlu0 %724
      %726 = vrot.lane.b32.xlu0 %v578, 24
      %v727 = vpop.permute.xlu0 %726
      %728 = vrot.lane.b32.xlu0 %v580, 24
      %v729 = vpop.permute.xlu0 %728
      %730 = vrot.lane.b32.xlu0 %v582, 24
      %v731 = vpop.permute.xlu0 %730
      %740 = vrot.lane.b32.xlu0 %v608, 32
      %v741 = vpop.permute.xlu0 %740
      %742 = vrot.lane.b32.xlu0 %v611, 32
      %v743 = vpop.permute.xlu0 %742
      %744 = vrot.lane.b32.xlu0 %v614, 32
      %v745 = vpop.permute.xlu0 %744
      %746 = vrot.lane.b32.xlu0 %v617, 32
      %v747 = vpop.permute.xlu0 %746
      %748 = vrot.lane.b32.xlu0 %v620, 32
      %v749 = vpop.permute.xlu0 %748
      %750 = vrot.lane.b32.xlu0 %v623, 32
      %v751 = vpop.permute.xlu0 %750
      %752 = vrot.lane.b32.xlu0 %v626, 32
      %v753 = vpop.permute.xlu0 %752
      %754 = vrot.lane.b32.xlu0 %v656, 32
      %v755 = vpop.permute.xlu0 %754
      %764 = vrot.lane.b32.xlu0 %v633, 40
      %v765 = vpop.permute.xlu0 %764
      %766 = vrot.lane.b32.xlu0 %v636, 40
      %v767 = vpop.permute.xlu0 %766
      %768 = vrot.lane.b32.xlu0 %v639, 40
      %v769 = vpop.permute.xlu0 %768
      %770 = vrot.lane.b32.xlu0 %v642, 40
      %v771 = vpop.permute.xlu0 %770
      %772 = vrot.lane.b32.xlu0 %v645, 40
      %v773 = vpop.permute.xlu0 %772
      %774 = vrot.lane.b32.xlu0 %v648, 40
      %v775 = vpop.permute.xlu0 %774
      %776 = vrot.lane.b32.xlu0 %v651, 40
      %v777 = vpop.permute.xlu0 %776
      %778 = vrot.lane.b32.xlu0 %v659, 40
      %v779 = vpop.permute.xlu0 %778
      %788 = vrot.lane.b32.xlu0 %v570, 48
      %v789 = vpop.permute.xlu0 %788
      %790 = vrot.lane.b32.xlu0 %v572, 48
      %v791 = vpop.permute.xlu0 %790
      %792 = vrot.lane.b32.xlu0 %v574, 48
      %v793 = vpop.permute.xlu0 %792
      %794 = vrot.lane.b32.xlu0 %v576, 48
      %v795 = vpop.permute.xlu0 %794
      %796 = vrot.lane.b32.xlu0 %v578, 48
      %v797 = vpop.permute.xlu0 %796
      %798 = vrot.lane.b32.xlu0 %v580, 48
      %v799 = vpop.permute.xlu0 %798
      %800 = vrot.lane.b32.xlu0 %v582, 48
      %v801 = vpop.permute.xlu0 %800
      %802 = vrot.lane.b32.xlu0 %v584, 48
      %v803 = vpop.permute.xlu0 %802
      %812 = vrot.lane.b32.xlu0 %v611, 56
      %v813 = vpop.permute.xlu0 %812
      %814 = vrot.lane.b32.xlu0 %v614, 56
      %v815 = vpop.permute.xlu0 %814
      %816 = vrot.lane.b32.xlu0 %v617, 56
      %v817 = vpop.permute.xlu0 %816
      %818 = vrot.lane.b32.xlu0 %v620, 56
      %v819 = vpop.permute.xlu0 %818
      %820 = vrot.lane.b32.xlu0 %v623, 56
      %v821 = vpop.permute.xlu0 %820
      %822 = vrot.lane.b32.xlu0 %v626, 56
      %v823 = vpop.permute.xlu0 %822
      %824 = vrot.lane.b32.xlu0 %v656, 56
      %v825 = vpop.permute.xlu0 %824
      %826 = vrot.lane.b32.xlu0 %v664, 56
      %v827 = vpop.permute.xlu0 %826
      %836 = vrot.lane.b32.xlu0 %v636, 64
      %v837 = vpop.permute.xlu0 %836
      %838 = vrot.lane.b32.xlu0 %v639, 64
      %v839 = vpop.permute.xlu0 %838
      %840 = vrot.lane.b32.xlu0 %v642, 64
      %v841 = vpop.permute.xlu0 %840
      %842 = vrot.lane.b32.xlu0 %v645, 64
      %v843 = vpop.permute.xlu0 %842
      %844 = vrot.lane.b32.xlu0 %v648, 64
      %v845 = vpop.permute.xlu0 %844
      %846 = vrot.lane.b32.xlu0 %v651, 64
      %v847 = vpop.permute.xlu0 %846
      %848 = vrot.lane.b32.xlu0 %v659, 64
      %v849 = vpop.permute.xlu0 %848
      %850 = vrot.lane.b32.xlu0 %v667, 64
      %v851 = vpop.permute.xlu0 %850
      %vm860 = vcmask 64512
      %v861 = vsel %vm860, %v566, %v669
      %v862 = vsel %vm860, %v568, %v671
      %v863 = vsel %vm860, %v570, %v673
      %v864 = vsel %vm860, %v572, %v675
      %v865 = vsel %vm860, %v574, %v677
      %v866 = vsel %vm860, %v576, %v679
      %v867 = vsel %vm860, %v578, %v681
      %v868 = vsel %vm860, %v580, %v683
      %vm869 = vcmask 130048
      %v870 = vsel %vm869, %v861, %v693
      %v871 = vsel %vm869, %v862, %v695
      %v872 = vsel %vm869, %v863, %v697
      %v873 = vsel %vm869, %v864, %v699
      %v874 = vsel %vm869, %v865, %v701
      %v875 = vsel %vm869, %v866, %v703
      %v876 = vsel %vm869, %v867, %v705
      %v877 = vsel %vm869, %v868, %v707
      %vm878 = vcmask 195584
      %v879 = vsel %vm878, %v870, %v717
      %v880 = vsel %vm878, %v871, %v719
      %v881 = vsel %vm878, %v872, %v721
      %v882 = vsel %vm878, %v873, %v723
      %v883 = vsel %vm878, %v874, %v725
      %v884 = vsel %vm878, %v875, %v727
      %v885 = vsel %vm878, %v876, %v729
      %v886 = vsel %vm878, %v877, %v731
      %vm887 = vcmask 261120
      %v888 = vsel %vm887, %v879, %v741
      %v889 = vsel %vm887, %v880, %v743
      %v890 = vsel %vm887, %v881, %v745
      %v891 = vsel %vm887, %v882, %v747
      %v892 = vsel %vm887, %v883, %v749
      %v893 = vsel %vm887, %v884, %v751
      %v894 = vsel %vm887, %v885, %v753
      %v895 = vsel %vm887, %v886, %v755
      %vm896 = vcmask 326656
      %v897 = vsel %vm896, %v888, %v765
      %v898 = vsel %vm896, %v889, %v767
      %v899 = vsel %vm896, %v890, %v769
      %v900 = vsel %vm896, %v891, %v771
      %v901 = vsel %vm896, %v892, %v773
      %v902 = vsel %vm896, %v893, %v775
      %v903 = vsel %vm896, %v894, %v777
      %v904 = vsel %vm896, %v895, %v779
      %vm905 = vcmask 392192
      %v906 = vsel %vm905, %v897, %v789
      %v907 = vsel %vm905, %v898, %v791
      %v908 = vsel %vm905, %v899, %v793
      %v909 = vsel %vm905, %v900, %v795
      %v910 = vsel %vm905, %v901, %v797
      %v911 = vsel %vm905, %v902, %v799
      %v912 = vsel %vm905, %v903, %v801
      %v913 = vsel %vm905, %v904, %v803
      %vm914 = vcmask 457728
      %v915 = vsel %vm914, %v906, %v813
      %v916 = vsel %vm914, %v907, %v815
      %v917 = vsel %vm914, %v908, %v817
      %v918 = vsel %vm914, %v909, %v819
      %v919 = vsel %vm914, %v910, %v821
      %v920 = vsel %vm914, %v911, %v823
      %v921 = vsel %vm914, %v912, %v825
      %v922 = vsel %vm914, %v913, %v827
      %vm923 = vcmask 523264
      %v924 = vsel %vm923, %v915, %v837
      %v925 = vsel %vm923, %v916, %v839
      %v926 = vsel %vm923, %v917, %v841
      %v927 = vsel %vm923, %v918, %v843
      %v928 = vsel %vm923, %v919, %v845
      %v929 = vsel %vm923, %v920, %v847
      %v930 = vsel %vm923, %v921, %v849
      %v931 = vsel %vm923, %v922, %v851
      %v932 = vpack.c.bf16 %v925, %v924
      %v933 = vpack.c.bf16 %v927, %v926
      %v934 = vpack.c.bf16 %v929, %v928
      %v935 = vpack.c.bf16 %v931, %v930
      %v936 = vld [vmem:[%s464] sm:$0xf]
      %v937 = vld [vmem:[%s464 + $0x4] sm:$0xf]
      %v938 = vld [vmem:[%s464 + $0x8] sm:$0xf]
      %v939 = vld [vmem:[%s464 + $0xc] sm:$0xf]
      %v940 = vld [vmem:[%s464 + $0x10] sm:$0xf]
      %v941 = vld [vmem:[%s464 + $0x14] sm:$0xf]
      %v942 = vld [vmem:[%s464 + $0x18] sm:$0xf]
      %v943 = vld [vmem:[%s464 + $0x1c] sm:$0xf]
      %v944 = vunpack.c.l.bf16 %v936
      %v945 = vunpack.c.l.bf16 %v937
      %v946 = vunpack.c.l.bf16 %v938
      %v947 = vunpack.c.l.bf16 %v939
      %v948 = vunpack.c.l.bf16 %v940
      %v949 = vunpack.c.l.bf16 %v941
      %v950 = vunpack.c.l.bf16 %v942
      %v951 = vunpack.c.l.bf16 %v943
      %v952 = vld [vmem:[%s474] sm:$0xf]
      %v953 = vld [vmem:[%s474 + $0x4] sm:$0xf]
      %v954 = vld [vmem:[%s474 + $0x8] sm:$0xf]
      %v955 = vld [vmem:[%s474 + $0xc] sm:$0xf]
      %v956 = vld [vmem:[%s474 + $0x10] sm:$0xf]
      %v957 = vld [vmem:[%s474 + $0x14] sm:$0xf]
      %v958 = vld [vmem:[%s474 + $0x18] sm:$0xf]
      %v959 = vld [vmem:[%s474 + $0x1c] sm:$0xf]
      %v960 = vld [vmem:[%s474 + $0x20] sm:$0xf]
      %v970 = vunpack.c.l.b16 %v952
      %v971 = vunpack.c.l.b16 %v953
      %v972 = vunpack.c.l.b16 %v954
      %v973 = vunpack.c.l.b16 %v955
      %v974 = vunpack.c.l.b16 %v956
      %v975 = vunpack.c.l.b16 %v957
      %v976 = vunpack.c.l.b16 %v958
      %v977 = vunpack.c.l.b16 %v959
      %v978 = vunpack.c.l.b16 %v960
      %v979 = vpack.c.b16 %v971, %v970
      %v980 = vpack.c.b16 %v973, %v972
      %v981 = vpack.c.b16 %v975, %v974
      %v982 = vpack.c.b16 %v977, %v976
      %v983 = vpack.c.b16 %v978, %v978
      %vm988 = vcmask 588800
      %v990 = vsel %vm988, %v932, 0
      %v993 = vsel %vm988, %v933, 0
      %v996 = vsel %vm988, %v934, 0
      %v999 = vsel %vm988, %v935, 0
      %vm1001 = vcmask 1043456
      %v1003 = vsel %vm1001, %v983, 0
      %1005 = vmatprep.subr.bf16.mxu0 0
      %1006 = vmatpush1.bf16.msra.mxu0 %v979
      %1007 = vmatprep.subr.bf16.mxu0 0
      %1008 = vmatpush1.bf16.msra.mxu0 %v980
      %1009 = vmatprep.subr.bf16.mxu0 0
      %1010 = vmatpush1.bf16.msra.mxu0 %v981
      %1011 = vmatprep.subr.bf16.mxu0 0
      %1012 = vmatpush1.bf16.msra.mxu0 %v982
      %1013 = vmatprep.subr.bf16.mxu0 0
      %1014 = vmatpush1.bf16.msra.mxu0 %v1003
      %1015 = vmatprep.subr.bf16.mxu0 0
      %1016 = vmatpush1.bf16.msra.mxu0 0
      %1017 = vmatprep.subr.bf16.mxu0 0
      %1018 = vmatpush1.bf16.msra.mxu0 0
      %1019 = vmatprep.subr.bf16.mxu0 0
      %1020 = vmatpush1.bf16.msra.mxu0 0
      %1021 = vmatprep.subr.bf16.mxu0 0
      %1022 = vmatpush1.bf16.msra.mxu0 0
      %1023 = vmatprep.subr.bf16.mxu0 0
      %1024 = vmatpush1.bf16.msra.mxu0 0
      %1025 = vmatprep.subr.bf16.mxu0 0
      %1026 = vmatpush1.bf16.msra.mxu0 0
      %1027 = vmatprep.subr.bf16.mxu0 0
      %1028 = vmatpush1.bf16.msra.mxu0 0
      %1029 = vmatprep.subr.bf16.mxu0 0
      %1030 = vmatpush1.bf16.msra.mxu0 0
      %1031 = vmatprep.subr.bf16.mxu0 0
      %1032 = vmatpush1.bf16.msra.mxu0 0
      %1033 = vmatprep.subr.bf16.mxu0 0
      %1034 = vmatpush1.bf16.msra.mxu0 0
      %1035 = vmatprep.subr.bf16.mxu0 0
      %1036 = vmatpush1.bf16.msra.mxu0 0
      %1037 = vmatprep.mubr.bf16.mxu0 0
      %1038 = vmatmul.mubr.bf16.gmra.mrb[0].mxu0 %v990
      %v1039 = vpop.f32.mrb[0].mxu0
      %v1040 = vadd.f32 0.0, %v1039
      %v1041 = vpop.f32.mrb[0].mxu0
      %v1042 = vpop.f32.mrb[0].mxu0
      %v1043 = vadd.f32 0.0, %v1042
      %v1044 = vpop.f32.mrb[0].mxu0
      %1045 = vmatprep.mubr.bf16.mxu0 0
      %1046 = vmatmul.mubr.bf16.gmra.mrb[0].mxu0 %v993
      %v1047 = vpop.f32.mrb[0].mxu0
      %v1048 = vadd.f32 0.0, %v1047
      %v1049 = vpop.f32.mrb[0].mxu0
      %v1050 = vpop.f32.mrb[0].mxu0
      %v1051 = vadd.f32 0.0, %v1050
      %v1052 = vpop.f32.mrb[0].mxu0
      %1053 = vmatprep.mubr.bf16.mxu0 0
      %1054 = vmatmul.mubr.bf16.gmra.mrb[0].mxu0 %v996
      %v1055 = vpop.f32.mrb[0].mxu0
      %v1056 = vadd.f32 0.0, %v1055
      %v1057 = vpop.f32.mrb[0].mxu0
      %v1058 = vpop.f32.mrb[0].mxu0
      %v1059 = vadd.f32 0.0, %v1058
      %v1060 = vpop.f32.mrb[0].mxu0
      %1061 = vmatprep.mubr.bf16.mxu0 0
      %1062 = vmatmul.mubr.bf16.gmra.mrb[0].mxu0 %v999
      %v1063 = vpop.f32.mrb[0].mxu0
      %v1064 = vadd.f32 0.0, %v1063
      %v1065 = vpop.f32.mrb[0].mxu0
      %v1066 = vpop.f32.mrb[0].mxu0
      %v1067 = vadd.f32 0.0, %v1066
      %v1068 = vpop.f32.mrb[0].mxu0
      %1069 = vdwg.mxu0
      %v1070 = vadd.f32 %v944, %v1040
      %v1071 = vadd.f32 %v945, %v1043
      %v1072 = vadd.f32 %v946, %v1048
      %v1073 = vadd.f32 %v947, %v1051
      %v1074 = vadd.f32 %v948, %v1056
      %v1075 = vadd.f32 %v949, %v1059
      %v1076 = vadd.f32 %v950, %v1064
      %v1077 = vadd.f32 %v951, %v1067
      %v1078 = vld [vmem:[#allocation3] sm:$0xff]
      %v1079 = vld [vmem:[#allocation3 + $0x8] sm:$0xff]
      %v1080 = vld [vmem:[#allocation3 + $0x10] sm:$0xff]
      %v1081 = vld [vmem:[#allocation3 + $0x18] sm:$0xff]
      %v1082 = vld [vmem:[#allocation3 + $0x20] sm:$0xff]
      %v1083 = vld [vmem:[#allocation3 + $0x28] sm:$0xff]
      %v1084 = vld [vmem:[#allocation3 + $0x30] sm:$0xff]
      %v1085 = vld [vmem:[#allocation3 + $0x38] sm:$0xff]
      %v1086 = vld [vmem:[%s479] sm:$0xff]
      %v1087 = vld [vmem:[%s479 + $0x8] sm:$0xff]
      %v1088 = vld [vmem:[%s479 + $0x10] sm:$0xff]
      %v1089 = vld [vmem:[%s479 + $0x18] sm:$0xff]
      %v1090 = vld [vmem:[%s479 + $0x20] sm:$0xff]
      %v1091 = vld [vmem:[%s479 + $0x28] sm:$0xff]
      %v1092 = vld [vmem:[%s479 + $0x30] sm:$0xff]
      %v1093 = vld [vmem:[%s479 + $0x38] sm:$0xff]
      %v1094 = vmul.f32 %v1086, %v1078
      %v1095 = vmul.f32 %v1087, %v1079
      %v1096 = vmul.f32 %v1088, %v1080
      %v1097 = vmul.f32 %v1089, %v1081
      %v1098 = vmul.f32 %v1090, %v1082
      %v1099 = vmul.f32 %v1091, %v1083
      %v1100 = vmul.f32 %v1092, %v1084
      %v1101 = vmul.f32 %v1093, %v1085
      %v1102 = vadd.f32 %v1070, %v1094
      %v1103 = vadd.f32 %v1071, %v1095
      %v1104 = vadd.f32 %v1072, %v1096
      %v1105 = vadd.f32 %v1073, %v1097
      %v1106 = vadd.f32 %v1074, %v1098
      %v1107 = vadd.f32 %v1075, %v1099
      %v1108 = vadd.f32 %v1076, %v1100
      %v1109 = vadd.f32 %v1077, %v1101
      %v1110 = vxor.u32 %v1102, 2147483648
      %v1111 = vxor.u32 %v1103, 2147483648
      %v1112 = vxor.u32 %v1104, 2147483648
      %v1113 = vxor.u32 %v1105, 2147483648
      %v1114 = vxor.u32 %v1106, 2147483648
      %v1115 = vxor.u32 %v1107, 2147483648
      %v1116 = vxor.u32 %v1108, 2147483648
      %v1117 = vxor.u32 %v1109, 2147483648
      %v1118 = vmul.f32 %v1110, 1.442695
      %v1119 = vpow.pop %v1118
      %v1120 = vmul.f32 %v1111, 1.442695
      %v1121 = vpow.pop %v1120
      %v1122 = vmul.f32 %v1112, 1.442695
      %v1123 = vpow.pop %v1122
      %v1124 = vmul.f32 %v1113, 1.442695
      %v1125 = vpow.pop %v1124
      %v1126 = vmul.f32 %v1114, 1.442695
      %v1127 = vpow.pop %v1126
      %v1128 = vmul.f32 %v1115, 1.442695
      %v1129 = vpow.pop %v1128
      %v1130 = vmul.f32 %v1116, 1.442695
      %v1131 = vpow.pop %v1130
      %v1132 = vmul.f32 %v1117, 1.442695
      %v1133 = vpow.pop %v1132
      %v1134 = vadd.f32 %v1119, 1.0
      %v1135 = vadd.f32 %v1121, 1.0
      %v1136 = vadd.f32 %v1123, 1.0
      %v1137 = vadd.f32 %v1125, 1.0
      %v1138 = vadd.f32 %v1127, 1.0
      %v1139 = vadd.f32 %v1129, 1.0
      %v1140 = vadd.f32 %v1131, 1.0
      %v1141 = vadd.f32 %v1133, 1.0
      %v1142 = vrcp.pop %v1134
      %v1143 = vmul.f32 1.0, %v1142
      %v1144 = vrcp.pop %v1135
      %v1145 = vmul.f32 1.0, %v1144
      %v1146 = vrcp.pop %v1136
      %v1147 = vmul.f32 1.0, %v1146
      %v1148 = vrcp.pop %v1137
      %v1149 = vmul.f32 1.0, %v1148
      %v1150 = vrcp.pop %v1138
      %v1151 = vmul.f32 1.0, %v1150
      %v1152 = vrcp.pop %v1139
      %v1153 = vmul.f32 1.0, %v1152
      %v1154 = vrcp.pop %v1140
      %v1155 = vmul.f32 1.0, %v1154
      %v1156 = vrcp.pop %v1141
      %v1157 = vmul.f32 1.0, %v1156
      %v1158 = vld [vmem:[%s484] sm:$0xff]
      %v1159 = vld [vmem:[%s484 + $0x8] sm:$0xff]
      %v1160 = vld [vmem:[%s484 + $0x10] sm:$0xff]
      %v1161 = vld [vmem:[%s484 + $0x18] sm:$0xff]
      %v1162 = vld [vmem:[%s484 + $0x20] sm:$0xff]
      %v1163 = vld [vmem:[%s484 + $0x28] sm:$0xff]
      %v1164 = vld [vmem:[%s484 + $0x30] sm:$0xff]
      %v1165 = vld [vmem:[%s484 + $0x38] sm:$0xff]
      %v1166 = vmul.f32 %v1158, %v1078
      %v1167 = vmul.f32 %v1159, %v1079
      %v1168 = vmul.f32 %v1160, %v1080
      %v1169 = vmul.f32 %v1161, %v1081
      %v1170 = vmul.f32 %v1162, %v1082
      %v1171 = vmul.f32 %v1163, %v1083
      %v1172 = vmul.f32 %v1164, %v1084
      %v1173 = vmul.f32 %v1165, %v1085
      %1182 = vrot.lane.b32.xlu0 %v1166, 8
      %v1183 = vpop.permute.xlu0 %1182
      %1184 = vrot.lane.b32.xlu0 %v1167, 8
      %v1185 = vpop.permute.xlu0 %1184
      %1186 = vrot.lane.b32.xlu0 %v1168, 8
      %v1187 = vpop.permute.xlu0 %1186
      %1188 = vrot.lane.b32.xlu0 %v1169, 8
      %v1189 = vpop.permute.xlu0 %1188
      %1190 = vrot.lane.b32.xlu0 %v1170, 8
      %v1191 = vpop.permute.xlu0 %1190
      %1192 = vrot.lane.b32.xlu0 %v1171, 8
      %v1193 = vpop.permute.xlu0 %1192
      %1194 = vrot.lane.b32.xlu0 %v1172, 8
      %v1195 = vpop.permute.xlu0 %1194
      %1196 = vrot.lane.b32.xlu0 %v1173, 8
      %v1197 = vpop.permute.xlu0 %1196
      %v1206 = vadd.f32 %v1070, %v1183
      %v1207 = vadd.f32 %v1071, %v1185
      %v1208 = vadd.f32 %v1072, %v1187
      %v1209 = vadd.f32 %v1073, %v1189
      %v1210 = vadd.f32 %v1074, %v1191
      %v1211 = vadd.f32 %v1075, %v1193
      %v1212 = vadd.f32 %v1076, %v1195
      %v1213 = vadd.f32 %v1077, %v1197
      %v1214 = vxor.u32 %v1206, 2147483648
      %v1215 = vxor.u32 %v1207, 2147483648
      %v1216 = vxor.u32 %v1208, 2147483648
      %v1217 = vxor.u32 %v1209, 2147483648
      %v1218 = vxor.u32 %v1210, 2147483648
      %v1219 = vxor.u32 %v1211, 2147483648
      %v1220 = vxor.u32 %v1212, 2147483648
      %v1221 = vxor.u32 %v1213, 2147483648
      %v1222 = vmul.f32 %v1214, 1.442695
      %v1223 = vpow.pop %v1222
      %v1224 = vmul.f32 %v1215, 1.442695
      %v1225 = vpow.pop %v1224
      %v1226 = vmul.f32 %v1216, 1.442695
      %v1227 = vpow.pop %v1226
      %v1228 = vmul.f32 %v1217, 1.442695
      %v1229 = vpow.pop %v1228
      %v1230 = vmul.f32 %v1218, 1.442695
      %v1231 = vpow.pop %v1230
      %v1232 = vmul.f32 %v1219, 1.442695
      %v1233 = vpow.pop %v1232
      %v1234 = vmul.f32 %v1220, 1.442695
      %v1235 = vpow.pop %v1234
      %v1236 = vmul.f32 %v1221, 1.442695
      %v1237 = vpow.pop %v1236
      %v1238 = vadd.f32 %v1223, 1.0
      %v1239 = vadd.f32 %v1225, 1.0
      %v1240 = vadd.f32 %v1227, 1.0
      %v1241 = vadd.f32 %v1229, 1.0
      %v1242 = vadd.f32 %v1231, 1.0
      %v1243 = vadd.f32 %v1233, 1.0
      %v1244 = vadd.f32 %v1235, 1.0
      %v1245 = vadd.f32 %v1237, 1.0
      %v1246 = vrcp.pop %v1238
      %v1247 = vmul.f32 1.0, %v1246
      %v1248 = vrcp.pop %v1239
      %v1249 = vmul.f32 1.0, %v1248
      %v1250 = vrcp.pop %v1240
      %v1251 = vmul.f32 1.0, %v1250
      %v1252 = vrcp.pop %v1241
      %v1253 = vmul.f32 1.0, %v1252
      %v1254 = vrcp.pop %v1242
      %v1255 = vmul.f32 1.0, %v1254
      %v1256 = vrcp.pop %v1243
      %v1257 = vmul.f32 1.0, %v1256
      %v1258 = vrcp.pop %v1244
      %v1259 = vmul.f32 1.0, %v1258
      %v1260 = vrcp.pop %v1245
      %v1261 = vmul.f32 1.0, %v1260
      %1270 = vrot.lane.b32.xlu0 %v1078, 8
      %v1271 = vpop.permute.xlu0 %1270
      %1272 = vrot.lane.b32.xlu0 %v1079, 8
      %v1273 = vpop.permute.xlu0 %1272
      %1274 = vrot.lane.b32.xlu0 %v1080, 8
      %v1275 = vpop.permute.xlu0 %1274
      %1276 = vrot.lane.b32.xlu0 %v1081, 8
      %v1277 = vpop.permute.xlu0 %1276
      %1278 = vrot.lane.b32.xlu0 %v1082, 8
      %v1279 = vpop.permute.xlu0 %1278
      %1280 = vrot.lane.b32.xlu0 %v1083, 8
      %v1281 = vpop.permute.xlu0 %1280
      %1282 = vrot.lane.b32.xlu0 %v1084, 8
      %v1283 = vpop.permute.xlu0 %1282
      %1284 = vrot.lane.b32.xlu0 %v1085, 8
      %v1285 = vpop.permute.xlu0 %1284
      %v1294 = vmul.f32 %v1247, %v1271
      %v1295 = vmul.f32 %v1249, %v1273
      %v1296 = vmul.f32 %v1251, %v1275
      %v1297 = vmul.f32 %v1253, %v1277
      %v1298 = vmul.f32 %v1255, %v1279
      %v1299 = vmul.f32 %v1257, %v1281
      %v1300 = vmul.f32 %v1259, %v1283
      %v1301 = vmul.f32 %v1261, %v1285
      %v1302 = vtanh.pop %v1070
      %v1303 = vtanh.pop %v1071
      %v1304 = vtanh.pop %v1072
      %v1305 = vtanh.pop %v1073
      %v1306 = vtanh.pop %v1074
      %v1307 = vtanh.pop %v1075
      %v1308 = vtanh.pop %v1076
      %v1309 = vtanh.pop %v1077
      %1318 = vrot.lane.b32.xlu0 %v1302, 112
      %v1319 = vpop.permute.xlu0 %1318
      %1320 = vrot.lane.b32.xlu0 %v1303, 112
      %v1321 = vpop.permute.xlu0 %1320
      %1322 = vrot.lane.b32.xlu0 %v1304, 112
      %v1323 = vpop.permute.xlu0 %1322
      %1324 = vrot.lane.b32.xlu0 %v1305, 112
      %v1325 = vpop.permute.xlu0 %1324
      %1326 = vrot.lane.b32.xlu0 %v1306, 112
      %v1327 = vpop.permute.xlu0 %1326
      %1328 = vrot.lane.b32.xlu0 %v1307, 112
      %v1329 = vpop.permute.xlu0 %1328
      %1330 = vrot.lane.b32.xlu0 %v1308, 112
      %v1331 = vpop.permute.xlu0 %1330
      %1332 = vrot.lane.b32.xlu0 %v1309, 112
      %v1333 = vpop.permute.xlu0 %1332
      %v1342 = vmul.f32 %v1143, %v1319
      %v1343 = vmul.f32 %v1145, %v1321
      %v1344 = vmul.f32 %v1147, %v1323
      %v1345 = vmul.f32 %v1149, %v1325
      %v1346 = vmul.f32 %v1151, %v1327
      %v1347 = vmul.f32 %v1153, %v1329
      %v1348 = vmul.f32 %v1155, %v1331
      %v1349 = vmul.f32 %v1157, %v1333
      %1358 = vrot.lane.b32.xlu0 %v1342, 8
      %v1359 = vpop.permute.xlu0 %1358
      %1360 = vrot.lane.b32.xlu0 %v1343, 8
      %v1361 = vpop.permute.xlu0 %1360
      %1362 = vrot.lane.b32.xlu0 %v1344, 8
      %v1363 = vpop.permute.xlu0 %1362
      %1364 = vrot.lane.b32.xlu0 %v1345, 8
      %v1365 = vpop.permute.xlu0 %1364
      %1366 = vrot.lane.b32.xlu0 %v1346, 8
      %v1367 = vpop.permute.xlu0 %1366
      %1368 = vrot.lane.b32.xlu0 %v1347, 8
      %v1369 = vpop.permute.xlu0 %1368
      %1370 = vrot.lane.b32.xlu0 %v1348, 8
      %v1371 = vpop.permute.xlu0 %1370
      %1372 = vrot.lane.b32.xlu0 %v1349, 8
      %v1373 = vpop.permute.xlu0 %1372
      %v1382 = vadd.f32 %v1294, %v1359
      %v1383 = vadd.f32 %v1295, %v1361
      %v1384 = vadd.f32 %v1296, %v1363
      %v1385 = vadd.f32 %v1297, %v1365
      %v1386 = vadd.f32 %v1298, %v1367
      %v1387 = vadd.f32 %v1299, %v1369
      %v1388 = vadd.f32 %v1300, %v1371
      %v1389 = vadd.f32 %v1301, %v1373
      %v1390 = vld [vmem:[%s489] sm:$0xff]
      %v1391 = vld [vmem:[%s489 + $0x8] sm:$0xff]
      %v1392 = vld [vmem:[%s489 + $0x10] sm:$0xff]
      %v1393 = vld [vmem:[%s489 + $0x18] sm:$0xff]
      %v1394 = vld [vmem:[%s489 + $0x20] sm:$0xff]
      %v1395 = vld [vmem:[%s489 + $0x28] sm:$0xff]
      %v1396 = vld [vmem:[%s489 + $0x30] sm:$0xff]
      %v1397 = vld [vmem:[%s489 + $0x38] sm:$0xff]
      %1406 = vrot.lane.b32.xlu0 %v1382, 120
      %v1407 = vpop.permute.xlu0 %1406
      %1408 = vrot.lane.b32.xlu0 %v1383, 120
      %v1409 = vpop.permute.xlu0 %1408
      %1410 = vrot.lane.b32.xlu0 %v1384, 120
      %v1411 = vpop.permute.xlu0 %1410
      %1412 = vrot.lane.b32.xlu0 %v1385, 120
      %v1413 = vpop.permute.xlu0 %1412
      %1414 = vrot.lane.b32.xlu0 %v1386, 120
      %v1415 = vpop.permute.xlu0 %1414
      %1416 = vrot.lane.b32.xlu0 %v1387, 120
      %v1417 = vpop.permute.xlu0 %1416
      %1418 = vrot.lane.b32.xlu0 %v1388, 120
      %v1419 = vpop.permute.xlu0 %1418
      %1420 = vrot.lane.b32.xlu0 %v1389, 120
      %v1421 = vpop.permute.xlu0 %1420
      %v1430 = vmul.f32 %v1390, %v1407
      %v1431 = vmul.f32 %v1391, %v1409
      %v1432 = vmul.f32 %v1392, %v1411
      %v1433 = vmul.f32 %v1393, %v1413
      %v1434 = vmul.f32 %v1394, %v1415
      %v1435 = vmul.f32 %v1395, %v1417
      %v1436 = vmul.f32 %v1396, %v1419
      %v1437 = vmul.f32 %v1397, %v1421
      %1446 = vrot.lane.b32.xlu0 %v1430, 24
      %v1447 = vpop.permute.xlu0 %1446
      %1448 = vrot.lane.b32.xlu0 %v1431, 24
      %v1449 = vpop.permute.xlu0 %1448
      %1450 = vrot.lane.b32.xlu0 %v1432, 24
      %v1451 = vpop.permute.xlu0 %1450
      %1452 = vrot.lane.b32.xlu0 %v1433, 24
      %v1453 = vpop.permute.xlu0 %1452
      %1454 = vrot.lane.b32.xlu0 %v1434, 24
      %v1455 = vpop.permute.xlu0 %1454
      %1456 = vrot.lane.b32.xlu0 %v1435, 24
      %v1457 = vpop.permute.xlu0 %1456
      %1458 = vrot.lane.b32.xlu0 %v1436, 24
      %v1459 = vpop.permute.xlu0 %1458
      %1460 = vrot.lane.b32.xlu0 %v1437, 24
      %v1461 = vpop.permute.xlu0 %1460
      %v1470 = vadd.f32 %v1070, %v1447
      %v1471 = vadd.f32 %v1071, %v1449
      %v1472 = vadd.f32 %v1072, %v1451
      %v1473 = vadd.f32 %v1073, %v1453
      %v1474 = vadd.f32 %v1074, %v1455
      %v1475 = vadd.f32 %v1075, %v1457
      %v1476 = vadd.f32 %v1076, %v1459
      %v1477 = vadd.f32 %v1077, %v1461
      %v1478 = vxor.u32 %v1470, 2147483648
      %v1479 = vxor.u32 %v1471, 2147483648
      %v1480 = vxor.u32 %v1472, 2147483648
      %v1481 = vxor.u32 %v1473, 2147483648
      %v1482 = vxor.u32 %v1474, 2147483648
      %v1483 = vxor.u32 %v1475, 2147483648
      %v1484 = vxor.u32 %v1476, 2147483648
      %v1485 = vxor.u32 %v1477, 2147483648
      %v1486 = vmul.f32 %v1478, 1.442695
      %v1487 = vpow.pop %v1486
      %v1488 = vmul.f32 %v1479, 1.442695
      %v1489 = vpow.pop %v1488
      %v1490 = vmul.f32 %v1480, 1.442695
      %v1491 = vpow.pop %v1490
      %v1492 = vmul.f32 %v1481, 1.442695
      %v1493 = vpow.pop %v1492
      %v1494 = vmul.f32 %v1482, 1.442695
      %v1495 = vpow.pop %v1494
      %v1496 = vmul.f32 %v1483, 1.442695
      %v1497 = vpow.pop %v1496
      %v1498 = vmul.f32 %v1484, 1.442695
      %v1499 = vpow.pop %v1498
      %v1500 = vmul.f32 %v1485, 1.442695
      %v1501 = vpow.pop %v1500
      %v1502 = vadd.f32 %v1487, 1.0
      %v1503 = vadd.f32 %v1489, 1.0
      %v1504 = vadd.f32 %v1491, 1.0
      %v1505 = vadd.f32 %v1493, 1.0
      %v1506 = vadd.f32 %v1495, 1.0
      %v1507 = vadd.f32 %v1497, 1.0
      %v1508 = vadd.f32 %v1499, 1.0
      %v1509 = vadd.f32 %v1501, 1.0
      %v1510 = vrcp.pop %v1502
      %v1511 = vmul.f32 1.0, %v1510
      %v1512 = vrcp.pop %v1503
      %v1513 = vmul.f32 1.0, %v1512
      %v1514 = vrcp.pop %v1504
      %v1515 = vmul.f32 1.0, %v1514
      %v1516 = vrcp.pop %v1505
      %v1517 = vmul.f32 1.0, %v1516
      %v1518 = vrcp.pop %v1506
      %v1519 = vmul.f32 1.0, %v1518
      %v1520 = vrcp.pop %v1507
      %v1521 = vmul.f32 1.0, %v1520
      %v1522 = vrcp.pop %v1508
      %v1523 = vmul.f32 1.0, %v1522
      %v1524 = vrcp.pop %v1509
      %v1525 = vmul.f32 1.0, %v1524
      %v1526 = vtanh.pop %v1382
      %v1527 = vtanh.pop %v1383
      %v1528 = vtanh.pop %v1384
      %v1529 = vtanh.pop %v1385
      %v1530 = vtanh.pop %v1386
      %v1531 = vtanh.pop %v1387
      %v1532 = vtanh.pop %v1388
      %v1533 = vtanh.pop %v1389
      %1542 = vrot.lane.b32.xlu0 %v1526, 16
      %v1543 = vpop.permute.xlu0 %1542
      %1544 = vrot.lane.b32.xlu0 %v1527, 16
      %v1545 = vpop.permute.xlu0 %1544
      %1546 = vrot.lane.b32.xlu0 %v1528, 16
      %v1547 = vpop.permute.xlu0 %1546
      %1548 = vrot.lane.b32.xlu0 %v1529, 16
      %v1549 = vpop.permute.xlu0 %1548
      %1550 = vrot.lane.b32.xlu0 %v1530, 16
      %v1551 = vpop.permute.xlu0 %1550
      %1552 = vrot.lane.b32.xlu0 %v1531, 16
      %v1553 = vpop.permute.xlu0 %1552
      %1554 = vrot.lane.b32.xlu0 %v1532, 16
      %v1555 = vpop.permute.xlu0 %1554
      %1556 = vrot.lane.b32.xlu0 %v1533, 16
      %v1557 = vpop.permute.xlu0 %1556
      %v1566 = vmul.f32 %v1511, %v1543
      %v1567 = vmul.f32 %v1513, %v1545
      %v1568 = vmul.f32 %v1515, %v1547
      %v1569 = vmul.f32 %v1517, %v1549
      %v1570 = vmul.f32 %v1519, %v1551
      %v1571 = vmul.f32 %v1521, %v1553
      %v1572 = vmul.f32 %v1523, %v1555
      %v1573 = vmul.f32 %v1525, %v1557
      %1582 = vrot.lane.b32.xlu0 %v1566, 104
      %v1583 = vpop.permute.xlu0 %1582
      %1584 = vrot.lane.b32.xlu0 %v1567, 104
      %v1585 = vpop.permute.xlu0 %1584
      %1586 = vrot.lane.b32.xlu0 %v1568, 104
      %v1587 = vpop.permute.xlu0 %1586
      %1588 = vrot.lane.b32.xlu0 %v1569, 104
      %v1589 = vpop.permute.xlu0 %1588
      %1590 = vrot.lane.b32.xlu0 %v1570, 104
      %v1591 = vpop.permute.xlu0 %1590
      %1592 = vrot.lane.b32.xlu0 %v1571, 104
      %v1593 = vpop.permute.xlu0 %1592
      %1594 = vrot.lane.b32.xlu0 %v1572, 104
      %v1595 = vpop.permute.xlu0 %1594
      %1596 = vrot.lane.b32.xlu0 %v1573, 104
      %v1597 = vpop.permute.xlu0 %1596
      %1606 = vst.msk [vmem:[%s507] sm:$0xff] %vm860, %v1583
      %1607 = vst.msk [vmem:[%s507 + $0x8] sm:$0xff] %vm860, %v1585
      %1608 = vst.msk [vmem:[%s507 + $0x10] sm:$0xff] %vm860, %v1587
      %1609 = vst.msk [vmem:[%s507 + $0x18] sm:$0xff] %vm860, %v1589
      %1610 = vst.msk [vmem:[%s507 + $0x20] sm:$0xff] %vm860, %v1591
      %1611 = vst.msk [vmem:[%s507 + $0x28] sm:$0xff] %vm860, %v1593
      %1612 = vst.msk [vmem:[%s507 + $0x30] sm:$0xff] %vm860, %v1595
      %1613 = vst.msk [vmem:[%s507 + $0x38] sm:$0xff] %vm860, %v1597
      %1614 = vst.msk [vmem:[#allocation3] sm:$0xff] %vm860, %v1407
      %1615 = vst.msk [vmem:[#allocation3 + $0x8] sm:$0xff] %vm860, %v1409
      %1616 = vst.msk [vmem:[#allocation3 + $0x10] sm:$0xff] %vm860, %v1411
      %1617 = vst.msk [vmem:[#allocation3 + $0x18] sm:$0xff] %vm860, %v1413
      %1618 = vst.msk [vmem:[#allocation3 + $0x20] sm:$0xff] %vm860, %v1415
      %1619 = vst.msk [vmem:[#allocation3 + $0x28] sm:$0xff] %vm860, %v1417
      %1620 = vst.msk [vmem:[#allocation3 + $0x30] sm:$0xff] %vm860, %v1419
      %1621 = vst.msk [vmem:[#allocation3 + $0x38] sm:$0xff] %vm860, %v1421
      %s1622 = scalar_lea.vmem [#allocation2], 16
      %1623 = vst.msk [vmem:[%s1622 + $0x1] sm:$0xff] %vm860, %v1583
      %1624 = vst.msk [vmem:[%s1622 + $0x11] sm:$0xff] %vm860, %v1585
      %1625 = vst.msk [vmem:[%s1622 + $0x21] sm:$0xff] %vm860, %v1587
      %1626 = vst.msk [vmem:[%s1622 + $0x31] sm:$0xff] %vm860, %v1589
      %1627 = vst.msk [vmem:[%s1622 + $0x41] sm:$0xff] %vm860, %v1591
      %1628 = vst.msk [vmem:[%s1622 + $0x51] sm:$0xff] %vm860, %v1593
      %1629 = vst.msk [vmem:[%s1622 + $0x61] sm:$0xff] %vm860, %v1595
      %1630 = vst.msk [vmem:[%s1622 + $0x71] sm:$0xff] %vm860, %v1597
      %p1631 = scmp.eq.s32.totalorder %s26, 3
      // Predicated region
      $region45: #{encoder_forward.4} parent=39 // pred_check
        %p1632 = pneg %p1631
      $region46: #{encoder_forward.4} parent=39 // pred_check_branch
        %1634 = sbr.rel (%p1632) target = $region48
      $region47: #{encoder_forward.4} parent=39 // pred_region
        %1635 = vst.msk [vmem:[%s521] sm:$0xff] %vm860, %v1583
        %1636 = vst.msk [vmem:[%s521 + $0x8] sm:$0xff] %vm860, %v1585
        %1637 = vst.msk [vmem:[%s521 + $0x10] sm:$0xff] %vm860, %v1587
        %1638 = vst.msk [vmem:[%s521 + $0x18] sm:$0xff] %vm860, %v1589
        %1639 = vst.msk [vmem:[%s521 + $0x20] sm:$0xff] %vm860, %v1591
        %1640 = vst.msk [vmem:[%s521 + $0x28] sm:$0xff] %vm860, %v1593
        %1641 = vst.msk [vmem:[%s521 + $0x30] sm:$0xff] %vm860, %v1595
        %1642 = vst.msk [vmem:[%s521 + $0x38] sm:$0xff] %vm860, %v1597
        %1643 = vst.msk [vmem:[%s530] sm:$0xff] %vm860, %v1407
        %1644 = vst.msk [vmem:[%s530 + $0x8] sm:$0xff] %vm860, %v1409
        %1645 = vst.msk [vmem:[%s530 + $0x10] sm:$0xff] %vm860, %v1411
        %1646 = vst.msk [vmem:[%s530 + $0x18] sm:$0xff] %vm860, %v1413
        %1647 = vst.msk [vmem:[%s530 + $0x20] sm:$0xff] %vm860, %v1415
        %1648 = vst.msk [vmem:[%s530 + $0x28] sm:$0xff] %vm860, %v1417
        %1649 = vst.msk [vmem:[%s530 + $0x30] sm:$0xff] %vm860, %v1419
        %1650 = vst.msk [vmem:[%s530 + $0x38] sm:$0xff] %vm860, %v1421
      $region48: #{encoder_forward.4} parent=39 // pred_fallthru
        _
      %s1651 = smul.u32 %s24, 3
      %s1652 = smul.u32 %s24, 2
      %s1653 = ssub.s32 1, %s1652
      %s1654 = smul.u32 %s1653, %s26
      %s1655 = sadd.s32 %s1651, %s1654
      %p1656 = scmp.lt.s32.totalorder %s24, 1
      %s1657 = scalar_select %p1656, %s24, 1
      %p1658 = scmp.lt.s32.totalorder %s25, 1
      %s1659 = scalar_select %p1658, %s25, 1
      %p1660 = scmp.lt.s32.totalorder %s1655, 3
      %s1661 = scalar_select %p1660, %s1655, 3
      %s1662 = smul.addr %s1661, 8
      %s1663 = smul.addr %s1659, 32
      %s1664 = sadd.s32 %s1662, %s1663
      %s1665 = smul.addr %s1657, 64
      %s1666 = sadd.s32 %s1664, %s1665
      %s1667 = smul.addr %s1666, 8
      %s1668 = scalar_lea.vmem %s5, %s1667
      %p1669 = scmp.lt.s32.totalorder %s24, 1
      %s1670 = scalar_select %p1669, %s24, 1
      %p1671 = scmp.lt.s32.totalorder %s25, 1
      %s1672 = scalar_select %p1671, %s25, 1
      %s1673 = smul.addr %s1672, 8
      %s1674 = smul.addr %s1670, 16
      %s1675 = sadd.s32 %s1673, %s1674
      %s1676 = smul.addr %s1675, 8
      %s1677 = scalar_lea.vmem %s6, %s1676
      %p1678 = scmp.lt.s32.totalorder %s24, 1
      %s1679 = scalar_select %p1678, %s24, 1
      %p1680 = scmp.lt.s32.totalorder %s25, 1
      %s1681 = scalar_select %p1680, %s25, 1
      %s1682 = smul.addr %s1681, 8
      %s1683 = smul.addr %s1679, 16
      %s1684 = sadd.s32 %s1682, %s1683
      %s1685 = smul.addr %s1684, 8
      %s1686 = scalar_lea.vmem %s7, %s1685
      // Predicated region
      $region49: #{encoder_forward.4} parent=39 // pred_check
        %p1687 = pneg %p214
      $region50: #{encoder_forward.4} parent=39 // pred_check_branch
        %1689 = sbr.rel (%p1687) target = $region52
      $region51: #{encoder_forward.4} parent=39 // pred_region
        %s1690 = smul.u32 %s24, 3
        %s1691 = smul.u32 %s24, 2
        %s1692 = ssub.s32 1, %s1691
        %s1693 = smul.u32 %s1692, %s26
        %s1694 = sadd.s32 %s1690, %s1693
      $region52: #{encoder_forward.4} parent=39 // pred_fallthru
        _
      // Predicated region
      $region53: #{encoder_forward.4} parent=39 // pred_check
        %p1695 = pneg %p242
      $region54: #{encoder_forward.4} parent=39 // pred_check_branch
        %1697 = sbr.rel (%p1695) target = $region56
      $region55: #{encoder_forward.4} parent=39 // pred_region
        _
      $region56: #{encoder_forward.4} parent=39 // pred_fallthru
        _
      // Predicated region
      $region57: #{encoder_forward.4} parent=39 // pred_check
        %p1698 = pneg %p270
      $region58: #{encoder_forward.4} parent=39 // pred_check_branch
        %1700 = sbr.rel (%p1698) target = $region60
      $region59: #{encoder_forward.4} parent=39 // pred_region
        _
      $region60: #{encoder_forward.4} parent=39 // pred_fallthru
        _
    $region40: #{encoder_forward.4} parent=5 // pred_fallthru
      _
    %p1701 = scmp.le.s32.totalorder 2, %s14
    // Predicated region
    $region61: #{encoder_forward.4} parent=5 // pred_check
      %p1702 = pneg %p1701
    $region62: #{encoder_forward.4} parent=5 // pred_check_branch
      %1704 = sbr.rel (%p1702) target = $region64
    $region63: #{encoder_forward.4} parent=5 // pred_region
      %s1705 = ssub.s32 %s14, 2
      // Predicated region
      $region65: #{encoder_forward.4} parent=63 // pred_check
        %p1706 = pneg %p220
      $region66: #{encoder_forward.4} parent=63 // pred_check_branch
        %1708 = sbr.rel (%p1706) target = $region68
      $region67: #{encoder_forward.4} parent=63 // pred_region
        %s1709 = smul.u32 %s27, 3
        %s1710 = smul.u32 %s27, 2
        %s1711 = ssub.s32 1, %s1710
        %s1712 = smul.u32 %s1711, %s29
        %s1713 = sadd.s32 %s1709, %s1712
        %p1714 = scmp.lt.s32.totalorder %s27, 1
        %s1715 = scalar_select %p1714, %s27, 1
        %p1716 = scmp.lt.s32.totalorder %s28, 1
        %s1717 = scalar_select %p1716, %s28, 1
        %p1718 = scmp.lt.s32.totalorder %s1713, 3
        %s1719 = scalar_select %p1718, %s1713, 3
        %s1720 = smul.addr %s1719, 8
        %s1721 = smul.addr %s1717, 32
        %s1722 = sadd.s32 %s1720, %s1721
        %s1723 = smul.addr %s1715, 64
        %s1724 = sadd.s32 %s1722, %s1723
        %s1725 = smul.addr %s1724, 8
        %s1726 = scalar_lea.vmem %s5, %s1725
      $region68: #{encoder_forward.4} parent=63 // pred_fallthru
        _
      // Predicated region
      $region69: #{encoder_forward.4} parent=63 // pred_check
        %p1727 = pneg %p248
      $region70: #{encoder_forward.4} parent=63 // pred_check_branch
        %1729 = sbr.rel (%p1727) target = $region72
      $region71: #{encoder_forward.4} parent=63 // pred_region
        %p1730 = scmp.lt.s32.totalorder %s27, 1
        %s1731 = scalar_select %p1730, %s27, 1
        %p1732 = scmp.lt.s32.totalorder %s28, 1
        %s1733 = scalar_select %p1732, %s28, 1
        %s1734 = smul.addr %s1733, 8
        %s1735 = smul.addr %s1731, 16
        %s1736 = sadd.s32 %s1734, %s1735
        %s1737 = smul.addr %s1736, 8
        %s1738 = scalar_lea.vmem %s6, %s1737
      $region72: #{encoder_forward.4} parent=63 // pred_fallthru
        _
      // Predicated region
      $region73: #{encoder_forward.4} parent=63 // pred_check
        %p1739 = pneg %p276
      $region74: #{encoder_forward.4} parent=63 // pred_check_branch
        %1741 = sbr.rel (%p1739) target = $region76
      $region75: #{encoder_forward.4} parent=63 // pred_region
        %p1742 = scmp.lt.s32.totalorder %s27, 1
        %s1743 = scalar_select %p1742, %s27, 1
        %p1744 = scmp.lt.s32.totalorder %s28, 1
        %s1745 = scalar_select %p1744, %s28, 1
        %s1746 = smul.addr %s1745, 8
        %s1747 = smul.addr %s1743, 16
        %s1748 = sadd.s32 %s1746, %s1747
        %s1749 = smul.addr %s1748, 8
        %s1750 = scalar_lea.vmem %s7, %s1749
      $region76: #{encoder_forward.4} parent=63 // pred_fallthru
        _
    $region64: #{encoder_forward.4} parent=5 // pred_fallthru
      _
  $region6: #{encoder_forward.4} parent=0 // loop_footer
    %s18 = sadd.s32 1, %s14
  $region7: #{encoder_forward.4} parent=0 // loop_footer_branch
    %13 = sbr.rel target = $region3
  $region8: #{encoder_forward.4} parent=0 // loop_exit
    _

</llo_original>
